<compile_context>
chip_gen: v6e
topology: v6e:2x2x1
jax: 0.10.0
libtpu: 0.0.40
codegen_flags: <defaults>
</compile_context>

<pallas_src>
import functools
import math

import jax
import jax.numpy as jnp
from jax import lax
from jax.experimental import pallas as pl
from jax.experimental.pallas import tpu as pltpu

C = 768            # channels
G = 16             # groups
CG = C // G        # 48 channels per group
K = 128            # kernel size
PAD = K // 2       # 64

_INV_SQRT2 = 1.0 / math.sqrt(2.0)


def _choose_time_tile(F):
    """Pick a time tile TF (multiple of 8, <= 64 rows) and padded frame count."""
    nt = max(1, -(-F // 64))            # ceil(F / 64) time tiles
    tf = 8 * (-(-F // (8 * nt)))        # round_up(F / nt, 8)
    return tf, nt * tf                  # (TF, F_pad)


def conv_kernel(x_ref, w_ref, b_ref, o_ref, *, r_taps):
    # x_ref : (L0, R*CG)     phase-expanded padded input slab for this (batch, group)
    # w_ref : (K//R, R*CG, CG) tap-blocked weights for this group
    # b_ref : (1, CG)        bias for this group's output channels
    # o_ref : (TF, CG)       gelu(conv + bias) for this time tile
    TF, CG_out = o_ref.shape
    KB = w_ref.shape[0]                              # number of tap blocks
    align = math.gcd(8, r_taps)

    t = pl.program_id(2)
    base_t = pl.multiple_of(t * TF, 8)               # TF is a multiple of 8

    def body(kb, acc):
        start = pl.multiple_of(base_t + kb * r_taps, align)
        slab = x_ref[pl.ds(start, TF), :]            # [TF, R*CG], aligned slice
        return acc + jnp.dot(slab, w_ref[kb],
                             preferred_element_type=jnp.float32)

    acc = lax.fori_loop(0, KB, body,
                        jnp.zeros((TF, CG_out), jnp.float32),
                        unroll=True)

    y = acc + b_ref[...].astype(jnp.float32)
    # exact (erf-based) gelu, matching torch.nn.functional.gelu default
    o_ref[...] = (0.5 * y * (1.0 + lax.erf(y * _INV_SQRT2))).astype(o_ref.dtype)


@functools.partial(jax.jit, static_argnames=("taps_per_block",))
def positional_conv_embedding(x, weight, bias, *, taps_per_block=8):
    """x: [B, F, 768] f32; weight: [768, 48, 128] (oc, ci, k); bias: [768]."""
    B, F, D = x.shape
    assert D == C, f"expected {C} channels, got {D}"
    R = taps_per_block
    assert K % R == 0

    TF, F_pad = _choose_time_tile(F)
    NT = F_pad // TF
    L0 = F_pad + K                       # rows of the phase-expanded input slab

    # [B, F, C] -> [B, G, F, CG], zero-pad time: K//2 halo each side + tile pad + phase slack
    x4 = x.reshape(B, F, G, CG).transpose(0, 2, 1, 3)
    x_padded = jnp.pad(
        x4, ((0, 0), (0, 0), (PAD, PAD + (F_pad - F) + (R - 1)), (0, 0)))
    # Phase expansion: x_phased[..., row, j*CG + ci] = x_padded[..., row + j, ci]
    # TODO(synk): for very long F, build this R-phase slab (and the zero halo) in-kernel
    # from an un-padded pl.ANY HBM ref to avoid the R x activation HBM round trip.
    x_phased = jnp.concatenate(
        [x_padded[:, :, j:j + L0, :] for j in range(R)], axis=3)   # [B, G, L0, R*CG]

    # [oc, ci, k] -> [g, k, ci, co] -> tap-blocked [g, K//R, R*CG, CG]
    w_k = jnp.transpose(weight.reshape(G, CG, CG, K), (0, 3, 2, 1))
    w_blk = w_k.reshape(G, K // R, R * CG, CG)
    b_g = bias.reshape(G, 1, CG)

    kernel = functools.partial(conv_kernel, r_taps=R)

    out = pl.pallas_call(
        kernel,
        out_shape=jax.ShapeDtypeStruct((B, G, F_pad, CG), x.dtype),
        grid_spec=pltpu.PrefetchScalarGridSpec(
            num_scalar_prefetch=0,
            # G outermost => the 1.2 MiB group-weight block stays resident across all
            # (batch, time-tile) steps; G is "parallel" so it shards across v7x's 2 TCs.
            grid=(G, B, NT),
            in_specs=[
                pl.BlockSpec((pl.Squeezed(), pl.Squeezed(), L0, R * CG),
                             lambda g, b, t: (b, g, 0, 0)),
                pl.BlockSpec((pl.Squeezed(), K // R, R * CG, CG),
                             lambda g, b, t: (g, 0, 0, 0)),
                pl.BlockSpec((pl.Squeezed(), 1, CG),
                             lambda g, b, t: (g, 0, 0)),
            ],
            out_specs=pl.BlockSpec((pl.Squeezed(), pl.Squeezed(), TF, CG),
                                   lambda g, b, t: (b, g, t, 0)),
        ),
        compiler_params=pltpu.CompilerParams(
            dimension_semantics=("parallel", "parallel", "arbitrary")),
    )(x_phased, w_blk, b_g)

    # crop time-tile padding, then [B, G, F, CG] -> [B, F, C]  (oc = g*48 + co)
    return out[:, :, :F, :].transpose(0, 2, 1, 3).reshape(B, F, C)


def reference(x, weight, bias):
    """Pure-XLA reference for correctness check."""
    B, F, _ = x.shape
    x_ncl = jnp.transpose(x, (0, 2, 1))                       # [B, C, F]
    y = lax.conv_general_dilated(
        x_ncl, weight, window_strides=(1,), padding=[(PAD, PAD)],
        dimension_numbers=("NCH", "OIH", "NCH"), feature_group_count=G)
    y = y[:, :, :F] + bias[None, :, None]
    y = 0.5 * y * (1.0 + lax.erf(y * _INV_SQRT2))
    return jnp.transpose(y, (0, 2, 1))


if __name__ == "__main__":
    key = jax.random.PRNGKey(0)
    kv, kg, kbias, kx = jax.random.split(key, 4)

    # Deterministic synthetic weight-norm parameterization (dim=2 => norm over dims 0,1):
    v = 0.05 * jax.random.normal(kv, (C, CG, K), jnp.float32)             # direction
    g_param = 1.0 + 0.1 * jax.random.normal(kg, (1, 1, K), jnp.float32)   # magnitude
    norm = jnp.sqrt(jnp.sum(v * v, axis=(0, 1), keepdims=True))
    weight = g_param * v / norm                                           # [768, 48, 128]
    bias = 0.02 * jax.random.normal(kbias, (C,), jnp.float32)

    B = 2
    # F=16: single time tile; F=72 (the module's documented frame count): exercises
    # multi-tile path with F_pad > F.
    for F in (16, 72):
        x = jax.random.normal(jax.random.fold_in(kx, F), (B, F, C), jnp.float32)

        out = jax.block_until_ready(positional_conv_embedding(x, weight, bias))
        ref = reference(x, weight, bias)

        assert out.shape == (B, F, C), out.shape
        max_err = float(jnp.max(jnp.abs(out - ref)))
        assert max_err < 1e-4, f"F={F}: max abs error {max_err}"

    print("KERNEL_OK")
</pallas_src>

<mosaic_0001>
module attributes {stable_mosaic.version = 11 : i64} {
  func.func @conv_kernel(%arg0: i32, %arg1: i32, %arg2: i32, %arg3: memref<1x1x144x384xf32, #tpu.memory_space<vmem>>, %arg4: memref<1x16x384x48xf32, #tpu.memory_space<vmem>>, %arg5: memref<1x1x48xf32, #tpu.memory_space<vmem>>, %arg6: memref<1x1x16x48xf32, #tpu.memory_space<vmem>>) attributes {dimension_semantics = [#tpu.dimension_semantics<parallel>, #tpu.dimension_semantics<parallel>, #tpu.dimension_semantics<arbitrary>], iteration_bounds = array<i64: 16, 2, 1>, scalar_prefetch = 0 : i64, scratch_operands = 0 : i64, tpu.core_type = #tpu.core_type<tc>, window_params = [{transform_indices = @transform_0, window_bounds = array<i64: 1, 1, 144, 384>}, {transform_indices = @transform_1, window_bounds = array<i64: 1, 16, 384, 48>}, {transform_indices = @transform_2, window_bounds = array<i64: 1, 1, 48>}, {transform_indices = @transform_3, window_bounds = array<i64: 1, 1, 16, 48>}]} {
    %c16_i32 = arith.constant 16 : i32
    %0 = arith.muli %arg2, %c16_i32 : i32
    %1 = tpu.assume_multiple %0, 8 : i32
    %cst = arith.constant 0.000000e+00 : f32
    %2 = vector.broadcast %cst : f32 to vector<16x48xf32>
    %c0_i32 = arith.constant 0 : i32
    %c8_i32 = arith.constant 8 : i32
    %3 = arith.muli %c0_i32, %c8_i32 : i32
    %4 = arith.addi %1, %3 : i32
    %5 = tpu.assume_multiple %4, 8 : i32
    %c0 = arith.constant 0 : index
    %c0_0 = arith.constant 0 : index
    %6 = arith.index_cast %5 : i32 to index
    %c0_1 = arith.constant 0 : index
    %7 = vector.load %arg3[%c0, %c0_0, %6, %c0_1] : memref<1x1x144x384xf32, #tpu.memory_space<vmem>>, vector<1x1x16x384xf32>
    %8 = vector.shape_cast %7 : vector<1x1x16x384xf32> to vector<16x384xf32>
    %c0_2 = arith.constant 0 : index
    %9 = arith.index_cast %c0_i32 : i32 to index
    %c0_3 = arith.constant 0 : index
    %c0_4 = arith.constant 0 : index
    %10 = vector.load %arg4[%c0_2, %9, %c0_3, %c0_4] : memref<1x16x384x48xf32, #tpu.memory_space<vmem>>, vector<1x1x384x48xf32>
    %11 = vector.shape_cast %10 : vector<1x1x384x48xf32> to vector<384x48xf32>
    %cst_5 = arith.constant dense<0.000000e+00> : vector<16x48xf32>
    %12 = tpu.matmul %8, %11, %cst_5 {dimension_numbers = #tpu.dot_dimension_numbers<[1], [0], [0], [1], [0, 0, 1, 1], [], []>} : vector<16x384xf32>, vector<384x48xf32>, vector<16x48xf32> -> vector<16x48xf32>
    %13 = arith.addf %2, %12 : vector<16x48xf32>
    %c1_i32 = arith.constant 1 : i32
    %c8_i32_6 = arith.constant 8 : i32
    %14 = arith.muli %c1_i32, %c8_i32_6 : i32
    %15 = arith.addi %1, %14 : i32
    %16 = tpu.assume_multiple %15, 8 : i32
    %c0_7 = arith.constant 0 : index
    %c0_8 = arith.constant 0 : index
    %17 = arith.index_cast %16 : i32 to index
    %c0_9 = arith.constant 0 : index
    %18 = vector.load %arg3[%c0_7, %c0_8, %17, %c0_9] : memref<1x1x144x384xf32, #tpu.memory_space<vmem>>, vector<1x1x16x384xf32>
    %19 = vector.shape_cast %18 : vector<1x1x16x384xf32> to vector<16x384xf32>
    %c0_10 = arith.constant 0 : index
    %20 = arith.index_cast %c1_i32 : i32 to index
    %c0_11 = arith.constant 0 : index
    %c0_12 = arith.constant 0 : index
    %21 = vector.load %arg4[%c0_10, %20, %c0_11, %c0_12] : memref<1x16x384x48xf32, #tpu.memory_space<vmem>>, vector<1x1x384x48xf32>
    %22 = vector.shape_cast %21 : vector<1x1x384x48xf32> to vector<384x48xf32>
    %cst_13 = arith.constant dense<0.000000e+00> : vector<16x48xf32>
    %23 = tpu.matmul %19, %22, %cst_13 {dimension_numbers = #tpu.dot_dimension_numbers<[1], [0], [0], [1], [0, 0, 1, 1], [], []>} : vector<16x384xf32>, vector<384x48xf32>, vector<16x48xf32> -> vector<16x48xf32>
    %24 = arith.addf %13, %23 : vector<16x48xf32>
    %c2_i32 = arith.constant 2 : i32
    %c8_i32_14 = arith.constant 8 : i32
    %25 = arith.muli %c2_i32, %c8_i32_14 : i32
    %26 = arith.addi %1, %25 : i32
    %27 = tpu.assume_multiple %26, 8 : i32
    %c0_15 = arith.constant 0 : index
    %c0_16 = arith.constant 0 : index
    %28 = arith.index_cast %27 : i32 to index
    %c0_17 = arith.constant 0 : index
    %29 = vector.load %arg3[%c0_15, %c0_16, %28, %c0_17] : memref<1x1x144x384xf32, #tpu.memory_space<vmem>>, vector<1x1x16x384xf32>
    %30 = vector.shape_cast %29 : vector<1x1x16x384xf32> to vector<16x384xf32>
    %c0_18 = arith.constant 0 : index
    %31 = arith.index_cast %c2_i32 : i32 to index
    %c0_19 = arith.constant 0 : index
    %c0_20 = arith.constant 0 : index
    %32 = vector.load %arg4[%c0_18, %31, %c0_19, %c0_20] : memref<1x16x384x48xf32, #tpu.memory_space<vmem>>, vector<1x1x384x48xf32>
    %33 = vector.shape_cast %32 : vector<1x1x384x48xf32> to vector<384x48xf32>
    %cst_21 = arith.constant dense<0.000000e+00> : vector<16x48xf32>
    %34 = tpu.matmul %30, %33, %cst_21 {dimension_numbers = #tpu.dot_dimension_numbers<[1], [0], [0], [1], [0, 0, 1, 1], [], []>} : vector<16x384xf32>, vector<384x48xf32>, vector<16x48xf32> -> vector<16x48xf32>
    %35 = arith.addf %24, %34 : vector<16x48xf32>
    %c3_i32 = arith.constant 3 : i32
    %c8_i32_22 = arith.constant 8 : i32
    %36 = arith.muli %c3_i32, %c8_i32_22 : i32
    %37 = arith.addi %1, %36 : i32
    %38 = tpu.assume_multiple %37, 8 : i32
    %c0_23 = arith.constant 0 : index
    %c0_24 = arith.constant 0 : index
    %39 = arith.index_cast %38 : i32 to index
    %c0_25 = arith.constant 0 : index
    %40 = vector.load %arg3[%c0_23, %c0_24, %39, %c0_25] : memref<1x1x144x384xf32, #tpu.memory_space<vmem>>, vector<1x1x16x384xf32>
    %41 = vector.shape_cast %40 : vector<1x1x16x384xf32> to vector<16x384xf32>
    %c0_26 = arith.constant 0 : index
    %42 = arith.index_cast %c3_i32 : i32 to index
    %c0_27 = arith.constant 0 : index
    %c0_28 = arith.constant 0 : index
    %43 = vector.load %arg4[%c0_26, %42, %c0_27, %c0_28] : memref<1x16x384x48xf32, #tpu.memory_space<vmem>>, vector<1x1x384x48xf32>
    %44 = vector.shape_cast %43 : vector<1x1x384x48xf32> to vector<384x48xf32>
    %cst_29 = arith.constant dense<0.000000e+00> : vector<16x48xf32>
    %45 = tpu.matmul %41, %44, %cst_29 {dimension_numbers = #tpu.dot_dimension_numbers<[1], [0], [0], [1], [0, 0, 1, 1], [], []>} : vector<16x384xf32>, vector<384x48xf32>, vector<16x48xf32> -> vector<16x48xf32>
    %46 = arith.addf %35, %45 : vector<16x48xf32>
    %c4_i32 = arith.constant 4 : i32
    %c8_i32_30 = arith.constant 8 : i32
    %47 = arith.muli %c4_i32, %c8_i32_30 : i32
    %48 = arith.addi %1, %47 : i32
    %49 = tpu.assume_multiple %48, 8 : i32
    %c0_31 = arith.constant 0 : index
    %c0_32 = arith.constant 0 : index
    %50 = arith.index_cast %49 : i32 to index
    %c0_33 = arith.constant 0 : index
    %51 = vector.load %arg3[%c0_31, %c0_32, %50, %c0_33] : memref<1x1x144x384xf32, #tpu.memory_space<vmem>>, vector<1x1x16x384xf32>
    %52 = vector.shape_cast %51 : vector<1x1x16x384xf32> to vector<16x384xf32>
    %c0_34 = arith.constant 0 : index
    %53 = arith.index_cast %c4_i32 : i32 to index
    %c0_35 = arith.constant 0 : index
    %c0_36 = arith.constant 0 : index
    %54 = vector.load %arg4[%c0_34, %53, %c0_35, %c0_36] : memref<1x16x384x48xf32, #tpu.memory_space<vmem>>, vector<1x1x384x48xf32>
    %55 = vector.shape_cast %54 : vector<1x1x384x48xf32> to vector<384x48xf32>
    %cst_37 = arith.constant dense<0.000000e+00> : vector<16x48xf32>
    %56 = tpu.matmul %52, %55, %cst_37 {dimension_numbers = #tpu.dot_dimension_numbers<[1], [0], [0], [1], [0, 0, 1, 1], [], []>} : vector<16x384xf32>, vector<384x48xf32>, vector<16x48xf32> -> vector<16x48xf32>
    %57 = arith.addf %46, %56 : vector<16x48xf32>
    %c5_i32 = arith.constant 5 : i32
    %c8_i32_38 = arith.constant 8 : i32
    %58 = arith.muli %c5_i32, %c8_i32_38 : i32
    %59 = arith.addi %1, %58 : i32
    %60 = tpu.assume_multiple %59, 8 : i32
    %c0_39 = arith.constant 0 : index
    %c0_40 = arith.constant 0 : index
    %61 = arith.index_cast %60 : i32 to index
    %c0_41 = arith.constant 0 : index
    %62 = vector.load %arg3[%c0_39, %c0_40, %61, %c0_41] : memref<1x1x144x384xf32, #tpu.memory_space<vmem>>, vector<1x1x16x384xf32>
    %63 = vector.shape_cast %62 : vector<1x1x16x384xf32> to vector<16x384xf32>
    %c0_42 = arith.constant 0 : index
    %64 = arith.index_cast %c5_i32 : i32 to index
    %c0_43 = arith.constant 0 : index
    %c0_44 = arith.constant 0 : index
    %65 = vector.load %arg4[%c0_42, %64, %c0_43, %c0_44] : memref<1x16x384x48xf32, #tpu.memory_space<vmem>>, vector<1x1x384x48xf32>
    %66 = vector.shape_cast %65 : vector<1x1x384x48xf32> to vector<384x48xf32>
    %cst_45 = arith.constant dense<0.000000e+00> : vector<16x48xf32>
    %67 = tpu.matmul %63, %66, %cst_45 {dimension_numbers = #tpu.dot_dimension_numbers<[1], [0], [0], [1], [0, 0, 1, 1], [], []>} : vector<16x384xf32>, vector<384x48xf32>, vector<16x48xf32> -> vector<16x48xf32>
    %68 = arith.addf %57, %67 : vector<16x48xf32>
    %c6_i32 = arith.constant 6 : i32
    %c8_i32_46 = arith.constant 8 : i32
    %69 = arith.muli %c6_i32, %c8_i32_46 : i32
    %70 = arith.addi %1, %69 : i32
    %71 = tpu.assume_multiple %70, 8 : i32
    %c0_47 = arith.constant 0 : index
    %c0_48 = arith.constant 0 : index
    %72 = arith.index_cast %71 : i32 to index
    %c0_49 = arith.constant 0 : index
    %73 = vector.load %arg3[%c0_47, %c0_48, %72, %c0_49] : memref<1x1x144x384xf32, #tpu.memory_space<vmem>>, vector<1x1x16x384xf32>
    %74 = vector.shape_cast %73 : vector<1x1x16x384xf32> to vector<16x384xf32>
    %c0_50 = arith.constant 0 : index
    %75 = arith.index_cast %c6_i32 : i32 to index
    %c0_51 = arith.constant 0 : index
    %c0_52 = arith.constant 0 : index
    %76 = vector.load %arg4[%c0_50, %75, %c0_51, %c0_52] : memref<1x16x384x48xf32, #tpu.memory_space<vmem>>, vector<1x1x384x48xf32>
    %77 = vector.shape_cast %76 : vector<1x1x384x48xf32> to vector<384x48xf32>
    %cst_53 = arith.constant dense<0.000000e+00> : vector<16x48xf32>
    %78 = tpu.matmul %74, %77, %cst_53 {dimension_numbers = #tpu.dot_dimension_numbers<[1], [0], [0], [1], [0, 0, 1, 1], [], []>} : vector<16x384xf32>, vector<384x48xf32>, vector<16x48xf32> -> vector<16x48xf32>
    %79 = arith.addf %68, %78 : vector<16x48xf32>
    %c7_i32 = arith.constant 7 : i32
    %c8_i32_54 = arith.constant 8 : i32
    %80 = arith.muli %c7_i32, %c8_i32_54 : i32
    %81 = arith.addi %1, %80 : i32
    %82 = tpu.assume_multiple %81, 8 : i32
    %c0_55 = arith.constant 0 : index
    %c0_56 = arith.constant 0 : index
    %83 = arith.index_cast %82 : i32 to index
    %c0_57 = arith.constant 0 : index
    %84 = vector.load %arg3[%c0_55, %c0_56, %83, %c0_57] : memref<1x1x144x384xf32, #tpu.memory_space<vmem>>, vector<1x1x16x384xf32>
    %85 = vector.shape_cast %84 : vector<1x1x16x384xf32> to vector<16x384xf32>
    %c0_58 = arith.constant 0 : index
    %86 = arith.index_cast %c7_i32 : i32 to index
    %c0_59 = arith.constant 0 : index
    %c0_60 = arith.constant 0 : index
    %87 = vector.load %arg4[%c0_58, %86, %c0_59, %c0_60] : memref<1x16x384x48xf32, #tpu.memory_space<vmem>>, vector<1x1x384x48xf32>
    %88 = vector.shape_cast %87 : vector<1x1x384x48xf32> to vector<384x48xf32>
    %cst_61 = arith.constant dense<0.000000e+00> : vector<16x48xf32>
    %89 = tpu.matmul %85, %88, %cst_61 {dimension_numbers = #tpu.dot_dimension_numbers<[1], [0], [0], [1], [0, 0, 1, 1], [], []>} : vector<16x384xf32>, vector<384x48xf32>, vector<16x48xf32> -> vector<16x48xf32>
    %90 = arith.addf %79, %89 : vector<16x48xf32>
    %c8_i32_62 = arith.constant 8 : i32
    %c8_i32_63 = arith.constant 8 : i32
    %91 = arith.muli %c8_i32_62, %c8_i32_63 : i32
    %92 = arith.addi %1, %91 : i32
    %93 = tpu.assume_multiple %92, 8 : i32
    %c0_64 = arith.constant 0 : index
    %c0_65 = arith.constant 0 : index
    %94 = arith.index_cast %93 : i32 to index
    %c0_66 = arith.constant 0 : index
    %95 = vector.load %arg3[%c0_64, %c0_65, %94, %c0_66] : memref<1x1x144x384xf32, #tpu.memory_space<vmem>>, vector<1x1x16x384xf32>
    %96 = vector.shape_cast %95 : vector<1x1x16x384xf32> to vector<16x384xf32>
    %c0_67 = arith.constant 0 : index
    %97 = arith.index_cast %c8_i32_62 : i32 to index
    %c0_68 = arith.constant 0 : index
    %c0_69 = arith.constant 0 : index
    %98 = vector.load %arg4[%c0_67, %97, %c0_68, %c0_69] : memref<1x16x384x48xf32, #tpu.memory_space<vmem>>, vector<1x1x384x48xf32>
    %99 = vector.shape_cast %98 : vector<1x1x384x48xf32> to vector<384x48xf32>
    %cst_70 = arith.constant dense<0.000000e+00> : vector<16x48xf32>
    %100 = tpu.matmul %96, %99, %cst_70 {dimension_numbers = #tpu.dot_dimension_numbers<[1], [0], [0], [1], [0, 0, 1, 1], [], []>} : vector<16x384xf32>, vector<384x48xf32>, vector<16x48xf32> -> vector<16x48xf32>
    %101 = arith.addf %90, %100 : vector<16x48xf32>
    %c9_i32 = arith.constant 9 : i32
    %c8_i32_71 = arith.constant 8 : i32
    %102 = arith.muli %c9_i32, %c8_i32_71 : i32
    %103 = arith.addi %1, %102 : i32
    %104 = tpu.assume_multiple %103, 8 : i32
    %c0_72 = arith.constant 0 : index
    %c0_73 = arith.constant 0 : index
    %105 = arith.index_cast %104 : i32 to index
    %c0_74 = arith.constant 0 : index
    %106 = vector.load %arg3[%c0_72, %c0_73, %105, %c0_74] : memref<1x1x144x384xf32, #tpu.memory_space<vmem>>, vector<1x1x16x384xf32>
    %107 = vector.shape_cast %106 : vector<1x1x16x384xf32> to vector<16x384xf32>
    %c0_75 = arith.constant 0 : index
    %108 = arith.index_cast %c9_i32 : i32 to index
    %c0_76 = arith.constant 0 : index
    %c0_77 = arith.constant 0 : index
    %109 = vector.load %arg4[%c0_75, %108, %c0_76, %c0_77] : memref<1x16x384x48xf32, #tpu.memory_space<vmem>>, vector<1x1x384x48xf32>
    %110 = vector.shape_cast %109 : vector<1x1x384x48xf32> to vector<384x48xf32>
    %cst_78 = arith.constant dense<0.000000e+00> : vector<16x48xf32>
    %111 = tpu.matmul %107, %110, %cst_78 {dimension_numbers = #tpu.dot_dimension_numbers<[1], [0], [0], [1], [0, 0, 1, 1], [], []>} : vector<16x384xf32>, vector<384x48xf32>, vector<16x48xf32> -> vector<16x48xf32>
    %112 = arith.addf %101, %111 : vector<16x48xf32>
    %c10_i32 = arith.constant 10 : i32
    %c8_i32_79 = arith.constant 8 : i32
    %113 = arith.muli %c10_i32, %c8_i32_79 : i32
    %114 = arith.addi %1, %113 : i32
    %115 = tpu.assume_multiple %114, 8 : i32
    %c0_80 = arith.constant 0 : index
    %c0_81 = arith.constant 0 : index
    %116 = arith.index_cast %115 : i32 to index
    %c0_82 = arith.constant 0 : index
    %117 = vector.load %arg3[%c0_80, %c0_81, %116, %c0_82] : memref<1x1x144x384xf32, #tpu.memory_space<vmem>>, vector<1x1x16x384xf32>
    %118 = vector.shape_cast %117 : vector<1x1x16x384xf32> to vector<16x384xf32>
    %c0_83 = arith.constant 0 : index
    %119 = arith.index_cast %c10_i32 : i32 to index
    %c0_84 = arith.constant 0 : index
    %c0_85 = arith.constant 0 : index
    %120 = vector.load %arg4[%c0_83, %119, %c0_84, %c0_85] : memref<1x16x384x48xf32, #tpu.memory_space<vmem>>, vector<1x1x384x48xf32>
    %121 = vector.shape_cast %120 : vector<1x1x384x48xf32> to vector<384x48xf32>
    %cst_86 = arith.constant dense<0.000000e+00> : vector<16x48xf32>
    %122 = tpu.matmul %118, %121, %cst_86 {dimension_numbers = #tpu.dot_dimension_numbers<[1], [0], [0], [1], [0, 0, 1, 1], [], []>} : vector<16x384xf32>, vector<384x48xf32>, vector<16x48xf32> -> vector<16x48xf32>
    %123 = arith.addf %112, %122 : vector<16x48xf32>
    %c11_i32 = arith.constant 11 : i32
    %c8_i32_87 = arith.constant 8 : i32
    %124 = arith.muli %c11_i32, %c8_i32_87 : i32
    %125 = arith.addi %1, %124 : i32
    %126 = tpu.assume_multiple %125, 8 : i32
    %c0_88 = arith.constant 0 : index
    %c0_89 = arith.constant 0 : index
    %127 = arith.index_cast %126 : i32 to index
    %c0_90 = arith.constant 0 : index
    %128 = vector.load %arg3[%c0_88, %c0_89, %127, %c0_90] : memref<1x1x144x384xf32, #tpu.memory_space<vmem>>, vector<1x1x16x384xf32>
    %129 = vector.shape_cast %128 : vector<1x1x16x384xf32> to vector<16x384xf32>
    %c0_91 = arith.constant 0 : index
    %130 = arith.index_cast %c11_i32 : i32 to index
    %c0_92 = arith.constant 0 : index
    %c0_93 = arith.constant 0 : index
    %131 = vector.load %arg4[%c0_91, %130, %c0_92, %c0_93] : memref<1x16x384x48xf32, #tpu.memory_space<vmem>>, vector<1x1x384x48xf32>
    %132 = vector.shape_cast %131 : vector<1x1x384x48xf32> to vector<384x48xf32>
    %cst_94 = arith.constant dense<0.000000e+00> : vector<16x48xf32>
    %133 = tpu.matmul %129, %132, %cst_94 {dimension_numbers = #tpu.dot_dimension_numbers<[1], [0], [0], [1], [0, 0, 1, 1], [], []>} : vector<16x384xf32>, vector<384x48xf32>, vector<16x48xf32> -> vector<16x48xf32>
    %134 = arith.addf %123, %133 : vector<16x48xf32>
    %c12_i32 = arith.constant 12 : i32
    %c8_i32_95 = arith.constant 8 : i32
    %135 = arith.muli %c12_i32, %c8_i32_95 : i32
    %136 = arith.addi %1, %135 : i32
    %137 = tpu.assume_multiple %136, 8 : i32
    %c0_96 = arith.constant 0 : index
    %c0_97 = arith.constant 0 : index
    %138 = arith.index_cast %137 : i32 to index
    %c0_98 = arith.constant 0 : index
    %139 = vector.load %arg3[%c0_96, %c0_97, %138, %c0_98] : memref<1x1x144x384xf32, #tpu.memory_space<vmem>>, vector<1x1x16x384xf32>
    %140 = vector.shape_cast %139 : vector<1x1x16x384xf32> to vector<16x384xf32>
    %c0_99 = arith.constant 0 : index
    %141 = arith.index_cast %c12_i32 : i32 to index
    %c0_100 = arith.constant 0 : index
    %c0_101 = arith.constant 0 : index
    %142 = vector.load %arg4[%c0_99, %141, %c0_100, %c0_101] : memref<1x16x384x48xf32, #tpu.memory_space<vmem>>, vector<1x1x384x48xf32>
    %143 = vector.shape_cast %142 : vector<1x1x384x48xf32> to vector<384x48xf32>
    %cst_102 = arith.constant dense<0.000000e+00> : vector<16x48xf32>
    %144 = tpu.matmul %140, %143, %cst_102 {dimension_numbers = #tpu.dot_dimension_numbers<[1], [0], [0], [1], [0, 0, 1, 1], [], []>} : vector<16x384xf32>, vector<384x48xf32>, vector<16x48xf32> -> vector<16x48xf32>
    %145 = arith.addf %134, %144 : vector<16x48xf32>
    %c13_i32 = arith.constant 13 : i32
    %c8_i32_103 = arith.constant 8 : i32
    %146 = arith.muli %c13_i32, %c8_i32_103 : i32
    %147 = arith.addi %1, %146 : i32
    %148 = tpu.assume_multiple %147, 8 : i32
    %c0_104 = arith.constant 0 : index
    %c0_105 = arith.constant 0 : index
    %149 = arith.index_cast %148 : i32 to index
    %c0_106 = arith.constant 0 : index
    %150 = vector.load %arg3[%c0_104, %c0_105, %149, %c0_106] : memref<1x1x144x384xf32, #tpu.memory_space<vmem>>, vector<1x1x16x384xf32>
    %151 = vector.shape_cast %150 : vector<1x1x16x384xf32> to vector<16x384xf32>
    %c0_107 = arith.constant 0 : index
    %152 = arith.index_cast %c13_i32 : i32 to index
    %c0_108 = arith.constant 0 : index
    %c0_109 = arith.constant 0 : index
    %153 = vector.load %arg4[%c0_107, %152, %c0_108, %c0_109] : memref<1x16x384x48xf32, #tpu.memory_space<vmem>>, vector<1x1x384x48xf32>
    %154 = vector.shape_cast %153 : vector<1x1x384x48xf32> to vector<384x48xf32>
    %cst_110 = arith.constant dense<0.000000e+00> : vector<16x48xf32>
    %155 = tpu.matmul %151, %154, %cst_110 {dimension_numbers = #tpu.dot_dimension_numbers<[1], [0], [0], [1], [0, 0, 1, 1], [], []>} : vector<16x384xf32>, vector<384x48xf32>, vector<16x48xf32> -> vector<16x48xf32>
    %156 = arith.addf %145, %155 : vector<16x48xf32>
    %c14_i32 = arith.constant 14 : i32
    %c8_i32_111 = arith.constant 8 : i32
    %157 = arith.muli %c14_i32, %c8_i32_111 : i32
    %158 = arith.addi %1, %157 : i32
    %159 = tpu.assume_multiple %158, 8 : i32
    %c0_112 = arith.constant 0 : index
    %c0_113 = arith.constant 0 : index
    %160 = arith.index_cast %159 : i32 to index
    %c0_114 = arith.constant 0 : index
    %161 = vector.load %arg3[%c0_112, %c0_113, %160, %c0_114] : memref<1x1x144x384xf32, #tpu.memory_space<vmem>>, vector<1x1x16x384xf32>
    %162 = vector.shape_cast %161 : vector<1x1x16x384xf32> to vector<16x384xf32>
    %c0_115 = arith.constant 0 : index
    %163 = arith.index_cast %c14_i32 : i32 to index
    %c0_116 = arith.constant 0 : index
    %c0_117 = arith.constant 0 : index
    %164 = vector.load %arg4[%c0_115, %163, %c0_116, %c0_117] : memref<1x16x384x48xf32, #tpu.memory_space<vmem>>, vector<1x1x384x48xf32>
    %165 = vector.shape_cast %164 : vector<1x1x384x48xf32> to vector<384x48xf32>
    %cst_118 = arith.constant dense<0.000000e+00> : vector<16x48xf32>
    %166 = tpu.matmul %162, %165, %cst_118 {dimension_numbers = #tpu.dot_dimension_numbers<[1], [0], [0], [1], [0, 0, 1, 1], [], []>} : vector<16x384xf32>, vector<384x48xf32>, vector<16x48xf32> -> vector<16x48xf32>
    %167 = arith.addf %156, %166 : vector<16x48xf32>
    %c15_i32 = arith.constant 15 : i32
    %c8_i32_119 = arith.constant 8 : i32
    %168 = arith.muli %c15_i32, %c8_i32_119 : i32
    %169 = arith.addi %1, %168 : i32
    %170 = tpu.assume_multiple %169, 8 : i32
    %c0_120 = arith.constant 0 : index
    %c0_121 = arith.constant 0 : index
    %171 = arith.index_cast %170 : i32 to index
    %c0_122 = arith.constant 0 : index
    %172 = vector.load %arg3[%c0_120, %c0_121, %171, %c0_122] : memref<1x1x144x384xf32, #tpu.memory_space<vmem>>, vector<1x1x16x384xf32>
    %173 = vector.shape_cast %172 : vector<1x1x16x384xf32> to vector<16x384xf32>
    %c0_123 = arith.constant 0 : index
    %174 = arith.index_cast %c15_i32 : i32 to index
    %c0_124 = arith.constant 0 : index
    %c0_125 = arith.constant 0 : index
    %175 = vector.load %arg4[%c0_123, %174, %c0_124, %c0_125] : memref<1x16x384x48xf32, #tpu.memory_space<vmem>>, vector<1x1x384x48xf32>
    %176 = vector.shape_cast %175 : vector<1x1x384x48xf32> to vector<384x48xf32>
    %cst_126 = arith.constant dense<0.000000e+00> : vector<16x48xf32>
    %177 = tpu.matmul %173, %176, %cst_126 {dimension_numbers = #tpu.dot_dimension_numbers<[1], [0], [0], [1], [0, 0, 1, 1], [], []>} : vector<16x384xf32>, vector<384x48xf32>, vector<16x48xf32> -> vector<16x48xf32>
    %178 = arith.addf %167, %177 : vector<16x48xf32>
    %c16_i32_127 = arith.constant 16 : i32
    %c0_128 = arith.constant 0 : index
    %c0_129 = arith.constant 0 : index
    %c0_130 = arith.constant 0 : index
    %179 = vector.load %arg5[%c0_128, %c0_129, %c0_130] : memref<1x1x48xf32, #tpu.memory_space<vmem>>, vector<1x1x48xf32>
    %180 = vector.shape_cast %179 : vector<1x1x48xf32> to vector<1x48xf32>
    %181 = vector.broadcast %180 : vector<1x48xf32> to vector<16x48xf32>
    %182 = arith.addf %178, %181 : vector<16x48xf32>
    %cst_131 = arith.constant 5.000000e-01 : f32
    %183 = vector.broadcast %cst_131 : f32 to vector<16x48xf32>
    %184 = arith.mulf %183, %182 : vector<16x48xf32>
    %cst_132 = arith.constant 0.707106769 : f32
    %185 = vector.broadcast %cst_132 : f32 to vector<16x48xf32>
    %186 = arith.mulf %182, %185 : vector<16x48xf32>
    %187 = math.erf %186 : vector<16x48xf32>
    %cst_133 = arith.constant 1.000000e+00 : f32
    %188 = vector.broadcast %cst_133 : f32 to vector<16x48xf32>
    %189 = arith.addf %188, %187 : vector<16x48xf32>
    %190 = arith.mulf %184, %189 : vector<16x48xf32>
    %c0_134 = arith.constant 0 : index
    %c0_135 = arith.constant 0 : index
    %c0_136 = arith.constant 0 : index
    %c0_137 = arith.constant 0 : index
    %191 = vector.load %arg6[%c0_134, %c0_135, %c0_136, %c0_137] : memref<1x1x16x48xf32, #tpu.memory_space<vmem>>, vector<1x1x16x48xf32>
    %192 = vector.shape_cast %191 : vector<1x1x16x48xf32> to vector<16x48xf32>
    %193 = vector.shape_cast %190 : vector<16x48xf32> to vector<1x1x16x48xf32>
    tpu.vector_store %arg6[%c0_134, %c0_135, %c0_136, %c0_137], %193 {strides = array<i32>} : memref<1x1x16x48xf32, #tpu.memory_space<vmem>>, vector<1x1x16x48xf32>,
    return
  }
  func.func @transform_0(%arg0: i32, %arg1: i32, %arg2: i32) -> (i32, i32, i32, i32) {
    %c0_i32 = arith.constant 0 : i32
    %c0_i32_0 = arith.constant 0 : i32
    %c0_i32_1 = arith.constant 0 : i32
    return %arg1, %arg0, %c0_i32, %c0_i32_0 : i32, i32, i32, i32
  }
  func.func @transform_1(%arg0: i32, %arg1: i32, %arg2: i32) -> (i32, i32, i32, i32) {
    %c0_i32 = arith.constant 0 : i32
    %c0_i32_0 = arith.constant 0 : i32
    %c0_i32_1 = arith.constant 0 : i32
    %c0_i32_2 = arith.constant 0 : i32
    return %arg0, %c0_i32, %c0_i32_0, %c0_i32_1 : i32, i32, i32, i32
  }
  func.func @transform_2(%arg0: i32, %arg1: i32, %arg2: i32) -> (i32, i32, i32) {
    %c0_i32 = arith.constant 0 : i32
    %c0_i32_0 = arith.constant 0 : i32
    %c0_i32_1 = arith.constant 0 : i32
    return %arg0, %c0_i32, %c0_i32_0 : i32, i32, i32
  }
  func.func @transform_3(%arg0: i32, %arg1: i32, %arg2: i32) -> (i32, i32, i32, i32) {
    %c0_i32 = arith.constant 0 : i32
    %c0_i32_0 = arith.constant 0 : i32
    return %arg1, %arg0, %arg2, %c0_i32 : i32, i32, i32, i32
  }
}

</mosaic_0001>

<llo_original>
// kernel: positional_conv_embedding.1
$region0: #{positional_conv_embedding.1}
  #allocation0 [shape = 'u32[]', space=smem, size = 0x4, offset = 0x4, fixed_abs, tag = 'smem constant byte address 0x4 - core index']
  #allocation1 [shape = 'u32[144,128]{1,0:T(1,128)}', space=vmem, size = 0x12000, scoped, tag = 'internal scratch']
  %s0 = inlined_call_operand.vmem [shape: f32[2,16,144,384], index: 0, kind: input, shape index: {}]
  %s1 = inlined_call_operand.vmem [shape: f32[16,16,384,48], index: 1, kind: input, shape index: {}]
  %s2 = inlined_call_operand.vmem [shape: f32[16,1,48], index: 2, kind: input, shape index: {}]
  %s3 = inlined_call_operand.vmem [shape: f32[2,16,16,48], index: 3, kind: output, shape index: {}]
  %s4 = sld [smem:[#allocation0]]
  $region45: #{positional_conv_embedding.1} parent=0
    _
  %s6 = ssub.s32 1, %s4
  %s7 = scalar_select 0, %s6, %s4
  loop: start=0, step=1, limit=34
  $region2: #{positional_conv_embedding.1} parent=0 // loop_pre_header
    _
  $region3: #{positional_conv_embedding.1} parent=0 // loop_header
    %s9 = sphi 0, %s13
    %p10 = scmp.ge.s32.totalorder %s9, 34
    %s16 = sphi 0, %s35
    %s17 = sphi 0, %s31
    %s18 = sphi 0, %s27
    %s19 = sphi 0, %s16
    %s20 = sphi 0, %s17
    %s21 = sphi 0, %s18
    %s22 = sphi 0, %s19
    %s23 = sphi 0, %s20
    %s24 = sphi 0, %s21
    %s40 = sphi 0, %s42
    %s43 = sphi 0, %s40
    %s44 = sphi 0, %s43
    %s60 = sphi 0, %s44
    %s66 = sphi 0, %s68
    %s69 = sphi 0, %s66
    %s70 = sphi 0, %s69
    %s86 = sphi 0, %s70
    %s92 = sphi 0, %s94
    %s95 = sphi 0, %s92
    %s96 = sphi 0, %s95
    %s112 = sphi 0, %s96
    %s122 = sphi 0, %s124
    %s125 = sphi 0, %s122
    %s126 = sphi 0, %s125
    %s142 = sphi 0, %s126
  $region4: #{positional_conv_embedding.1} parent=0 // loop_header_branch
    %12 = sbr.rel (%p10) target = $region8
  $region5: #{positional_conv_embedding.1} parent=0 // loop_body
    %s14 = ssub.s32 %s9, 1
    %s15 = ssub.s32 %s9, 2
    %s25 = sadd.s32 1, %s18
    %p26 = scmp.ge.s32.totalorder %s25, 1
    %s27 = scalar_select %p26, 0, %s25
    %s28 = sadd.s32 1, %s17
    %s29 = scalar_select %p26, %s28, %s17
    %p30 = scmp.ge.s32.totalorder %s29, 2
    %s31 = scalar_select %p30, 0, %s29
    %s32 = sadd.s32 1, %s16
    %s33 = scalar_select %p30, %s32, %s16
    %p34 = scmp.ge.s32.totalorder %s33, 16
    %s35 = scalar_select %p34, 0, %s33
    %s36 = ssub.s32 %s17, %s31
    %s37 = ssub.s32 %s16, %s35
    %s38 = sor.u32 %s36, %s37
    %p39 = scmp.eq.s32.totalorder %s38, 0
    %s41 = sadd.s32 %s40, 1
    %s42 = scalar_select %p39, %s40, %s41
    %p45 = pneg %p39
    %p46 = scmp.eq.s32.totalorder %s9, 31
    %p47 = por %p45, %p46
    %p48 = scmp.ne.s32.totalorder %s40, %s43
    %p49 = scmp.eq.s32.totalorder %s9, 0
    %p50 = por %p48, %p49
    %p51 = scmp.ne.s32.totalorder %s40, %s43
    %p52 = scmp.eq.s32.totalorder %s14, 31
    %p53 = por %p51, %p52
    %p54 = scmp.ne.s32.totalorder %s43, %s44
    %p55 = scmp.eq.s32.totalorder %s14, 0
    %p56 = por %p54, %p55
    %p57 = scmp.ne.s32.totalorder %s43, %s44
    %p58 = scmp.eq.s32.totalorder %s15, 31
    %p59 = por %p57, %p58
    %p61 = scmp.ne.s32.totalorder %s44, %s60
    %p62 = scmp.eq.s32.totalorder %s15, 0
    %p63 = por %p61, %p62
    %s64 = ssub.s32 %s16, %s35
    %p65 = scmp.eq.s32.totalorder %s64, 0
    %s67 = sadd.s32 %s66, 1
    %s68 = scalar_select %p65, %s66, %s67
    %p71 = pneg %p65
    %p72 = scmp.eq.s32.totalorder %s9, 31
    %p73 = por %p71, %p72
    %p74 = scmp.ne.s32.totalorder %s66, %s69
    %p75 = scmp.eq.s32.totalorder %s9, 0
    %p76 = por %p74, %p75
    %p77 = scmp.ne.s32.totalorder %s66, %s69
    %p78 = scmp.eq.s32.totalorder %s14, 31
    %p79 = por %p77, %p78
    %p80 = scmp.ne.s32.totalorder %s69, %s70
    %p81 = scmp.eq.s32.totalorder %s14, 0
    %p82 = por %p80, %p81
    %p83 = scmp.ne.s32.totalorder %s69, %s70
    %p84 = scmp.eq.s32.totalorder %s15, 31
    %p85 = por %p83, %p84
    %p87 = scmp.ne.s32.totalorder %s70, %s86
    %p88 = scmp.eq.s32.totalorder %s15, 0
    %p89 = por %p87, %p88
    %s90 = ssub.s32 %s16, %s35
    %p91 = scmp.eq.s32.totalorder %s90, 0
    %s93 = sadd.s32 %s92, 1
    %s94 = scalar_select %p91, %s92, %s93
    %p97 = pneg %p91
    %p98 = scmp.eq.s32.totalorder %s9, 31
    %p99 = por %p97, %p98
    %p100 = scmp.ne.s32.totalorder %s92, %s95
    %p101 = scmp.eq.s32.totalorder %s9, 0
    %p102 = por %p100, %p101
    %p103 = scmp.ne.s32.totalorder %s92, %s95
    %p104 = scmp.eq.s32.totalorder %s14, 31
    %p105 = por %p103, %p104
    %p106 = scmp.ne.s32.totalorder %s95, %s96
    %p107 = scmp.eq.s32.totalorder %s14, 0
    %p108 = por %p106, %p107
    %p109 = scmp.ne.s32.totalorder %s95, %s96
    %p110 = scmp.eq.s32.totalorder %s15, 31
    %p111 = por %p109, %p110
    %p113 = scmp.ne.s32.totalorder %s96, %s112
    %p114 = scmp.eq.s32.totalorder %s15, 0
    %p115 = por %p113, %p114
    %s116 = ssub.s32 %s17, %s31
    %s117 = ssub.s32 %s16, %s35
    %s118 = sor.u32 %s116, %s117
    %s119 = ssub.s32 %s18, %s27
    %s120 = sor.u32 %s118, %s119
    %p121 = scmp.eq.s32.totalorder %s120, 0
    %s123 = sadd.s32 %s122, 1
    %s124 = scalar_select %p121, %s122, %s123
    %p127 = pneg %p121
    %p128 = scmp.eq.s32.totalorder %s9, 31
    %p129 = por %p127, %p128
    %p130 = scmp.ne.s32.totalorder %s122, %s125
    %p131 = scmp.eq.s32.totalorder %s9, 0
    %p132 = por %p130, %p131
    %p133 = scmp.ne.s32.totalorder %s122, %s125
    %p134 = scmp.eq.s32.totalorder %s14, 31
    %p135 = por %p133, %p134
    %p136 = scmp.ne.s32.totalorder %s125, %s126
    %p137 = scmp.eq.s32.totalorder %s14, 0
    %p138 = por %p136, %p137
    %p139 = scmp.ne.s32.totalorder %s125, %s126
    %p140 = scmp.eq.s32.totalorder %s15, 31
    %p141 = por %p139, %p140
    %p143 = scmp.ne.s32.totalorder %s126, %s142
    %p144 = scmp.eq.s32.totalorder %s15, 0
    %p145 = por %p143, %p144
    %p146 = scmp.le.s32.totalorder 1, %s9
    %p147 = scmp.lt.s32.totalorder %s9, 33
    %p148 = pnand %p146, %p147
    %p149 = pneg %p148
    // Predicated region
    $region9: #{positional_conv_embedding.1} parent=5 // pred_check
      _
    $region10: #{positional_conv_embedding.1} parent=5 // pred_check_branch
      %151 = sbr.rel (%p148) target = $region12
    $region11: #{positional_conv_embedding.1} parent=5 // pred_region
      %s152 = ssub.s32 %s9, 1
    $region12: #{positional_conv_embedding.1} parent=5 // pred_fallthru
      _
    %p153 = scmp.lt.s32.totalorder %s9, 32
    // Predicated region
    $region13: #{positional_conv_embedding.1} parent=5 // pred_check
      %p154 = pneg %p153
    $region14: #{positional_conv_embedding.1} parent=5 // pred_check_branch
      %156 = sbr.rel (%p154) target = $region16
    $region15: #{positional_conv_embedding.1} parent=5 // pred_region
      // Predicated region
      $region17: #{positional_conv_embedding.1} parent=15 // pred_check
        %p157 = pneg %p50
      $region18: #{positional_conv_embedding.1} parent=15 // pred_check_branch
        %159 = sbr.rel (%p157) target = $region20
      $region19: #{positional_conv_embedding.1} parent=15 // pred_region
        %p160 = scmp.lt.s32.totalorder %s17, 1
        %s161 = scalar_select %p160, %s17, 1
        %p162 = scmp.lt.s32.totalorder %s16, 15
        %s163 = scalar_select %p162, %s16, 15
        %s164 = smul.addr %s163, 54
        %s165 = smul.addr %s161, 864
        %s166 = sadd.s32 %s164, %s165
        %s167 = smul.addr %s166, 8
        %s168 = scalar_lea.vmem %s0, %s167
      $region20: #{positional_conv_embedding.1} parent=15 // pred_fallthru
        _
      // Predicated region
      $region21: #{positional_conv_embedding.1} parent=15 // pred_check
        %p169 = pneg %p76
      $region22: #{positional_conv_embedding.1} parent=15 // pred_check_branch
        %171 = sbr.rel (%p169) target = $region24
      $region23: #{positional_conv_embedding.1} parent=15 // pred_region
        %p172 = scmp.lt.s32.totalorder %s16, 15
        %s173 = scalar_select %p172, %s16, 15
        %s174 = smul.addr %s173, 768
        %s175 = smul.addr %s174, 8
        %s176 = scalar_lea.vmem %s1, %s175
      $region24: #{positional_conv_embedding.1} parent=15 // pred_fallthru
        _
      // Predicated region
      $region25: #{positional_conv_embedding.1} parent=15 // pred_check
        %p177 = pneg %p102
      $region26: #{positional_conv_embedding.1} parent=15 // pred_check_branch
        %179 = sbr.rel (%p177) target = $region28
      $region27: #{positional_conv_embedding.1} parent=15 // pred_region
        %p180 = scmp.lt.s32.totalorder %s16, 15
        %s181 = scalar_select %p180, %s16, 15
        %s182 = scalar_lea.vmem %s2, %s181
      $region28: #{positional_conv_embedding.1} parent=15 // pred_fallthru
        _
    $region16: #{positional_conv_embedding.1} parent=5 // pred_fallthru
      _
    %p183 = scmp.le.s32.totalorder 1, %s9
    %p184 = scmp.lt.s32.totalorder %s9, 33
    %p185 = pnand %p183, %p184
    %p186 = pneg %p185
    // Predicated region
    $region29: #{positional_conv_embedding.1} parent=5 // pred_check
      _
    $region30: #{positional_conv_embedding.1} parent=5 // pred_check_branch
      %188 = sbr.rel (%p185) target = $region32
    $region31: #{positional_conv_embedding.1} parent=5 // pred_region
      %s189 = ssub.s32 %s9, 1
      %p190 = scmp.lt.s32.totalorder %s20, 1
      %s191 = scalar_select %p190, %s20, 1
      %p192 = scmp.lt.s32.totalorder %s19, 15
      %s193 = scalar_select %p192, %s19, 15
      %s194 = smul.addr %s193, 54
      %s195 = smul.addr %s191, 864
      %s196 = sadd.s32 %s194, %s195
      %s197 = smul.addr %s196, 8
      %s198 = scalar_lea.vmem %s0, %s197
      %p199 = pneg %p56
      %p200 = pneg %p53
      %p201 = scmp.lt.s32.totalorder %s19, 15
      %s202 = scalar_select %p201, %s19, 15
      %s203 = smul.addr %s202, 768
      %s204 = smul.addr %s203, 8
      %s205 = scalar_lea.vmem %s1, %s204
      %p206 = pneg %p82
      %p207 = pneg %p79
      %p208 = scmp.lt.s32.totalorder %s19, 15
      %s209 = scalar_select %p208, %s19, 15
      %s210 = scalar_lea.vmem %s2, %s209
      %p211 = pneg %p108
      %p212 = pneg %p105
      %p213 = pneg %p138
      %p214 = pneg %p135
      %s215 = smul.u32 2, %s21
      %p216 = scmp.lt.s32.totalorder %s20, 1
      %s217 = scalar_select %p216, %s20, 1
      %p218 = scmp.lt.s32.totalorder %s19, 15
      %s219 = scalar_select %p218, %s19, 15
      %p220 = scmp.lt.s32.totalorder %s215, 1
      %s221 = scalar_select %p220, %s215, 1
      %s222 = smul.addr %s219, 2
      %s223 = sadd.s32 %s221, %s222
      %s224 = smul.addr %s217, 32
      %s225 = sadd.s32 %s223, %s224
      %s226 = smul.addr %s225, 8
      %s227 = scalar_lea.vmem %s3, %s226
      %p228 = scmp.lt.s32.totalorder %s20, 1
      %s229 = scalar_select %p228, %s20, 1
      %p230 = scmp.lt.s32.totalorder %s19, 15
      %s231 = scalar_select %p230, %s19, 15
      %s232 = smul.addr %s231, 54
      %s233 = smul.addr %s229, 864
      %s234 = sadd.s32 %s232, %s233
      %s235 = smul.addr %s234, 8
      %s236 = scalar_lea.vmem %s0, %s235
      %p237 = scmp.lt.s32.totalorder %s19, 15
      %s238 = scalar_select %p237, %s19, 15
      %s239 = smul.addr %s238, 768
      %s240 = smul.addr %s239, 8
      %s241 = scalar_lea.vmem %s1, %s240
      %p242 = scmp.lt.s32.totalorder %s19, 15
      %s243 = scalar_select %p242, %s19, 15
      %s244 = scalar_lea.vmem %s2, %s243
      %s245 = smul.u32 2, %s21
      %p246 = scmp.lt.s32.totalorder %s20, 1
      %s247 = scalar_select %p246, %s20, 1
      %p248 = scmp.lt.s32.totalorder %s19, 15
      %s249 = scalar_select %p248, %s19, 15
      %p250 = scmp.lt.s32.totalorder %s245, 1
      %s251 = scalar_select %p250, %s245, 1
      %s252 = smul.addr %s249, 2
      %s253 = sadd.s32 %s251, %s252
      %s254 = smul.addr %s247, 32
      %s255 = sadd.s32 %s253, %s254
      %s256 = smul.addr %s255, 8
      %s257 = scalar_lea.vmem %s3, %s256
      %s258 = smul.u32 2, %s21
      %s259 = smul.u32 %s21, 16
      %s260 = sshra.s32 %s259, 3
      %s261 = sand.u32 %s259, 7
      %s262 = smul.u32 %s260, 3
      %s263 = smul.addr %s262, 8
      %s264 = scalar_lea.vmem %s236, %s263
      %v265 = vld [vmem:[%s264] sm:$0xff]
      %v266 = vld [vmem:[%s264 + $0x8] sm:$0xff]
      %v267 = vld [vmem:[%s264 + $0x10] sm:$0xff]
      %v268 = vld [vmem:[%s264 + $0x18] sm:$0xff]
      %v269 = vld [vmem:[%s264 + $0x20] sm:$0xff]
      %v270 = vld [vmem:[%s264 + $0x28] sm:$0xff]
      %v271 = vld [vmem:[%s241] sm:$0xff]
      %v272 = vld [vmem:[%s241 + $0x8] sm:$0xff]
      %v273 = vld [vmem:[%s241 + $0x10] sm:$0xff]
      %v274 = vld [vmem:[%s241 + $0x18] sm:$0xff]
      %v275 = vld [vmem:[%s241 + $0x20] sm:$0xff]
      %v276 = vld [vmem:[%s241 + $0x28] sm:$0xff]
      %v277 = vld [vmem:[%s241 + $0x30] sm:$0xff]
      %v278 = vld [vmem:[%s241 + $0x38] sm:$0xff]
      %v279 = vld [vmem:[%s241 + $0x40] sm:$0xff]
      %v280 = vld [vmem:[%s241 + $0x48] sm:$0xff]
      %v281 = vld [vmem:[%s241 + $0x50] sm:$0xff]
      %v282 = vld [vmem:[%s241 + $0x58] sm:$0xff]
      %v283 = vld [vmem:[%s241 + $0x60] sm:$0xff]
      %v284 = vld [vmem:[%s241 + $0x68] sm:$0xff]
      %v285 = vld [vmem:[%s241 + $0x70] sm:$0xff]
      %v286 = vld [vmem:[%s241 + $0x78] sm:$0xff]
      %v287 = vld [vmem:[%s241 + $0x80] sm:$0xff]
      %v288 = vld [vmem:[%s241 + $0x88] sm:$0xff]
      %v289 = vld [vmem:[%s241 + $0x90] sm:$0xff]
      %v290 = vld [vmem:[%s241 + $0x98] sm:$0xff]
      %v291 = vld [vmem:[%s241 + $0xa0] sm:$0xff]
      %v292 = vld [vmem:[%s241 + $0xa8] sm:$0xff]
      %v293 = vld [vmem:[%s241 + $0xb0] sm:$0xff]
      %v294 = vld [vmem:[%s241 + $0xb8] sm:$0xff]
      %v295 = vld [vmem:[%s241 + $0xc0] sm:$0xff]
      %v296 = vld [vmem:[%s241 + $0xc8] sm:$0xff]
      %v297 = vld [vmem:[%s241 + $0xd0] sm:$0xff]
      %v298 = vld [vmem:[%s241 + $0xd8] sm:$0xff]
      %v299 = vld [vmem:[%s241 + $0xe0] sm:$0xff]
      %v300 = vld [vmem:[%s241 + $0xe8] sm:$0xff]
      %v301 = vld [vmem:[%s241 + $0xf0] sm:$0xff]
      %v302 = vld [vmem:[%s241 + $0xf8] sm:$0xff]
      %v303 = vld [vmem:[%s241 + $0x100] sm:$0xff]
      %v304 = vld [vmem:[%s241 + $0x108] sm:$0xff]
      %v305 = vld [vmem:[%s241 + $0x110] sm:$0xff]
      %v306 = vld [vmem:[%s241 + $0x118] sm:$0xff]
      %v307 = vld [vmem:[%s241 + $0x120] sm:$0xff]
      %v308 = vld [vmem:[%s241 + $0x128] sm:$0xff]
      %v309 = vld [vmem:[%s241 + $0x130] sm:$0xff]
      %v310 = vld [vmem:[%s241 + $0x138] sm:$0xff]
      %v311 = vld [vmem:[%s241 + $0x140] sm:$0xff]
      %v312 = vld [vmem:[%s241 + $0x148] sm:$0xff]
      %v313 = vld [vmem:[%s241 + $0x150] sm:$0xff]
      %v314 = vld [vmem:[%s241 + $0x158] sm:$0xff]
      %v315 = vld [vmem:[%s241 + $0x160] sm:$0xff]
      %v316 = vld [vmem:[%s241 + $0x168] sm:$0xff]
      %v317 = vld [vmem:[%s241 + $0x170] sm:$0xff]
      %v318 = vld [vmem:[%s241 + $0x178] sm:$0xff]
      %s319 = sadd.s32 %s259, 8
      %s320 = sshra.s32 %s319, 3
      %s321 = sand.u32 %s319, 7
      %s322 = smul.u32 %s320, 3
      %s323 = smul.addr %s322, 8
      %s324 = scalar_lea.vmem %s236, %s323
      %v325 = vld [vmem:[%s324] sm:$0xff]
      %v326 = vld [vmem:[%s324 + $0x8] sm:$0xff]
      %v327 = vld [vmem:[%s324 + $0x10] sm:$0xff]
      %v328 = vld [vmem:[%s324 + $0x18] sm:$0xff]
      %v329 = vld [vmem:[%s324 + $0x20] sm:$0xff]
      %v330 = vld [vmem:[%s324 + $0x28] sm:$0xff]
      %s331 = scalar_lea.vmem %s241, 384
      %v332 = vld [vmem:[%s331] sm:$0xff]
      %v333 = vld [vmem:[%s331 + $0x8] sm:$0xff]
      %v334 = vld [vmem:[%s331 + $0x10] sm:$0xff]
      %v335 = vld [vmem:[%s331 + $0x18] sm:$0xff]
      %v336 = vld [vmem:[%s331 + $0x20] sm:$0xff]
      %v337 = vld [vmem:[%s331 + $0x28] sm:$0xff]
      %v338 = vld [vmem:[%s331 + $0x30] sm:$0xff]
      %v339 = vld [vmem:[%s331 + $0x38] sm:$0xff]
      %v340 = vld [vmem:[%s331 + $0x40] sm:$0xff]
      %v341 = vld [vmem:[%s331 + $0x48] sm:$0xff]
      %v342 = vld [vmem:[%s331 + $0x50] sm:$0xff]
      %v343 = vld [vmem:[%s331 + $0x58] sm:$0xff]
      %v344 = vld [vmem:[%s331 + $0x60] sm:$0xff]
      %v345 = vld [vmem:[%s331 + $0x68] sm:$0xff]
      %v346 = vld [vmem:[%s331 + $0x70] sm:$0xff]
      %v347 = vld [vmem:[%s331 + $0x78] sm:$0xff]
      %v348 = vld [vmem:[%s331 + $0x80] sm:$0xff]
      %v349 = vld [vmem:[%s331 + $0x88] sm:$0xff]
      %v350 = vld [vmem:[%s331 + $0x90] sm:$0xff]
      %v351 = vld [vmem:[%s331 + $0x98] sm:$0xff]
      %v352 = vld [vmem:[%s331 + $0xa0] sm:$0xff]
      %v353 = vld [vmem:[%s331 + $0xa8] sm:$0xff]
      %v354 = vld [vmem:[%s331 + $0xb0] sm:$0xff]
      %v355 = vld [vmem:[%s331 + $0xb8] sm:$0xff]
      %v356 = vld [vmem:[%s331 + $0xc0] sm:$0xff]
      %v357 = vld [vmem:[%s331 + $0xc8] sm:$0xff]
      %v358 = vld [vmem:[%s331 + $0xd0] sm:$0xff]
      %v359 = vld [vmem:[%s331 + $0xd8] sm:$0xff]
      %v360 = vld [vmem:[%s331 + $0xe0] sm:$0xff]
      %v361 = vld [vmem:[%s331 + $0xe8] sm:$0xff]
      %v362 = vld [vmem:[%s331 + $0xf0] sm:$0xff]
      %v363 = vld [vmem:[%s331 + $0xf8] sm:$0xff]
      %v364 = vld [vmem:[%s331 + $0x100] sm:$0xff]
      %v365 = vld [vmem:[%s331 + $0x108] sm:$0xff]
      %v366 = vld [vmem:[%s331 + $0x110] sm:$0xff]
      %v367 = vld [vmem:[%s331 + $0x118] sm:$0xff]
      %v368 = vld [vmem:[%s331 + $0x120] sm:$0xff]
      %v369 = vld [vmem:[%s331 + $0x128] sm:$0xff]
      %v370 = vld [vmem:[%s331 + $0x130] sm:$0xff]
      %v371 = vld [vmem:[%s331 + $0x138] sm:$0xff]
      %v372 = vld [vmem:[%s331 + $0x140] sm:$0xff]
      %v373 = vld [vmem:[%s331 + $0x148] sm:$0xff]
      %v374 = vld [vmem:[%s331 + $0x150] sm:$0xff]
      %v375 = vld [vmem:[%s331 + $0x158] sm:$0xff]
      %v376 = vld [vmem:[%s331 + $0x160] sm:$0xff]
      %v377 = vld [vmem:[%s331 + $0x168] sm:$0xff]
      %v378 = vld [vmem:[%s331 + $0x170] sm:$0xff]
      %v379 = vld [vmem:[%s331 + $0x178] sm:$0xff]
      %380 = vmatprep.subr.mxu0 0.0
      %381 = vmatpush1.msra.mxu0 %v347
      %382 = vmatprep.subr.mxu0 0.0
      %383 = vmatpush1.msra.mxu0 %v346
      %384 = vmatprep.subr.mxu0 0.0
      %385 = vmatpush1.msra.mxu0 %v345
      %386 = vmatprep.subr.mxu0 0.0
      %387 = vmatpush1.msra.mxu0 %v344
      %388 = vmatprep.subr.mxu0 0.0
      %389 = vmatpush1.msra.mxu0 %v343
      %390 = vmatprep.subr.mxu0 0.0
      %391 = vmatpush1.msra.mxu0 %v342
      %392 = vmatprep.subr.mxu0 0.0
      %393 = vmatpush1.msra.mxu0 %v341
      %394 = vmatprep.subr.mxu0 0.0
      %395 = vmatpush1.msra.mxu0 %v340
      %396 = vmatprep.subr.mxu0 0.0
      %397 = vmatpush1.msra.mxu0 %v339
      %398 = vmatprep.subr.mxu0 0.0
      %399 = vmatpush1.msra.mxu0 %v338
      %400 = vmatprep.subr.mxu0 0.0
      %401 = vmatpush1.msra.mxu0 %v337
      %402 = vmatprep.subr.mxu0 0.0
      %403 = vmatpush1.msra.mxu0 %v336
      %404 = vmatprep.subr.mxu0 0.0
      %405 = vmatpush1.msra.mxu0 %v335
      %406 = vmatprep.subr.mxu0 0.0
      %407 = vmatpush1.msra.mxu0 %v334
      %408 = vmatprep.subr.mxu0 0.0
      %409 = vmatpush1.msra.mxu0 %v333
      %410 = vmatprep.subr.mxu0 0.0
      %411 = vmatpush1.msra.mxu0 %v332
      %412 = vmatprep.subr.mxu0 0.0
      %413 = vmatpush2.msra.mxu0 %v363
      %414 = vmatprep.subr.mxu0 0.0
      %415 = vmatpush2.msra.mxu0 %v362
      %416 = vmatprep.subr.mxu0 0.0
      %417 = vmatpush2.msra.mxu0 %v361
      %418 = vmatprep.subr.mxu0 0.0
      %419 = vmatpush2.msra.mxu0 %v360
      %420 = vmatprep.subr.mxu0 0.0
      %421 = vmatpush2.msra.mxu0 %v359
      %422 = vmatprep.subr.mxu0 0.0
      %423 = vmatpush2.msra.mxu0 %v358
      %424 = vmatprep.subr.mxu0 0.0
      %425 = vmatpush2.msra.mxu0 %v357
      %426 = vmatprep.subr.mxu0 0.0
      %427 = vmatpush2.msra.mxu0 %v356
      %428 = vmatprep.subr.mxu0 0.0
      %429 = vmatpush2.msra.mxu0 %v355
      %430 = vmatprep.subr.mxu0 0.0
      %431 = vmatpush2.msra.mxu0 %v354
      %432 = vmatprep.subr.mxu0 0.0
      %433 = vmatpush2.msra.mxu0 %v353
      %434 = vmatprep.subr.mxu0 0.0
      %435 = vmatpush2.msra.mxu0 %v352
      %436 = vmatprep.subr.mxu0 0.0
      %437 = vmatpush2.msra.mxu0 %v351
      %438 = vmatprep.subr.mxu0 0.0
      %439 = vmatpush2.msra.mxu0 %v350
      %440 = vmatprep.subr.mxu0 0.0
      %441 = vmatpush2.msra.mxu0 %v349
      %442 = vmatprep.subr.mxu0 0.0
      %443 = vmatpush2.msra.mxu0 %v348
      %444 = vmatprep.mubr.f32.mxu0 %v326
      %445 = vmatmul.mubr.f32.gmra.mxu0 %v325
      %v446 = vpop.f32.mrf.mxu0
      %v447 = vadd.f32 0.0, %v446
      %v448 = vpop.f32.mrf.mxu0
      %449 = vmatprep.mubr.f32.mxu0 %v329
      %450 = vmatmul.mubr.f32.gmra.mxu0 %v328
      %v451 = vpop.f32.mrf.mxu0
      %v452 = vadd.f32 0.0, %v451
      %v453 = vpop.f32.mrf.mxu0
      %454 = vdwg.mxu0
      %455 = vmatprep.subr.mxu0 0.0
      %456 = vmatpush1.msra.mxu0 %v379
      %457 = vmatprep.subr.mxu0 0.0
      %458 = vmatpush1.msra.mxu0 %v378
      %459 = vmatprep.subr.mxu0 0.0
      %460 = vmatpush1.msra.mxu0 %v377
      %461 = vmatprep.subr.mxu0 0.0
      %462 = vmatpush1.msra.mxu0 %v376
      %463 = vmatprep.subr.mxu0 0.0
      %464 = vmatpush1.msra.mxu0 %v375
      %465 = vmatprep.subr.mxu0 0.0
      %466 = vmatpush1.msra.mxu0 %v374
      %467 = vmatprep.subr.mxu0 0.0
      %468 = vmatpush1.msra.mxu0 %v373
      %469 = vmatprep.subr.mxu0 0.0
      %470 = vmatpush1.msra.mxu0 %v372
      %471 = vmatprep.subr.mxu0 0.0
      %472 = vmatpush1.msra.mxu0 %v371
      %473 = vmatprep.subr.mxu0 0.0
      %474 = vmatpush1.msra.mxu0 %v370
      %475 = vmatprep.subr.mxu0 0.0
      %476 = vmatpush1.msra.mxu0 %v369
      %477 = vmatprep.subr.mxu0 0.0
      %478 = vmatpush1.msra.mxu0 %v368
      %479 = vmatprep.subr.mxu0 0.0
      %480 = vmatpush1.msra.mxu0 %v367
      %481 = vmatprep.subr.mxu0 0.0
      %482 = vmatpush1.msra.mxu0 %v366
      %483 = vmatprep.subr.mxu0 0.0
      %484 = vmatpush1.msra.mxu0 %v365
      %485 = vmatprep.subr.mxu0 0.0
      %486 = vmatpush1.msra.mxu0 %v364
      %487 = vmatprep.subr.mxu0 0.0
      %488 = vmatpush2.msra.mxu0 0.0
      %489 = vmatprep.subr.mxu0 0.0
      %490 = vmatpush2.msra.mxu0 0.0
      %491 = vmatprep.subr.mxu0 0.0
      %492 = vmatpush2.msra.mxu0 0.0
      %493 = vmatprep.subr.mxu0 0.0
      %494 = vmatpush2.msra.mxu0 0.0
      %495 = vmatprep.subr.mxu0 0.0
      %496 = vmatpush2.msra.mxu0 0.0
      %497 = vmatprep.subr.mxu0 0.0
      %498 = vmatpush2.msra.mxu0 0.0
      %499 = vmatprep.subr.mxu0 0.0
      %500 = vmatpush2.msra.mxu0 0.0
      %501 = vmatprep.subr.mxu0 0.0
      %502 = vmatpush2.msra.mxu0 0.0
      %503 = vmatprep.subr.mxu0 0.0
      %504 = vmatpush2.msra.mxu0 0.0
      %505 = vmatprep.subr.mxu0 0.0
      %506 = vmatpush2.msra.mxu0 0.0
      %507 = vmatprep.subr.mxu0 0.0
      %508 = vmatpush2.msra.mxu0 0.0
      %509 = vmatprep.subr.mxu0 0.0
      %510 = vmatpush2.msra.mxu0 0.0
      %511 = vmatprep.subr.mxu0 0.0
      %512 = vmatpush2.msra.mxu0 0.0
      %513 = vmatprep.subr.mxu0 0.0
      %514 = vmatpush2.msra.mxu0 0.0
      %515 = vmatprep.subr.mxu0 0.0
      %516 = vmatpush2.msra.mxu0 0.0
      %517 = vmatprep.subr.mxu0 0.0
      %518 = vmatpush2.msra.mxu0 0.0
      %519 = vmatprep.mubr.f32.mxu0 0.0
      %520 = vmatmul.mubr.f32.gmra.mxu0 %v327
      %v521 = vpop.f32.mrf.mxu0
      %v522 = vadd.f32 %v447, %v521
      %v523 = vpop.f32.mrf.mxu0
      %524 = vmatprep.mubr.f32.mxu0 0.0
      %525 = vmatmul.mubr.f32.gmra.mxu0 %v330
      %v526 = vpop.f32.mrf.mxu0
      %v527 = vadd.f32 %v452, %v526
      %v528 = vpop.f32.mrf.mxu0
      %529 = vdwg.mxu0
      %530 = vmatprep.subr.mxu0 0.0
      %531 = vmatpush1.msra.mxu0 %v286
      %532 = vmatprep.subr.mxu0 0.0
      %533 = vmatpush1.msra.mxu0 %v285
      %534 = vmatprep.subr.mxu0 0.0
      %535 = vmatpush1.msra.mxu0 %v284
      %536 = vmatprep.subr.mxu0 0.0
      %537 = vmatpush1.msra.mxu0 %v283
      %538 = vmatprep.subr.mxu0 0.0
      %539 = vmatpush1.msra.mxu0 %v282
      %540 = vmatprep.subr.mxu0 0.0
      %541 = vmatpush1.msra.mxu0 %v281
      %542 = vmatprep.subr.mxu0 0.0
      %543 = vmatpush1.msra.mxu0 %v280
      %544 = vmatprep.subr.mxu0 0.0
      %545 = vmatpush1.msra.mxu0 %v279
      %546 = vmatprep.subr.mxu0 0.0
      %547 = vmatpush1.msra.mxu0 %v278
      %548 = vmatprep.subr.mxu0 0.0
      %549 = vmatpush1.msra.mxu0 %v277
      %550 = vmatprep.subr.mxu0 0.0
      %551 = vmatpush1.msra.mxu0 %v276
      %552 = vmatprep.subr.mxu0 0.0
      %553 = vmatpush1.msra.mxu0 %v275
      %554 = vmatprep.subr.mxu0 0.0
      %555 = vmatpush1.msra.mxu0 %v274
      %556 = vmatprep.subr.mxu0 0.0
      %557 = vmatpush1.msra.mxu0 %v273
      %558 = vmatprep.subr.mxu0 0.0
      %559 = vmatpush1.msra.mxu0 %v272
      %560 = vmatprep.subr.mxu0 0.0
      %561 = vmatpush1.msra.mxu0 %v271
      %562 = vmatprep.subr.mxu0 0.0
      %563 = vmatpush2.msra.mxu0 %v302
      %564 = vmatprep.subr.mxu0 0.0
      %565 = vmatpush2.msra.mxu0 %v301
      %566 = vmatprep.subr.mxu0 0.0
      %567 = vmatpush2.msra.mxu0 %v300
      %568 = vmatprep.subr.mxu0 0.0
      %569 = vmatpush2.msra.mxu0 %v299
      %570 = vmatprep.subr.mxu0 0.0
      %571 = vmatpush2.msra.mxu0 %v298
      %572 = vmatprep.subr.mxu0 0.0
      %573 = vmatpush2.msra.mxu0 %v297
      %574 = vmatprep.subr.mxu0 0.0
      %575 = vmatpush2.msra.mxu0 %v296
      %576 = vmatprep.subr.mxu0 0.0
      %577 = vmatpush2.msra.mxu0 %v295
      %578 = vmatprep.subr.mxu0 0.0
      %579 = vmatpush2.msra.mxu0 %v294
      %580 = vmatprep.subr.mxu0 0.0
      %581 = vmatpush2.msra.mxu0 %v293
      %582 = vmatprep.subr.mxu0 0.0
      %583 = vmatpush2.msra.mxu0 %v292
      %584 = vmatprep.subr.mxu0 0.0
      %585 = vmatpush2.msra.mxu0 %v291
      %586 = vmatprep.subr.mxu0 0.0
      %587 = vmatpush2.msra.mxu0 %v290
      %588 = vmatprep.subr.mxu0 0.0
      %589 = vmatpush2.msra.mxu0 %v289
      %590 = vmatprep.subr.mxu0 0.0
      %591 = vmatpush2.msra.mxu0 %v288
      %592 = vmatprep.subr.mxu0 0.0
      %593 = vmatpush2.msra.mxu0 %v287
      %594 = vmatprep.mubr.f32.mxu0 %v266
      %595 = vmatmul.mubr.f32.gmra.mxu0 %v265
      %v596 = vpop.f32.mrf.mxu0
      %v597 = vadd.f32 %v522, %v596
      %v598 = vpop.f32.mrf.mxu0
      %599 = vmatprep.mubr.f32.mxu0 %v269
      %600 = vmatmul.mubr.f32.gmra.mxu0 %v268
      %v601 = vpop.f32.mrf.mxu0
      %v602 = vadd.f32 %v527, %v601
      %v603 = vpop.f32.mrf.mxu0
      %604 = vdwg.mxu0
      %605 = vmatprep.subr.mxu0 0.0
      %606 = vmatpush1.msra.mxu0 %v318
      %607 = vmatprep.subr.mxu0 0.0
      %608 = vmatpush1.msra.mxu0 %v317
      %609 = vmatprep.subr.mxu0 0.0
      %610 = vmatpush1.msra.mxu0 %v316
      %611 = vmatprep.subr.mxu0 0.0
      %612 = vmatpush1.msra.mxu0 %v315
      %613 = vmatprep.subr.mxu0 0.0
      %614 = vmatpush1.msra.mxu0 %v314
      %615 = vmatprep.subr.mxu0 0.0
      %616 = vmatpush1.msra.mxu0 %v313
      %617 = vmatprep.subr.mxu0 0.0
      %618 = vmatpush1.msra.mxu0 %v312
      %619 = vmatprep.subr.mxu0 0.0
      %620 = vmatpush1.msra.mxu0 %v311
      %621 = vmatprep.subr.mxu0 0.0
      %622 = vmatpush1.msra.mxu0 %v310
      %623 = vmatprep.subr.mxu0 0.0
      %624 = vmatpush1.msra.mxu0 %v309
      %625 = vmatprep.subr.mxu0 0.0
      %626 = vmatpush1.msra.mxu0 %v308
      %627 = vmatprep.subr.mxu0 0.0
      %628 = vmatpush1.msra.mxu0 %v307
      %629 = vmatprep.subr.mxu0 0.0
      %630 = vmatpush1.msra.mxu0 %v306
      %631 = vmatprep.subr.mxu0 0.0
      %632 = vmatpush1.msra.mxu0 %v305
      %633 = vmatprep.subr.mxu0 0.0
      %634 = vmatpush1.msra.mxu0 %v304
      %635 = vmatprep.subr.mxu0 0.0
      %636 = vmatpush1.msra.mxu0 %v303
      %637 = vmatprep.subr.mxu0 0.0
      %638 = vmatpush2.msra.mxu0 0.0
      %639 = vmatprep.subr.mxu0 0.0
      %640 = vmatpush2.msra.mxu0 0.0
      %641 = vmatprep.subr.mxu0 0.0
      %642 = vmatpush2.msra.mxu0 0.0
      %643 = vmatprep.subr.mxu0 0.0
      %644 = vmatpush2.msra.mxu0 0.0
      %645 = vmatprep.subr.mxu0 0.0
      %646 = vmatpush2.msra.mxu0 0.0
      %647 = vmatprep.subr.mxu0 0.0
      %648 = vmatpush2.msra.mxu0 0.0
      %649 = vmatprep.subr.mxu0 0.0
      %650 = vmatpush2.msra.mxu0 0.0
      %651 = vmatprep.subr.mxu0 0.0
      %652 = vmatpush2.msra.mxu0 0.0
      %653 = vmatprep.subr.mxu0 0.0
      %654 = vmatpush2.msra.mxu0 0.0
      %655 = vmatprep.subr.mxu0 0.0
      %656 = vmatpush2.msra.mxu0 0.0
      %657 = vmatprep.subr.mxu0 0.0
      %658 = vmatpush2.msra.mxu0 0.0
      %659 = vmatprep.subr.mxu0 0.0
      %660 = vmatpush2.msra.mxu0 0.0
      %661 = vmatprep.subr.mxu0 0.0
      %662 = vmatpush2.msra.mxu0 0.0
      %663 = vmatprep.subr.mxu0 0.0
      %664 = vmatpush2.msra.mxu0 0.0
      %665 = vmatprep.subr.mxu0 0.0
      %666 = vmatpush2.msra.mxu0 0.0
      %667 = vmatprep.subr.mxu0 0.0
      %668 = vmatpush2.msra.mxu0 0.0
      %669 = vmatprep.mubr.f32.mxu0 0.0
      %670 = vmatmul.mubr.f32.gmra.mxu0 %v267
      %v671 = vpop.f32.mrf.mxu0
      %v672 = vadd.f32 %v597, %v671
      %v673 = vpop.f32.mrf.mxu0
      %674 = vmatprep.mubr.f32.mxu0 0.0
      %675 = vmatmul.mubr.f32.gmra.mxu0 %v270
      %v676 = vpop.f32.mrf.mxu0
      %v677 = vadd.f32 %v602, %v676
      %v678 = vpop.f32.mrf.mxu0
      %679 = vdwg.mxu0
      %s680 = sadd.s32 %s259, 16
      %s681 = sshra.s32 %s680, 3
      %s682 = sand.u32 %s680, 7
      %s683 = smul.u32 %s681, 3
      %s684 = smul.addr %s683, 8
      %s685 = scalar_lea.vmem %s236, %s684
      %v686 = vld [vmem:[%s685] sm:$0xff]
      %v687 = vld [vmem:[%s685 + $0x8] sm:$0xff]
      %v688 = vld [vmem:[%s685 + $0x10] sm:$0xff]
      %v689 = vld [vmem:[%s685 + $0x18] sm:$0xff]
      %v690 = vld [vmem:[%s685 + $0x20] sm:$0xff]
      %v691 = vld [vmem:[%s685 + $0x28] sm:$0xff]
      %s692 = scalar_lea.vmem %s241, 768
      %v693 = vld [vmem:[%s692] sm:$0xff]
      %v694 = vld [vmem:[%s692 + $0x8] sm:$0xff]
      %v695 = vld [vmem:[%s692 + $0x10] sm:$0xff]
      %v696 = vld [vmem:[%s692 + $0x18] sm:$0xff]
      %v697 = vld [vmem:[%s692 + $0x20] sm:$0xff]
      %v698 = vld [vmem:[%s692 + $0x28] sm:$0xff]
      %v699 = vld [vmem:[%s692 + $0x30] sm:$0xff]
      %v700 = vld [vmem:[%s692 + $0x38] sm:$0xff]
      %v701 = vld [vmem:[%s692 + $0x40] sm:$0xff]
      %v702 = vld [vmem:[%s692 + $0x48] sm:$0xff]
      %v703 = vld [vmem:[%s692 + $0x50] sm:$0xff]
      %v704 = vld [vmem:[%s692 + $0x58] sm:$0xff]
      %v705 = vld [vmem:[%s692 + $0x60] sm:$0xff]
      %v706 = vld [vmem:[%s692 + $0x68] sm:$0xff]
      %v707 = vld [vmem:[%s692 + $0x70] sm:$0xff]
      %v708 = vld [vmem:[%s692 + $0x78] sm:$0xff]
      %v709 = vld [vmem:[%s692 + $0x80] sm:$0xff]
      %v710 = vld [vmem:[%s692 + $0x88] sm:$0xff]
      %v711 = vld [vmem:[%s692 + $0x90] sm:$0xff]
      %v712 = vld [vmem:[%s692 + $0x98] sm:$0xff]
      %v713 = vld [vmem:[%s692 + $0xa0] sm:$0xff]
      %v714 = vld [vmem:[%s692 + $0xa8] sm:$0xff]
      %v715 = vld [vmem:[%s692 + $0xb0] sm:$0xff]
      %v716 = vld [vmem:[%s692 + $0xb8] sm:$0xff]
      %v717 = vld [vmem:[%s692 + $0xc0] sm:$0xff]
      %v718 = vld [vmem:[%s692 + $0xc8] sm:$0xff]
      %v719 = vld [vmem:[%s692 + $0xd0] sm:$0xff]
      %v720 = vld [vmem:[%s692 + $0xd8] sm:$0xff]
      %v721 = vld [vmem:[%s692 + $0xe0] sm:$0xff]
      %v722 = vld [vmem:[%s692 + $0xe8] sm:$0xff]
      %v723 = vld [vmem:[%s692 + $0xf0] sm:$0xff]
      %v724 = vld [vmem:[%s692 + $0xf8] sm:$0xff]
      %v725 = vld [vmem:[%s692 + $0x100] sm:$0xff]
      %v726 = vld [vmem:[%s692 + $0x108] sm:$0xff]
      %v727 = vld [vmem:[%s692 + $0x110] sm:$0xff]
      %v728 = vld [vmem:[%s692 + $0x118] sm:$0xff]
      %v729 = vld [vmem:[%s692 + $0x120] sm:$0xff]
      %v730 = vld [vmem:[%s692 + $0x128] sm:$0xff]
      %v731 = vld [vmem:[%s692 + $0x130] sm:$0xff]
      %v732 = vld [vmem:[%s692 + $0x138] sm:$0xff]
      %v733 = vld [vmem:[%s692 + $0x140] sm:$0xff]
      %v734 = vld [vmem:[%s692 + $0x148] sm:$0xff]
      %v735 = vld [vmem:[%s692 + $0x150] sm:$0xff]
      %v736 = vld [vmem:[%s692 + $0x158] sm:$0xff]
      %v737 = vld [vmem:[%s692 + $0x160] sm:$0xff]
      %v738 = vld [vmem:[%s692 + $0x168] sm:$0xff]
      %v739 = vld [vmem:[%s692 + $0x170] sm:$0xff]
      %v740 = vld [vmem:[%s692 + $0x178] sm:$0xff]
      %741 = vmatprep.subr.mxu0 0.0
      %742 = vmatpush1.msra.mxu0 %v708
      %743 = vmatprep.subr.mxu0 0.0
      %744 = vmatpush1.msra.mxu0 %v707
      %745 = vmatprep.subr.mxu0 0.0
      %746 = vmatpush1.msra.mxu0 %v706
      %747 = vmatprep.subr.mxu0 0.0
      %748 = vmatpush1.msra.mxu0 %v705
      %749 = vmatprep.subr.mxu0 0.0
      %750 = vmatpush1.msra.mxu0 %v704
      %751 = vmatprep.subr.mxu0 0.0
      %752 = vmatpush1.msra.mxu0 %v703
      %753 = vmatprep.subr.mxu0 0.0
      %754 = vmatpush1.msra.mxu0 %v702
      %755 = vmatprep.subr.mxu0 0.0
      %756 = vmatpush1.msra.mxu0 %v701
      %757 = vmatprep.subr.mxu0 0.0
      %758 = vmatpush1.msra.mxu0 %v700
      %759 = vmatprep.subr.mxu0 0.0
      %760 = vmatpush1.msra.mxu0 %v699
      %761 = vmatprep.subr.mxu0 0.0
      %762 = vmatpush1.msra.mxu0 %v698
      %763 = vmatprep.subr.mxu0 0.0
      %764 = vmatpush1.msra.mxu0 %v697
      %765 = vmatprep.subr.mxu0 0.0
      %766 = vmatpush1.msra.mxu0 %v696
      %767 = vmatprep.subr.mxu0 0.0
      %768 = vmatpush1.msra.mxu0 %v695
      %769 = vmatprep.subr.mxu0 0.0
      %770 = vmatpush1.msra.mxu0 %v694
      %771 = vmatprep.subr.mxu0 0.0
      %772 = vmatpush1.msra.mxu0 %v693
      %773 = vmatprep.subr.mxu0 0.0
      %774 = vmatpush2.msra.mxu0 %v724
      %775 = vmatprep.subr.mxu0 0.0
      %776 = vmatpush2.msra.mxu0 %v723
      %777 = vmatprep.subr.mxu0 0.0
      %778 = vmatpush2.msra.mxu0 %v722
      %779 = vmatprep.subr.mxu0 0.0
      %780 = vmatpush2.msra.mxu0 %v721
      %781 = vmatprep.subr.mxu0 0.0
      %782 = vmatpush2.msra.mxu0 %v720
      %783 = vmatprep.subr.mxu0 0.0
      %784 = vmatpush2.msra.mxu0 %v719
      %785 = vmatprep.subr.mxu0 0.0
      %786 = vmatpush2.msra.mxu0 %v718
      %787 = vmatprep.subr.mxu0 0.0
      %788 = vmatpush2.msra.mxu0 %v717
      %789 = vmatprep.subr.mxu0 0.0
      %790 = vmatpush2.msra.mxu0 %v716
      %791 = vmatprep.subr.mxu0 0.0
      %792 = vmatpush2.msra.mxu0 %v715
      %793 = vmatprep.subr.mxu0 0.0
      %794 = vmatpush2.msra.mxu0 %v714
      %795 = vmatprep.subr.mxu0 0.0
      %796 = vmatpush2.msra.mxu0 %v713
      %797 = vmatprep.subr.mxu0 0.0
      %798 = vmatpush2.msra.mxu0 %v712
      %799 = vmatprep.subr.mxu0 0.0
      %800 = vmatpush2.msra.mxu0 %v711
      %801 = vmatprep.subr.mxu0 0.0
      %802 = vmatpush2.msra.mxu0 %v710
      %803 = vmatprep.subr.mxu0 0.0
      %804 = vmatpush2.msra.mxu0 %v709
      %805 = vmatprep.mubr.f32.mxu0 %v687
      %806 = vmatmul.mubr.f32.gmra.mxu0 %v686
      %v807 = vpop.f32.mrf.mxu0
      %v808 = vadd.f32 0.0, %v807
      %v809 = vpop.f32.mrf.mxu0
      %810 = vmatprep.mubr.f32.mxu0 %v690
      %811 = vmatmul.mubr.f32.gmra.mxu0 %v689
      %v812 = vpop.f32.mrf.mxu0
      %v813 = vadd.f32 0.0, %v812
      %v814 = vpop.f32.mrf.mxu0
      %815 = vdwg.mxu0
      %816 = vmatprep.subr.mxu0 0.0
      %817 = vmatpush1.msra.mxu0 %v740
      %818 = vmatprep.subr.mxu0 0.0
      %819 = vmatpush1.msra.mxu0 %v739
      %820 = vmatprep.subr.mxu0 0.0
      %821 = vmatpush1.msra.mxu0 %v738
      %822 = vmatprep.subr.mxu0 0.0
      %823 = vmatpush1.msra.mxu0 %v737
      %824 = vmatprep.subr.mxu0 0.0
      %825 = vmatpush1.msra.mxu0 %v736
      %826 = vmatprep.subr.mxu0 0.0
      %827 = vmatpush1.msra.mxu0 %v735
      %828 = vmatprep.subr.mxu0 0.0
      %829 = vmatpush1.msra.mxu0 %v734
      %830 = vmatprep.subr.mxu0 0.0
      %831 = vmatpush1.msra.mxu0 %v733
      %832 = vmatprep.subr.mxu0 0.0
      %833 = vmatpush1.msra.mxu0 %v732
      %834 = vmatprep.subr.mxu0 0.0
      %835 = vmatpush1.msra.mxu0 %v731
      %836 = vmatprep.subr.mxu0 0.0
      %837 = vmatpush1.msra.mxu0 %v730
      %838 = vmatprep.subr.mxu0 0.0
      %839 = vmatpush1.msra.mxu0 %v729
      %840 = vmatprep.subr.mxu0 0.0
      %841 = vmatpush1.msra.mxu0 %v728
      %842 = vmatprep.subr.mxu0 0.0
      %843 = vmatpush1.msra.mxu0 %v727
      %844 = vmatprep.subr.mxu0 0.0
      %845 = vmatpush1.msra.mxu0 %v726
      %846 = vmatprep.subr.mxu0 0.0
      %847 = vmatpush1.msra.mxu0 %v725
      %848 = vmatprep.subr.mxu0 0.0
      %849 = vmatpush2.msra.mxu0 0.0
      %850 = vmatprep.subr.mxu0 0.0
      %851 = vmatpush2.msra.mxu0 0.0
      %852 = vmatprep.subr.mxu0 0.0
      %853 = vmatpush2.msra.mxu0 0.0
      %854 = vmatprep.subr.mxu0 0.0
      %855 = vmatpush2.msra.mxu0 0.0
      %856 = vmatprep.subr.mxu0 0.0
      %857 = vmatpush2.msra.mxu0 0.0
      %858 = vmatprep.subr.mxu0 0.0
      %859 = vmatpush2.msra.mxu0 0.0
      %860 = vmatprep.subr.mxu0 0.0
      %861 = vmatpush2.msra.mxu0 0.0
      %862 = vmatprep.subr.mxu0 0.0
      %863 = vmatpush2.msra.mxu0 0.0
      %864 = vmatprep.subr.mxu0 0.0
      %865 = vmatpush2.msra.mxu0 0.0
      %866 = vmatprep.subr.mxu0 0.0
      %867 = vmatpush2.msra.mxu0 0.0
      %868 = vmatprep.subr.mxu0 0.0
      %869 = vmatpush2.msra.mxu0 0.0
      %870 = vmatprep.subr.mxu0 0.0
      %871 = vmatpush2.msra.mxu0 0.0
      %872 = vmatprep.subr.mxu0 0.0
      %873 = vmatpush2.msra.mxu0 0.0
      %874 = vmatprep.subr.mxu0 0.0
      %875 = vmatpush2.msra.mxu0 0.0
      %876 = vmatprep.subr.mxu0 0.0
      %877 = vmatpush2.msra.mxu0 0.0
      %878 = vmatprep.subr.mxu0 0.0
      %879 = vmatpush2.msra.mxu0 0.0
      %880 = vmatprep.mubr.f32.mxu0 0.0
      %881 = vmatmul.mubr.f32.gmra.mxu0 %v688
      %v882 = vpop.f32.mrf.mxu0
      %v883 = vadd.f32 %v808, %v882
      %v884 = vpop.f32.mrf.mxu0
      %885 = vmatprep.mubr.f32.mxu0 0.0
      %886 = vmatmul.mubr.f32.gmra.mxu0 %v691
      %v887 = vpop.f32.mrf.mxu0
      %v888 = vadd.f32 %v813, %v887
      %v889 = vpop.f32.mrf.mxu0
      %890 = vdwg.mxu0
      %v891 = vadd.f32 %v672, %v883
      %v892 = vadd.f32 %v677, %v888
      %s893 = sadd.s32 %s259, 24
      %s894 = sshra.s32 %s893, 3
      %s895 = sand.u32 %s893, 7
      %s896 = smul.u32 %s894, 3
      %s897 = smul.addr %s896, 8
      %s898 = scalar_lea.vmem %s236, %s897
      %v899 = vld [vmem:[%s898] sm:$0xff]
      %v900 = vld [vmem:[%s898 + $0x8] sm:$0xff]
      %v901 = vld [vmem:[%s898 + $0x10] sm:$0xff]
      %v902 = vld [vmem:[%s898 + $0x18] sm:$0xff]
      %v903 = vld [vmem:[%s898 + $0x20] sm:$0xff]
      %v904 = vld [vmem:[%s898 + $0x28] sm:$0xff]
      %s905 = scalar_lea.vmem %s241, 1152
      %v906 = vld [vmem:[%s905] sm:$0xff]
      %v907 = vld [vmem:[%s905 + $0x8] sm:$0xff]
      %v908 = vld [vmem:[%s905 + $0x10] sm:$0xff]
      %v909 = vld [vmem:[%s905 + $0x18] sm:$0xff]
      %v910 = vld [vmem:[%s905 + $0x20] sm:$0xff]
      %v911 = vld [vmem:[%s905 + $0x28] sm:$0xff]
      %v912 = vld [vmem:[%s905 + $0x30] sm:$0xff]
      %v913 = vld [vmem:[%s905 + $0x38] sm:$0xff]
      %v914 = vld [vmem:[%s905 + $0x40] sm:$0xff]
      %v915 = vld [vmem:[%s905 + $0x48] sm:$0xff]
      %v916 = vld [vmem:[%s905 + $0x50] sm:$0xff]
      %v917 = vld [vmem:[%s905 + $0x58] sm:$0xff]
      %v918 = vld [vmem:[%s905 + $0x60] sm:$0xff]
      %v919 = vld [vmem:[%s905 + $0x68] sm:$0xff]
      %v920 = vld [vmem:[%s905 + $0x70] sm:$0xff]
      %v921 = vld [vmem:[%s905 + $0x78] sm:$0xff]
      %v922 = vld [vmem:[%s905 + $0x80] sm:$0xff]
      %v923 = vld [vmem:[%s905 + $0x88] sm:$0xff]
      %v924 = vld [vmem:[%s905 + $0x90] sm:$0xff]
      %v925 = vld [vmem:[%s905 + $0x98] sm:$0xff]
      %v926 = vld [vmem:[%s905 + $0xa0] sm:$0xff]
      %v927 = vld [vmem:[%s905 + $0xa8] sm:$0xff]
      %v928 = vld [vmem:[%s905 + $0xb0] sm:$0xff]
      %v929 = vld [vmem:[%s905 + $0xb8] sm:$0xff]
      %v930 = vld [vmem:[%s905 + $0xc0] sm:$0xff]
      %v931 = vld [vmem:[%s905 + $0xc8] sm:$0xff]
      %v932 = vld [vmem:[%s905 + $0xd0] sm:$0xff]
      %v933 = vld [vmem:[%s905 + $0xd8] sm:$0xff]
      %v934 = vld [vmem:[%s905 + $0xe0] sm:$0xff]
      %v935 = vld [vmem:[%s905 + $0xe8] sm:$0xff]
      %v936 = vld [vmem:[%s905 + $0xf0] sm:$0xff]
      %v937 = vld [vmem:[%s905 + $0xf8] sm:$0xff]
      %v938 = vld [vmem:[%s905 + $0x100] sm:$0xff]
      %v939 = vld [vmem:[%s905 + $0x108] sm:$0xff]
      %v940 = vld [vmem:[%s905 + $0x110] sm:$0xff]
      %v941 = vld [vmem:[%s905 + $0x118] sm:$0xff]
      %v942 = vld [vmem:[%s905 + $0x120] sm:$0xff]
      %v943 = vld [vmem:[%s905 + $0x128] sm:$0xff]
      %v944 = vld [vmem:[%s905 + $0x130] sm:$0xff]
      %v945 = vld [vmem:[%s905 + $0x138] sm:$0xff]
      %v946 = vld [vmem:[%s905 + $0x140] sm:$0xff]
      %v947 = vld [vmem:[%s905 + $0x148] sm:$0xff]
      %v948 = vld [vmem:[%s905 + $0x150] sm:$0xff]
      %v949 = vld [vmem:[%s905 + $0x158] sm:$0xff]
      %v950 = vld [vmem:[%s905 + $0x160] sm:$0xff]
      %v951 = vld [vmem:[%s905 + $0x168] sm:$0xff]
      %v952 = vld [vmem:[%s905 + $0x170] sm:$0xff]
      %v953 = vld [vmem:[%s905 + $0x178] sm:$0xff]
      %954 = vmatprep.subr.mxu0 0.0
      %955 = vmatpush1.msra.mxu0 %v921
      %956 = vmatprep.subr.mxu0 0.0
      %957 = vmatpush1.msra.mxu0 %v920
      %958 = vmatprep.subr.mxu0 0.0
      %959 = vmatpush1.msra.mxu0 %v919
      %960 = vmatprep.subr.mxu0 0.0
      %961 = vmatpush1.msra.mxu0 %v918
      %962 = vmatprep.subr.mxu0 0.0
      %963 = vmatpush1.msra.mxu0 %v917
      %964 = vmatprep.subr.mxu0 0.0
      %965 = vmatpush1.msra.mxu0 %v916
      %966 = vmatprep.subr.mxu0 0.0
      %967 = vmatpush1.msra.mxu0 %v915
      %968 = vmatprep.subr.mxu0 0.0
      %969 = vmatpush1.msra.mxu0 %v914
      %970 = vmatprep.subr.mxu0 0.0
      %971 = vmatpush1.msra.mxu0 %v913
      %972 = vmatprep.subr.mxu0 0.0
      %973 = vmatpush1.msra.mxu0 %v912
      %974 = vmatprep.subr.mxu0 0.0
      %975 = vmatpush1.msra.mxu0 %v911
      %976 = vmatprep.subr.mxu0 0.0
      %977 = vmatpush1.msra.mxu0 %v910
      %978 = vmatprep.subr.mxu0 0.0
      %979 = vmatpush1.msra.mxu0 %v909
      %980 = vmatprep.subr.mxu0 0.0
      %981 = vmatpush1.msra.mxu0 %v908
      %982 = vmatprep.subr.mxu0 0.0
      %983 = vmatpush1.msra.mxu0 %v907
      %984 = vmatprep.subr.mxu0 0.0
      %985 = vmatpush1.msra.mxu0 %v906
      %986 = vmatprep.subr.mxu0 0.0
      %987 = vmatpush2.msra.mxu0 %v937
      %988 = vmatprep.subr.mxu0 0.0
      %989 = vmatpush2.msra.mxu0 %v936
      %990 = vmatprep.subr.mxu0 0.0
      %991 = vmatpush2.msra.mxu0 %v935
      %992 = vmatprep.subr.mxu0 0.0
      %993 = vmatpush2.msra.mxu0 %v934
      %994 = vmatprep.subr.mxu0 0.0
      %995 = vmatpush2.msra.mxu0 %v933
      %996 = vmatprep.subr.mxu0 0.0
      %997 = vmatpush2.msra.mxu0 %v932
      %998 = vmatprep.subr.mxu0 0.0
      %999 = vmatpush2.msra.mxu0 %v931
      %1000 = vmatprep.subr.mxu0 0.0
      %1001 = vmatpush2.msra.mxu0 %v930
      %1002 = vmatprep.subr.mxu0 0.0
      %1003 = vmatpush2.msra.mxu0 %v929
      %1004 = vmatprep.subr.mxu0 0.0
      %1005 = vmatpush2.msra.mxu0 %v928
      %1006 = vmatprep.subr.mxu0 0.0
      %1007 = vmatpush2.msra.mxu0 %v927
      %1008 = vmatprep.subr.mxu0 0.0
      %1009 = vmatpush2.msra.mxu0 %v926
      %1010 = vmatprep.subr.mxu0 0.0
      %1011 = vmatpush2.msra.mxu0 %v925
      %1012 = vmatprep.subr.mxu0 0.0
      %1013 = vmatpush2.msra.mxu0 %v924
      %1014 = vmatprep.subr.mxu0 0.0
      %1015 = vmatpush2.msra.mxu0 %v923
      %1016 = vmatprep.subr.mxu0 0.0
      %1017 = vmatpush2.msra.mxu0 %v922
      %1018 = vmatprep.mubr.f32.mxu0 %v900
      %1019 = vmatmul.mubr.f32.gmra.mxu0 %v899
      %v1020 = vpop.f32.mrf.mxu0
      %v1021 = vadd.f32 0.0, %v1020
      %v1022 = vpop.f32.mrf.mxu0
      %1023 = vmatprep.mubr.f32.mxu0 %v903
      %1024 = vmatmul.mubr.f32.gmra.mxu0 %v902
      %v1025 = vpop.f32.mrf.mxu0
      %v1026 = vadd.f32 0.0, %v1025
      %v1027 = vpop.f32.mrf.mxu0
      %1028 = vdwg.mxu0
      %1029 = vmatprep.subr.mxu0 0.0
      %1030 = vmatpush1.msra.mxu0 %v953
      %1031 = vmatprep.subr.mxu0 0.0
      %1032 = vmatpush1.msra.mxu0 %v952
      %1033 = vmatprep.subr.mxu0 0.0
      %1034 = vmatpush1.msra.mxu0 %v951
      %1035 = vmatprep.subr.mxu0 0.0
      %1036 = vmatpush1.msra.mxu0 %v950
      %1037 = vmatprep.subr.mxu0 0.0
      %1038 = vmatpush1.msra.mxu0 %v949
      %1039 = vmatprep.subr.mxu0 0.0
      %1040 = vmatpush1.msra.mxu0 %v948
      %1041 = vmatprep.subr.mxu0 0.0
      %1042 = vmatpush1.msra.mxu0 %v947
      %1043 = vmatprep.subr.mxu0 0.0
      %1044 = vmatpush1.msra.mxu0 %v946
      %1045 = vmatprep.subr.mxu0 0.0
      %1046 = vmatpush1.msra.mxu0 %v945
      %1047 = vmatprep.subr.mxu0 0.0
      %1048 = vmatpush1.msra.mxu0 %v944
      %1049 = vmatprep.subr.mxu0 0.0
      %1050 = vmatpush1.msra.mxu0 %v943
      %1051 = vmatprep.subr.mxu0 0.0
      %1052 = vmatpush1.msra.mxu0 %v942
      %1053 = vmatprep.subr.mxu0 0.0
      %1054 = vmatpush1.msra.mxu0 %v941
      %1055 = vmatprep.subr.mxu0 0.0
      %1056 = vmatpush1.msra.mxu0 %v940
      %1057 = vmatprep.subr.mxu0 0.0
      %1058 = vmatpush1.msra.mxu0 %v939
      %1059 = vmatprep.subr.mxu0 0.0
      %1060 = vmatpush1.msra.mxu0 %v938
      %1061 = vmatprep.subr.mxu0 0.0
      %1062 = vmatpush2.msra.mxu0 0.0
      %1063 = vmatprep.subr.mxu0 0.0
      %1064 = vmatpush2.msra.mxu0 0.0
      %1065 = vmatprep.subr.mxu0 0.0
      %1066 = vmatpush2.msra.mxu0 0.0
      %1067 = vmatprep.subr.mxu0 0.0
      %1068 = vmatpush2.msra.mxu0 0.0
      %1069 = vmatprep.subr.mxu0 0.0
      %1070 = vmatpush2.msra.mxu0 0.0
      %1071 = vmatprep.subr.mxu0 0.0
      %1072 = vmatpush2.msra.mxu0 0.0
      %1073 = vmatprep.subr.mxu0 0.0
      %1074 = vmatpush2.msra.mxu0 0.0
      %1075 = vmatprep.subr.mxu0 0.0
      %1076 = vmatpush2.msra.mxu0 0.0
      %1077 = vmatprep.subr.mxu0 0.0
      %1078 = vmatpush2.msra.mxu0 0.0
      %1079 = vmatprep.subr.mxu0 0.0
      %1080 = vmatpush2.msra.mxu0 0.0
      %1081 = vmatprep.subr.mxu0 0.0
      %1082 = vmatpush2.msra.mxu0 0.0
      %1083 = vmatprep.subr.mxu0 0.0
      %1084 = vmatpush2.msra.mxu0 0.0
      %1085 = vmatprep.subr.mxu0 0.0
      %1086 = vmatpush2.msra.mxu0 0.0
      %1087 = vmatprep.subr.mxu0 0.0
      %1088 = vmatpush2.msra.mxu0 0.0
      %1089 = vmatprep.subr.mxu0 0.0
      %1090 = vmatpush2.msra.mxu0 0.0
      %1091 = vmatprep.subr.mxu0 0.0
      %1092 = vmatpush2.msra.mxu0 0.0
      %1093 = vmatprep.mubr.f32.mxu0 0.0
      %1094 = vmatmul.mubr.f32.gmra.mxu0 %v901
      %v1095 = vpop.f32.mrf.mxu0
      %v1096 = vadd.f32 %v1021, %v1095
      %v1097 = vpop.f32.mrf.mxu0
      %1098 = vmatprep.mubr.f32.mxu0 0.0
      %1099 = vmatmul.mubr.f32.gmra.mxu0 %v904
      %v1100 = vpop.f32.mrf.mxu0
      %v1101 = vadd.f32 %v1026, %v1100
      %v1102 = vpop.f32.mrf.mxu0
      %1103 = vdwg.mxu0
      %v1104 = vadd.f32 %v891, %v1096
      %v1105 = vadd.f32 %v892, %v1101
      %s1106 = sadd.s32 %s259, 32
      %s1107 = sshra.s32 %s1106, 3
      %s1108 = sand.u32 %s1106, 7
      %s1109 = smul.u32 %s1107, 3
      %s1110 = smul.addr %s1109, 8
      %s1111 = scalar_lea.vmem %s236, %s1110
      %v1112 = vld [vmem:[%s1111] sm:$0xff]
      %v1113 = vld [vmem:[%s1111 + $0x8] sm:$0xff]
      %v1114 = vld [vmem:[%s1111 + $0x10] sm:$0xff]
      %v1115 = vld [vmem:[%s1111 + $0x18] sm:$0xff]
      %v1116 = vld [vmem:[%s1111 + $0x20] sm:$0xff]
      %v1117 = vld [vmem:[%s1111 + $0x28] sm:$0xff]
      %s1118 = scalar_lea.vmem %s241, 1536
      %v1119 = vld [vmem:[%s1118] sm:$0xff]
      %v1120 = vld [vmem:[%s1118 + $0x8] sm:$0xff]
      %v1121 = vld [vmem:[%s1118 + $0x10] sm:$0xff]
      %v1122 = vld [vmem:[%s1118 + $0x18] sm:$0xff]
      %v1123 = vld [vmem:[%s1118 + $0x20] sm:$0xff]
      %v1124 = vld [vmem:[%s1118 + $0x28] sm:$0xff]
      %v1125 = vld [vmem:[%s1118 + $0x30] sm:$0xff]
      %v1126 = vld [vmem:[%s1118 + $0x38] sm:$0xff]
      %v1127 = vld [vmem:[%s1118 + $0x40] sm:$0xff]
      %v1128 = vld [vmem:[%s1118 + $0x48] sm:$0xff]
      %v1129 = vld [vmem:[%s1118 + $0x50] sm:$0xff]
      %v1130 = vld [vmem:[%s1118 + $0x58] sm:$0xff]
      %v1131 = vld [vmem:[%s1118 + $0x60] sm:$0xff]
      %v1132 = vld [vmem:[%s1118 + $0x68] sm:$0xff]
      %v1133 = vld [vmem:[%s1118 + $0x70] sm:$0xff]
      %v1134 = vld [vmem:[%s1118 + $0x78] sm:$0xff]
      %v1135 = vld [vmem:[%s1118 + $0x80] sm:$0xff]
      %v1136 = vld [vmem:[%s1118 + $0x88] sm:$0xff]
      %v1137 = vld [vmem:[%s1118 + $0x90] sm:$0xff]
      %v1138 = vld [vmem:[%s1118 + $0x98] sm:$0xff]
      %v1139 = vld [vmem:[%s1118 + $0xa0] sm:$0xff]
      %v1140 = vld [vmem:[%s1118 + $0xa8] sm:$0xff]
      %v1141 = vld [vmem:[%s1118 + $0xb0] sm:$0xff]
      %v1142 = vld [vmem:[%s1118 + $0xb8] sm:$0xff]
      %v1143 = vld [vmem:[%s1118 + $0xc0] sm:$0xff]
      %v1144 = vld [vmem:[%s1118 + $0xc8] sm:$0xff]
      %v1145 = vld [vmem:[%s1118 + $0xd0] sm:$0xff]
      %v1146 = vld [vmem:[%s1118 + $0xd8] sm:$0xff]
      %v1147 = vld [vmem:[%s1118 + $0xe0] sm:$0xff]
      %v1148 = vld [vmem:[%s1118 + $0xe8] sm:$0xff]
      %v1149 = vld [vmem:[%s1118 + $0xf0] sm:$0xff]
      %v1150 = vld [vmem:[%s1118 + $0xf8] sm:$0xff]
      %v1151 = vld [vmem:[%s1118 + $0x100] sm:$0xff]
      %v1152 = vld [vmem:[%s1118 + $0x108] sm:$0xff]
      %v1153 = vld [vmem:[%s1118 + $0x110] sm:$0xff]
      %v1154 = vld [vmem:[%s1118 + $0x118] sm:$0xff]
      %v1155 = vld [vmem:[%s1118 + $0x120] sm:$0xff]
      %v1156 = vld [vmem:[%s1118 + $0x128] sm:$0xff]
      %v1157 = vld [vmem:[%s1118 + $0x130] sm:$0xff]
      %v1158 = vld [vmem:[%s1118 + $0x138] sm:$0xff]
      %v1159 = vld [vmem:[%s1118 + $0x140] sm:$0xff]
      %v1160 = vld [vmem:[%s1118 + $0x148] sm:$0xff]
      %v1161 = vld [vmem:[%s1118 + $0x150] sm:$0xff]
      %v1162 = vld [vmem:[%s1118 + $0x158] sm:$0xff]
      %v1163 = vld [vmem:[%s1118 + $0x160] sm:$0xff]
      %v1164 = vld [vmem:[%s1118 + $0x168] sm:$0xff]
      %v1165 = vld [vmem:[%s1118 + $0x170] sm:$0xff]
      %v1166 = vld [vmem:[%s1118 + $0x178] sm:$0xff]
      %1167 = vmatprep.subr.mxu0 0.0
      %1168 = vmatpush1.msra.mxu0 %v1134
      %1169 = vmatprep.subr.mxu0 0.0
      %1170 = vmatpush1.msra.mxu0 %v1133
      %1171 = vmatprep.subr.mxu0 0.0
      %1172 = vmatpush1.msra.mxu0 %v1132
      %1173 = vmatprep.subr.mxu0 0.0
      %1174 = vmatpush1.msra.mxu0 %v1131
      %1175 = vmatprep.subr.mxu0 0.0
      %1176 = vmatpush1.msra.mxu0 %v1130
      %1177 = vmatprep.subr.mxu0 0.0
      %1178 = vmatpush1.msra.mxu0 %v1129
      %1179 = vmatprep.subr.mxu0 0.0
      %1180 = vmatpush1.msra.mxu0 %v1128
      %1181 = vmatprep.subr.mxu0 0.0
      %1182 = vmatpush1.msra.mxu0 %v1127
      %1183 = vmatprep.subr.mxu0 0.0
      %1184 = vmatpush1.msra.mxu0 %v1126
      %1185 = vmatprep.subr.mxu0 0.0
      %1186 = vmatpush1.msra.mxu0 %v1125
      %1187 = vmatprep.subr.mxu0 0.0
      %1188 = vmatpush1.msra.mxu0 %v1124
      %1189 = vmatprep.subr.mxu0 0.0
      %1190 = vmatpush1.msra.mxu0 %v1123
      %1191 = vmatprep.subr.mxu0 0.0
      %1192 = vmatpush1.msra.mxu0 %v1122
      %1193 = vmatprep.subr.mxu0 0.0
      %1194 = vmatpush1.msra.mxu0 %v1121
      %1195 = vmatprep.subr.mxu0 0.0
      %1196 = vmatpush1.msra.mxu0 %v1120
      %1197 = vmatprep.subr.mxu0 0.0
      %1198 = vmatpush1.msra.mxu0 %v1119
      %1199 = vmatprep.subr.mxu0 0.0
      %1200 = vmatpush2.msra.mxu0 %v1150
      %1201 = vmatprep.subr.mxu0 0.0
      %1202 = vmatpush2.msra.mxu0 %v1149
      %1203 = vmatprep.subr.mxu0 0.0
      %1204 = vmatpush2.msra.mxu0 %v1148
      %1205 = vmatprep.subr.mxu0 0.0
      %1206 = vmatpush2.msra.mxu0 %v1147
      %1207 = vmatprep.subr.mxu0 0.0
      %1208 = vmatpush2.msra.mxu0 %v1146
      %1209 = vmatprep.subr.mxu0 0.0
      %1210 = vmatpush2.msra.mxu0 %v1145
      %1211 = vmatprep.subr.mxu0 0.0
      %1212 = vmatpush2.msra.mxu0 %v1144
      %1213 = vmatprep.subr.mxu0 0.0
      %1214 = vmatpush2.msra.mxu0 %v1143
      %1215 = vmatprep.subr.mxu0 0.0
      %1216 = vmatpush2.msra.mxu0 %v1142
      %1217 = vmatprep.subr.mxu0 0.0
      %1218 = vmatpush2.msra.mxu0 %v1141
      %1219 = vmatprep.subr.mxu0 0.0
      %1220 = vmatpush2.msra.mxu0 %v1140
      %1221 = vmatprep.subr.mxu0 0.0
      %1222 = vmatpush2.msra.mxu0 %v1139
      %1223 = vmatprep.subr.mxu0 0.0
      %1224 = vmatpush2.msra.mxu0 %v1138
      %1225 = vmatprep.subr.mxu0 0.0
      %1226 = vmatpush2.msra.mxu0 %v1137
      %1227 = vmatprep.subr.mxu0 0.0
      %1228 = vmatpush2.msra.mxu0 %v1136
      %1229 = vmatprep.subr.mxu0 0.0
      %1230 = vmatpush2.msra.mxu0 %v1135
      %1231 = vmatprep.mubr.f32.mxu0 %v1113
      %1232 = vmatmul.mubr.f32.gmra.mxu0 %v1112
      %v1233 = vpop.f32.mrf.mxu0
      %v1234 = vadd.f32 0.0, %v1233
      %v1235 = vpop.f32.mrf.mxu0
      %1236 = vmatprep.mubr.f32.mxu0 %v1116
      %1237 = vmatmul.mubr.f32.gmra.mxu0 %v1115
      %v1238 = vpop.f32.mrf.mxu0
      %v1239 = vadd.f32 0.0, %v1238
      %v1240 = vpop.f32.mrf.mxu0
      %1241 = vdwg.mxu0
      %1242 = vmatprep.subr.mxu0 0.0
      %1243 = vmatpush1.msra.mxu0 %v1166
      %1244 = vmatprep.subr.mxu0 0.0
      %1245 = vmatpush1.msra.mxu0 %v1165
      %1246 = vmatprep.subr.mxu0 0.0
      %1247 = vmatpush1.msra.mxu0 %v1164
      %1248 = vmatprep.subr.mxu0 0.0
      %1249 = vmatpush1.msra.mxu0 %v1163
      %1250 = vmatprep.subr.mxu0 0.0
      %1251 = vmatpush1.msra.mxu0 %v1162
      %1252 = vmatprep.subr.mxu0 0.0
      %1253 = vmatpush1.msra.mxu0 %v1161
      %1254 = vmatprep.subr.mxu0 0.0
      %1255 = vmatpush1.msra.mxu0 %v1160
      %1256 = vmatprep.subr.mxu0 0.0
      %1257 = vmatpush1.msra.mxu0 %v1159
      %1258 = vmatprep.subr.mxu0 0.0
      %1259 = vmatpush1.msra.mxu0 %v1158
      %1260 = vmatprep.subr.mxu0 0.0
      %1261 = vmatpush1.msra.mxu0 %v1157
      %1262 = vmatprep.subr.mxu0 0.0
      %1263 = vmatpush1.msra.mxu0 %v1156
      %1264 = vmatprep.subr.mxu0 0.0
      %1265 = vmatpush1.msra.mxu0 %v1155
      %1266 = vmatprep.subr.mxu0 0.0
      %1267 = vmatpush1.msra.mxu0 %v1154
      %1268 = vmatprep.subr.mxu0 0.0
      %1269 = vmatpush1.msra.mxu0 %v1153
      %1270 = vmatprep.subr.mxu0 0.0
      %1271 = vmatpush1.msra.mxu0 %v1152
      %1272 = vmatprep.subr.mxu0 0.0
      %1273 = vmatpush1.msra.mxu0 %v1151
      %1274 = vmatprep.subr.mxu0 0.0
      %1275 = vmatpush2.msra.mxu0 0.0
      %1276 = vmatprep.subr.mxu0 0.0
      %1277 = vmatpush2.msra.mxu0 0.0
      %1278 = vmatprep.subr.mxu0 0.0
      %1279 = vmatpush2.msra.mxu0 0.0
      %1280 = vmatprep.subr.mxu0 0.0
      %1281 = vmatpush2.msra.mxu0 0.0
      %1282 = vmatprep.subr.mxu0 0.0
      %1283 = vmatpush2.msra.mxu0 0.0
      %1284 = vmatprep.subr.mxu0 0.0
      %1285 = vmatpush2.msra.mxu0 0.0
      %1286 = vmatprep.subr.mxu0 0.0
      %1287 = vmatpush2.msra.mxu0 0.0
      %1288 = vmatprep.subr.mxu0 0.0
      %1289 = vmatpush2.msra.mxu0 0.0
      %1290 = vmatprep.subr.mxu0 0.0
      %1291 = vmatpush2.msra.mxu0 0.0
      %1292 = vmatprep.subr.mxu0 0.0
      %1293 = vmatpush2.msra.mxu0 0.0
      %1294 = vmatprep.subr.mxu0 0.0
      %1295 = vmatpush2.msra.mxu0 0.0
      %1296 = vmatprep.subr.mxu0 0.0
      %1297 = vmatpush2.msra.mxu0 0.0
      %1298 = vmatprep.subr.mxu0 0.0
      %1299 = vmatpush2.msra.mxu0 0.0
      %1300 = vmatprep.subr.mxu0 0.0
      %1301 = vmatpush2.msra.mxu0 0.0
      %1302 = vmatprep.subr.mxu0 0.0
      %1303 = vmatpush2.msra.mxu0 0.0
      %1304 = vmatprep.subr.mxu0 0.0
      %1305 = vmatpush2.msra.mxu0 0.0
      %1306 = vmatprep.mubr.f32.mxu0 0.0
      %1307 = vmatmul.mubr.f32.gmra.mxu0 %v1114
      %v1308 = vpop.f32.mrf.mxu0
      %v1309 = vadd.f32 %v1234, %v1308
      %v1310 = vpop.f32.mrf.mxu0
      %1311 = vmatprep.mubr.f32.mxu0 0.0
      %1312 = vmatmul.mubr.f32.gmra.mxu0 %v1117
      %v1313 = vpop.f32.mrf.mxu0
      %v1314 = vadd.f32 %v1239, %v1313
      %v1315 = vpop.f32.mrf.mxu0
      %1316 = vdwg.mxu0
      %v1317 = vadd.f32 %v1104, %v1309
      %v1318 = vadd.f32 %v1105, %v1314
      %s1319 = sadd.s32 %s259, 40
      %s1320 = sshra.s32 %s1319, 3
      %s1321 = sand.u32 %s1319, 7
      %s1322 = smul.u32 %s1320, 3
      %s1323 = smul.addr %s1322, 8
      %s1324 = scalar_lea.vmem %s236, %s1323
      %v1325 = vld [vmem:[%s1324] sm:$0xff]
      %v1326 = vld [vmem:[%s1324 + $0x8] sm:$0xff]
      %v1327 = vld [vmem:[%s1324 + $0x10] sm:$0xff]
      %v1328 = vld [vmem:[%s1324 + $0x18] sm:$0xff]
      %v1329 = vld [vmem:[%s1324 + $0x20] sm:$0xff]
      %v1330 = vld [vmem:[%s1324 + $0x28] sm:$0xff]
      %s1331 = scalar_lea.vmem %s241, 1920
      %v1332 = vld [vmem:[%s1331] sm:$0xff]
      %v1333 = vld [vmem:[%s1331 + $0x8] sm:$0xff]
      %v1334 = vld [vmem:[%s1331 + $0x10] sm:$0xff]
      %v1335 = vld [vmem:[%s1331 + $0x18] sm:$0xff]
      %v1336 = vld [vmem:[%s1331 + $0x20] sm:$0xff]
      %v1337 = vld [vmem:[%s1331 + $0x28] sm:$0xff]
      %v1338 = vld [vmem:[%s1331 + $0x30] sm:$0xff]
      %v1339 = vld [vmem:[%s1331 + $0x38] sm:$0xff]
      %v1340 = vld [vmem:[%s1331 + $0x40] sm:$0xff]
      %v1341 = vld [vmem:[%s1331 + $0x48] sm:$0xff]
      %v1342 = vld [vmem:[%s1331 + $0x50] sm:$0xff]
      %v1343 = vld [vmem:[%s1331 + $0x58] sm:$0xff]
      %v1344 = vld [vmem:[%s1331 + $0x60] sm:$0xff]
      %v1345 = vld [vmem:[%s1331 + $0x68] sm:$0xff]
      %v1346 = vld [vmem:[%s1331 + $0x70] sm:$0xff]
      %v1347 = vld [vmem:[%s1331 + $0x78] sm:$0xff]
      %v1348 = vld [vmem:[%s1331 + $0x80] sm:$0xff]
      %v1349 = vld [vmem:[%s1331 + $0x88] sm:$0xff]
      %v1350 = vld [vmem:[%s1331 + $0x90] sm:$0xff]
      %v1351 = vld [vmem:[%s1331 + $0x98] sm:$0xff]
      %v1352 = vld [vmem:[%s1331 + $0xa0] sm:$0xff]
      %v1353 = vld [vmem:[%s1331 + $0xa8] sm:$0xff]
      %v1354 = vld [vmem:[%s1331 + $0xb0] sm:$0xff]
      %v1355 = vld [vmem:[%s1331 + $0xb8] sm:$0xff]
      %v1356 = vld [vmem:[%s1331 + $0xc0] sm:$0xff]
      %v1357 = vld [vmem:[%s1331 + $0xc8] sm:$0xff]
      %v1358 = vld [vmem:[%s1331 + $0xd0] sm:$0xff]
      %v1359 = vld [vmem:[%s1331 + $0xd8] sm:$0xff]
      %v1360 = vld [vmem:[%s1331 + $0xe0] sm:$0xff]
      %v1361 = vld [vmem:[%s1331 + $0xe8] sm:$0xff]
      %v1362 = vld [vmem:[%s1331 + $0xf0] sm:$0xff]
      %v1363 = vld [vmem:[%s1331 + $0xf8] sm:$0xff]
      %v1364 = vld [vmem:[%s1331 + $0x100] sm:$0xff]
      %v1365 = vld [vmem:[%s1331 + $0x108] sm:$0xff]
      %v1366 = vld [vmem:[%s1331 + $0x110] sm:$0xff]
      %v1367 = vld [vmem:[%s1331 + $0x118] sm:$0xff]
      %v1368 = vld [vmem:[%s1331 + $0x120] sm:$0xff]
      %v1369 = vld [vmem:[%s1331 + $0x128] sm:$0xff]
      %v1370 = vld [vmem:[%s1331 + $0x130] sm:$0xff]
      %v1371 = vld [vmem:[%s1331 + $0x138] sm:$0xff]
      %v1372 = vld [vmem:[%s1331 + $0x140] sm:$0xff]
      %v1373 = vld [vmem:[%s1331 + $0x148] sm:$0xff]
      %v1374 = vld [vmem:[%s1331 + $0x150] sm:$0xff]
      %v1375 = vld [vmem:[%s1331 + $0x158] sm:$0xff]
      %v1376 = vld [vmem:[%s1331 + $0x160] sm:$0xff]
      %v1377 = vld [vmem:[%s1331 + $0x168] sm:$0xff]
      %v1378 = vld [vmem:[%s1331 + $0x170] sm:$0xff]
      %v1379 = vld [vmem:[%s1331 + $0x178] sm:$0xff]
      %1380 = vmatprep.subr.mxu0 0.0
      %1381 = vmatpush1.msra.mxu0 %v1347
      %1382 = vmatprep.subr.mxu0 0.0
      %1383 = vmatpush1.msra.mxu0 %v1346
      %1384 = vmatprep.subr.mxu0 0.0
      %1385 = vmatpush1.msra.mxu0 %v1345
      %1386 = vmatprep.subr.mxu0 0.0
      %1387 = vmatpush1.msra.mxu0 %v1344
      %1388 = vmatprep.subr.mxu0 0.0
      %1389 = vmatpush1.msra.mxu0 %v1343
      %1390 = vmatprep.subr.mxu0 0.0
      %1391 = vmatpush1.msra.mxu0 %v1342
      %1392 = vmatprep.subr.mxu0 0.0
      %1393 = vmatpush1.msra.mxu0 %v1341
      %1394 = vmatprep.subr.mxu0 0.0
      %1395 = vmatpush1.msra.mxu0 %v1340
      %1396 = vmatprep.subr.mxu0 0.0
      %1397 = vmatpush1.msra.mxu0 %v1339
      %1398 = vmatprep.subr.mxu0 0.0
      %1399 = vmatpush1.msra.mxu0 %v1338
      %1400 = vmatprep.subr.mxu0 0.0
      %1401 = vmatpush1.msra.mxu0 %v1337
      %1402 = vmatprep.subr.mxu0 0.0
      %1403 = vmatpush1.msra.mxu0 %v1336
      %1404 = vmatprep.subr.mxu0 0.0
      %1405 = vmatpush1.msra.mxu0 %v1335
      %1406 = vmatprep.subr.mxu0 0.0
      %1407 = vmatpush1.msra.mxu0 %v1334
      %1408 = vmatprep.subr.mxu0 0.0
      %1409 = vmatpush1.msra.mxu0 %v1333
      %1410 = vmatprep.subr.mxu0 0.0
      %1411 = vmatpush1.msra.mxu0 %v1332
      %1412 = vmatprep.subr.mxu0 0.0
      %1413 = vmatpush2.msra.mxu0 %v1363
      %1414 = vmatprep.subr.mxu0 0.0
      %1415 = vmatpush2.msra.mxu0 %v1362
      %1416 = vmatprep.subr.mxu0 0.0
      %1417 = vmatpush2.msra.mxu0 %v1361
      %1418 = vmatprep.subr.mxu0 0.0
      %1419 = vmatpush2.msra.mxu0 %v1360
      %1420 = vmatprep.subr.mxu0 0.0
      %1421 = vmatpush2.msra.mxu0 %v1359
      %1422 = vmatprep.subr.mxu0 0.0
      %1423 = vmatpush2.msra.mxu0 %v1358
      %1424 = vmatprep.subr.mxu0 0.0
      %1425 = vmatpush2.msra.mxu0 %v1357
      %1426 = vmatprep.subr.mxu0 0.0
      %1427 = vmatpush2.msra.mxu0 %v1356
      %1428 = vmatprep.subr.mxu0 0.0
      %1429 = vmatpush2.msra.mxu0 %v1355
      %1430 = vmatprep.subr.mxu0 0.0
      %1431 = vmatpush2.msra.mxu0 %v1354
      %1432 = vmatprep.subr.mxu0 0.0
      %1433 = vmatpush2.msra.mxu0 %v1353
      %1434 = vmatprep.subr.mxu0 0.0
      %1435 = vmatpush2.msra.mxu0 %v1352
      %1436 = vmatprep.subr.mxu0 0.0
      %1437 = vmatpush2.msra.mxu0 %v1351
      %1438 = vmatprep.subr.mxu0 0.0
      %1439 = vmatpush2.msra.mxu0 %v1350
      %1440 = vmatprep.subr.mxu0 0.0
      %1441 = vmatpush2.msra.mxu0 %v1349
      %1442 = vmatprep.subr.mxu0 0.0
      %1443 = vmatpush2.msra.mxu0 %v1348
      %1444 = vmatprep.mubr.f32.mxu0 %v1326
      %1445 = vmatmul.mubr.f32.gmra.mxu0 %v1325
      %v1446 = vpop.f32.mrf.mxu0
      %v1447 = vadd.f32 0.0, %v1446
      %v1448 = vpop.f32.mrf.mxu0
      %1449 = vmatprep.mubr.f32.mxu0 %v1329
      %1450 = vmatmul.mubr.f32.gmra.mxu0 %v1328
      %v1451 = vpop.f32.mrf.mxu0
      %v1452 = vadd.f32 0.0, %v1451
      %v1453 = vpop.f32.mrf.mxu0
      %1454 = vdwg.mxu0
      %1455 = vmatprep.subr.mxu0 0.0
      %1456 = vmatpush1.msra.mxu0 %v1379
      %1457 = vmatprep.subr.mxu0 0.0
      %1458 = vmatpush1.msra.mxu0 %v1378
      %1459 = vmatprep.subr.mxu0 0.0
      %1460 = vmatpush1.msra.mxu0 %v1377
      %1461 = vmatprep.subr.mxu0 0.0
      %1462 = vmatpush1.msra.mxu0 %v1376
      %1463 = vmatprep.subr.mxu0 0.0
      %1464 = vmatpush1.msra.mxu0 %v1375
      %1465 = vmatprep.subr.mxu0 0.0
      %1466 = vmatpush1.msra.mxu0 %v1374
      %1467 = vmatprep.subr.mxu0 0.0
      %1468 = vmatpush1.msra.mxu0 %v1373
      %1469 = vmatprep.subr.mxu0 0.0
      %1470 = vmatpush1.msra.mxu0 %v1372
      %1471 = vmatprep.subr.mxu0 0.0
      %1472 = vmatpush1.msra.mxu0 %v1371
      %1473 = vmatprep.subr.mxu0 0.0
      %1474 = vmatpush1.msra.mxu0 %v1370
      %1475 = vmatprep.subr.mxu0 0.0
      %1476 = vmatpush1.msra.mxu0 %v1369
      %1477 = vmatprep.subr.mxu0 0.0
      %1478 = vmatpush1.msra.mxu0 %v1368
      %1479 = vmatprep.subr.mxu0 0.0
      %1480 = vmatpush1.msra.mxu0 %v1367
      %1481 = vmatprep.subr.mxu0 0.0
      %1482 = vmatpush1.msra.mxu0 %v1366
      %1483 = vmatprep.subr.mxu0 0.0
      %1484 = vmatpush1.msra.mxu0 %v1365
      %1485 = vmatprep.subr.mxu0 0.0
      %1486 = vmatpush1.msra.mxu0 %v1364
      %1487 = vmatprep.subr.mxu0 0.0
      %1488 = vmatpush2.msra.mxu0 0.0
      %1489 = vmatprep.subr.mxu0 0.0
      %1490 = vmatpush2.msra.mxu0 0.0
      %1491 = vmatprep.subr.mxu0 0.0
      %1492 = vmatpush2.msra.mxu0 0.0
      %1493 = vmatprep.subr.mxu0 0.0
      %1494 = vmatpush2.msra.mxu0 0.0
      %1495 = vmatprep.subr.mxu0 0.0
      %1496 = vmatpush2.msra.mxu0 0.0
      %1497 = vmatprep.subr.mxu0 0.0
      %1498 = vmatpush2.msra.mxu0 0.0
      %1499 = vmatprep.subr.mxu0 0.0
      %1500 = vmatpush2.msra.mxu0 0.0
      %1501 = vmatprep.subr.mxu0 0.0
      %1502 = vmatpush2.msra.mxu0 0.0
      %1503 = vmatprep.subr.mxu0 0.0
      %1504 = vmatpush2.msra.mxu0 0.0
      %1505 = vmatprep.subr.mxu0 0.0
      %1506 = vmatpush2.msra.mxu0 0.0
      %1507 = vmatprep.subr.mxu0 0.0
      %1508 = vmatpush2.msra.mxu0 0.0
      %1509 = vmatprep.subr.mxu0 0.0
      %1510 = vmatpush2.msra.mxu0 0.0
      %1511 = vmatprep.subr.mxu0 0.0
      %1512 = vmatpush2.msra.mxu0 0.0
      %1513 = vmatprep.subr.mxu0 0.0
      %1514 = vmatpush2.msra.mxu0 0.0
      %1515 = vmatprep.subr.mxu0 0.0
      %1516 = vmatpush2.msra.mxu0 0.0
      %1517 = vmatprep.subr.mxu0 0.0
      %1518 = vmatpush2.msra.mxu0 0.0
      %1519 = vmatprep.mubr.f32.mxu0 0.0
      %1520 = vmatmul.mubr.f32.gmra.mxu0 %v1327
      %v1521 = vpop.f32.mrf.mxu0
      %v1522 = vadd.f32 %v1447, %v1521
      %v1523 = vpop.f32.mrf.mxu0
      %1524 = vmatprep.mubr.f32.mxu0 0.0
      %1525 = vmatmul.mubr.f32.gmra.mxu0 %v1330
      %v1526 = vpop.f32.mrf.mxu0
      %v1527 = vadd.f32 %v1452, %v1526
      %v1528 = vpop.f32.mrf.mxu0
      %1529 = vdwg.mxu0
      %v1530 = vadd.f32 %v1317, %v1522
      %v1531 = vadd.f32 %v1318, %v1527
      %s1532 = sadd.s32 %s259, 48
      %s1533 = sshra.s32 %s1532, 3
      %s1534 = sand.u32 %s1532, 7
      %s1535 = smul.u32 %s1533, 3
      %s1536 = smul.addr %s1535, 8
      %s1537 = scalar_lea.vmem %s236, %s1536
      %v1538 = vld [vmem:[%s1537] sm:$0xff]
      %v1539 = vld [vmem:[%s1537 + $0x8] sm:$0xff]
      %v1540 = vld [vmem:[%s1537 + $0x10] sm:$0xff]
      %v1541 = vld [vmem:[%s1537 + $0x18] sm:$0xff]
      %v1542 = vld [vmem:[%s1537 + $0x20] sm:$0xff]
      %v1543 = vld [vmem:[%s1537 + $0x28] sm:$0xff]
      %s1544 = scalar_lea.vmem %s241, 2304
      %v1545 = vld [vmem:[%s1544] sm:$0xff]
      %v1546 = vld [vmem:[%s1544 + $0x8] sm:$0xff]
      %v1547 = vld [vmem:[%s1544 + $0x10] sm:$0xff]
      %v1548 = vld [vmem:[%s1544 + $0x18] sm:$0xff]
      %v1549 = vld [vmem:[%s1544 + $0x20] sm:$0xff]
      %v1550 = vld [vmem:[%s1544 + $0x28] sm:$0xff]
      %v1551 = vld [vmem:[%s1544 + $0x30] sm:$0xff]
      %v1552 = vld [vmem:[%s1544 + $0x38] sm:$0xff]
      %v1553 = vld [vmem:[%s1544 + $0x40] sm:$0xff]
      %v1554 = vld [vmem:[%s1544 + $0x48] sm:$0xff]
      %v1555 = vld [vmem:[%s1544 + $0x50] sm:$0xff]
      %v1556 = vld [vmem:[%s1544 + $0x58] sm:$0xff]
      %v1557 = vld [vmem:[%s1544 + $0x60] sm:$0xff]
      %v1558 = vld [vmem:[%s1544 + $0x68] sm:$0xff]
      %v1559 = vld [vmem:[%s1544 + $0x70] sm:$0xff]
      %v1560 = vld [vmem:[%s1544 + $0x78] sm:$0xff]
      %v1561 = vld [vmem:[%s1544 + $0x80] sm:$0xff]
      %v1562 = vld [vmem:[%s1544 + $0x88] sm:$0xff]
      %v1563 = vld [vmem:[%s1544 + $0x90] sm:$0xff]
      %v1564 = vld [vmem:[%s1544 + $0x98] sm:$0xff]
      %v1565 = vld [vmem:[%s1544 + $0xa0] sm:$0xff]
      %v1566 = vld [vmem:[%s1544 + $0xa8] sm:$0xff]
      %v1567 = vld [vmem:[%s1544 + $0xb0] sm:$0xff]
      %v1568 = vld [vmem:[%s1544 + $0xb8] sm:$0xff]
      %v1569 = vld [vmem:[%s1544 + $0xc0] sm:$0xff]
      %v1570 = vld [vmem:[%s1544 + $0xc8] sm:$0xff]
      %v1571 = vld [vmem:[%s1544 + $0xd0] sm:$0xff]
      %v1572 = vld [vmem:[%s1544 + $0xd8] sm:$0xff]
      %v1573 = vld [vmem:[%s1544 + $0xe0] sm:$0xff]
      %v1574 = vld [vmem:[%s1544 + $0xe8] sm:$0xff]
      %v1575 = vld [vmem:[%s1544 + $0xf0] sm:$0xff]
      %v1576 = vld [vmem:[%s1544 + $0xf8] sm:$0xff]
      %v1577 = vld [vmem:[%s1544 + $0x100] sm:$0xff]
      %v1578 = vld [vmem:[%s1544 + $0x108] sm:$0xff]
      %v1579 = vld [vmem:[%s1544 + $0x110] sm:$0xff]
      %v1580 = vld [vmem:[%s1544 + $0x118] sm:$0xff]
      %v1581 = vld [vmem:[%s1544 + $0x120] sm:$0xff]
      %v1582 = vld [vmem:[%s1544 + $0x128] sm:$0xff]
      %v1583 = vld [vmem:[%s1544 + $0x130] sm:$0xff]
      %v1584 = vld [vmem:[%s1544 + $0x138] sm:$0xff]
      %v1585 = vld [vmem:[%s1544 + $0x140] sm:$0xff]
      %v1586 = vld [vmem:[%s1544 + $0x148] sm:$0xff]
      %v1587 = vld [vmem:[%s1544 + $0x150] sm:$0xff]
      %v1588 = vld [vmem:[%s1544 + $0x158] sm:$0xff]
      %v1589 = vld [vmem:[%s1544 + $0x160] sm:$0xff]
      %v1590 = vld [vmem:[%s1544 + $0x168] sm:$0xff]
      %v1591 = vld [vmem:[%s1544 + $0x170] sm:$0xff]
      %v1592 = vld [vmem:[%s1544 + $0x178] sm:$0xff]
      %1593 = vmatprep.subr.mxu0 0.0
      %1594 = vmatpush1.msra.mxu0 %v1560
      %1595 = vmatprep.subr.mxu0 0.0
      %1596 = vmatpush1.msra.mxu0 %v1559
      %1597 = vmatprep.subr.mxu0 0.0
      %1598 = vmatpush1.msra.mxu0 %v1558
      %1599 = vmatprep.subr.mxu0 0.0
      %1600 = vmatpush1.msra.mxu0 %v1557
      %1601 = vmatprep.subr.mxu0 0.0
      %1602 = vmatpush1.msra.mxu0 %v1556
      %1603 = vmatprep.subr.mxu0 0.0
      %1604 = vmatpush1.msra.mxu0 %v1555
      %1605 = vmatprep.subr.mxu0 0.0
      %1606 = vmatpush1.msra.mxu0 %v1554
      %1607 = vmatprep.subr.mxu0 0.0
      %1608 = vmatpush1.msra.mxu0 %v1553
      %1609 = vmatprep.subr.mxu0 0.0
      %1610 = vmatpush1.msra.mxu0 %v1552
      %1611 = vmatprep.subr.mxu0 0.0
      %1612 = vmatpush1.msra.mxu0 %v1551
      %1613 = vmatprep.subr.mxu0 0.0
      %1614 = vmatpush1.msra.mxu0 %v1550
      %1615 = vmatprep.subr.mxu0 0.0
      %1616 = vmatpush1.msra.mxu0 %v1549
      %1617 = vmatprep.subr.mxu0 0.0
      %1618 = vmatpush1.msra.mxu0 %v1548
      %1619 = vmatprep.subr.mxu0 0.0
      %1620 = vmatpush1.msra.mxu0 %v1547
      %1621 = vmatprep.subr.mxu0 0.0
      %1622 = vmatpush1.msra.mxu0 %v1546
      %1623 = vmatprep.subr.mxu0 0.0
      %1624 = vmatpush1.msra.mxu0 %v1545
      %1625 = vmatprep.subr.mxu0 0.0
      %1626 = vmatpush2.msra.mxu0 %v1576
      %1627 = vmatprep.subr.mxu0 0.0
      %1628 = vmatpush2.msra.mxu0 %v1575
      %1629 = vmatprep.subr.mxu0 0.0
      %1630 = vmatpush2.msra.mxu0 %v1574
      %1631 = vmatprep.subr.mxu0 0.0
      %1632 = vmatpush2.msra.mxu0 %v1573
      %1633 = vmatprep.subr.mxu0 0.0
      %1634 = vmatpush2.msra.mxu0 %v1572
      %1635 = vmatprep.subr.mxu0 0.0
      %1636 = vmatpush2.msra.mxu0 %v1571
      %1637 = vmatprep.subr.mxu0 0.0
      %1638 = vmatpush2.msra.mxu0 %v1570
      %1639 = vmatprep.subr.mxu0 0.0
      %1640 = vmatpush2.msra.mxu0 %v1569
      %1641 = vmatprep.subr.mxu0 0.0
      %1642 = vmatpush2.msra.mxu0 %v1568
      %1643 = vmatprep.subr.mxu0 0.0
      %1644 = vmatpush2.msra.mxu0 %v1567
      %1645 = vmatprep.subr.mxu0 0.0
      %1646 = vmatpush2.msra.mxu0 %v1566
      %1647 = vmatprep.subr.mxu0 0.0
      %1648 = vmatpush2.msra.mxu0 %v1565
      %1649 = vmatprep.subr.mxu0 0.0
      %1650 = vmatpush2.msra.mxu0 %v1564
      %1651 = vmatprep.subr.mxu0 0.0
      %1652 = vmatpush2.msra.mxu0 %v1563
      %1653 = vmatprep.subr.mxu0 0.0
      %1654 = vmatpush2.msra.mxu0 %v1562
      %1655 = vmatprep.subr.mxu0 0.0
      %1656 = vmatpush2.msra.mxu0 %v1561
      %1657 = vmatprep.mubr.f32.mxu0 %v1539
      %1658 = vmatmul.mubr.f32.gmra.mxu0 %v1538
      %v1659 = vpop.f32.mrf.mxu0
      %v1660 = vadd.f32 0.0, %v1659
      %v1661 = vpop.f32.mrf.mxu0
      %1662 = vmatprep.mubr.f32.mxu0 %v1542
      %1663 = vmatmul.mubr.f32.gmra.mxu0 %v1541
      %v1664 = vpop.f32.mrf.mxu0
      %v1665 = vadd.f32 0.0, %v1664
      %v1666 = vpop.f32.mrf.mxu0
      %1667 = vdwg.mxu0
      %1668 = vmatprep.subr.mxu0 0.0
      %1669 = vmatpush1.msra.mxu0 %v1592
      %1670 = vmatprep.subr.mxu0 0.0
      %1671 = vmatpush1.msra.mxu0 %v1591
      %1672 = vmatprep.subr.mxu0 0.0
      %1673 = vmatpush1.msra.mxu0 %v1590
      %1674 = vmatprep.subr.mxu0 0.0
      %1675 = vmatpush1.msra.mxu0 %v1589
      %1676 = vmatprep.subr.mxu0 0.0
      %1677 = vmatpush1.msra.mxu0 %v1588
      %1678 = vmatprep.subr.mxu0 0.0
      %1679 = vmatpush1.msra.mxu0 %v1587
      %1680 = vmatprep.subr.mxu0 0.0
      %1681 = vmatpush1.msra.mxu0 %v1586
      %1682 = vmatprep.subr.mxu0 0.0
      %1683 = vmatpush1.msra.mxu0 %v1585
      %1684 = vmatprep.subr.mxu0 0.0
      %1685 = vmatpush1.msra.mxu0 %v1584
      %1686 = vmatprep.subr.mxu0 0.0
      %1687 = vmatpush1.msra.mxu0 %v1583
      %1688 = vmatprep.subr.mxu0 0.0
      %1689 = vmatpush1.msra.mxu0 %v1582
      %1690 = vmatprep.subr.mxu0 0.0
      %1691 = vmatpush1.msra.mxu0 %v1581
      %1692 = vmatprep.subr.mxu0 0.0
      %1693 = vmatpush1.msra.mxu0 %v1580
      %1694 = vmatprep.subr.mxu0 0.0
      %1695 = vmatpush1.msra.mxu0 %v1579
      %1696 = vmatprep.subr.mxu0 0.0
      %1697 = vmatpush1.msra.mxu0 %v1578
      %1698 = vmatprep.subr.mxu0 0.0
      %1699 = vmatpush1.msra.mxu0 %v1577
      %1700 = vmatprep.subr.mxu0 0.0
      %1701 = vmatpush2.msra.mxu0 0.0
      %1702 = vmatprep.subr.mxu0 0.0
      %1703 = vmatpush2.msra.mxu0 0.0
      %1704 = vmatprep.subr.mxu0 0.0
      %1705 = vmatpush2.msra.mxu0 0.0
      %1706 = vmatprep.subr.mxu0 0.0
      %1707 = vmatpush2.msra.mxu0 0.0
      %1708 = vmatprep.subr.mxu0 0.0
      %1709 = vmatpush2.msra.mxu0 0.0
      %1710 = vmatprep.subr.mxu0 0.0
      %1711 = vmatpush2.msra.mxu0 0.0
      %1712 = vmatprep.subr.mxu0 0.0
      %1713 = vmatpush2.msra.mxu0 0.0
      %1714 = vmatprep.subr.mxu0 0.0
      %1715 = vmatpush2.msra.mxu0 0.0
      %1716 = vmatprep.subr.mxu0 0.0
      %1717 = vmatpush2.msra.mxu0 0.0
      %1718 = vmatprep.subr.mxu0 0.0
      %1719 = vmatpush2.msra.mxu0 0.0
      %1720 = vmatprep.subr.mxu0 0.0
      %1721 = vmatpush2.msra.mxu0 0.0
      %1722 = vmatprep.subr.mxu0 0.0
      %1723 = vmatpush2.msra.mxu0 0.0
      %1724 = vmatprep.subr.mxu0 0.0
      %1725 = vmatpush2.msra.mxu0 0.0
      %1726 = vmatprep.subr.mxu0 0.0
      %1727 = vmatpush2.msra.mxu0 0.0
      %1728 = vmatprep.subr.mxu0 0.0
      %1729 = vmatpush2.msra.mxu0 0.0
      %1730 = vmatprep.subr.mxu0 0.0
      %1731 = vmatpush2.msra.mxu0 0.0
      %1732 = vmatprep.mubr.f32.mxu0 0.0
      %1733 = vmatmul.mubr.f32.gmra.mxu0 %v1540
      %v1734 = vpop.f32.mrf.mxu0
      %v1735 = vadd.f32 %v1660, %v1734
      %v1736 = vpop.f32.mrf.mxu0
      %1737 = vmatprep.mubr.f32.mxu0 0.0
      %1738 = vmatmul.mubr.f32.gmra.mxu0 %v1543
      %v1739 = vpop.f32.mrf.mxu0
      %v1740 = vadd.f32 %v1665, %v1739
      %v1741 = vpop.f32.mrf.mxu0
      %1742 = vdwg.mxu0
      %v1743 = vadd.f32 %v1530, %v1735
      %v1744 = vadd.f32 %v1531, %v1740
      %s1745 = sadd.s32 %s259, 56
      %s1746 = sshra.s32 %s1745, 3
      %s1747 = sand.u32 %s1745, 7
      %s1748 = smul.u32 %s1746, 3
      %s1749 = smul.addr %s1748, 8
      %s1750 = scalar_lea.vmem %s236, %s1749
      %v1751 = vld [vmem:[%s1750] sm:$0xff]
      %v1752 = vld [vmem:[%s1750 + $0x8] sm:$0xff]
      %v1753 = vld [vmem:[%s1750 + $0x10] sm:$0xff]
      %v1754 = vld [vmem:[%s1750 + $0x18] sm:$0xff]
      %v1755 = vld [vmem:[%s1750 + $0x20] sm:$0xff]
      %v1756 = vld [vmem:[%s1750 + $0x28] sm:$0xff]
      %s1757 = scalar_lea.vmem %s241, 2688
      %v1758 = vld [vmem:[%s1757] sm:$0xff]
      %v1759 = vld [vmem:[%s1757 + $0x8] sm:$0xff]
      %v1760 = vld [vmem:[%s1757 + $0x10] sm:$0xff]
      %v1761 = vld [vmem:[%s1757 + $0x18] sm:$0xff]
      %v1762 = vld [vmem:[%s1757 + $0x20] sm:$0xff]
      %v1763 = vld [vmem:[%s1757 + $0x28] sm:$0xff]
      %v1764 = vld [vmem:[%s1757 + $0x30] sm:$0xff]
      %v1765 = vld [vmem:[%s1757 + $0x38] sm:$0xff]
      %v1766 = vld [vmem:[%s1757 + $0x40] sm:$0xff]
      %v1767 = vld [vmem:[%s1757 + $0x48] sm:$0xff]
      %v1768 = vld [vmem:[%s1757 + $0x50] sm:$0xff]
      %v1769 = vld [vmem:[%s1757 + $0x58] sm:$0xff]
      %v1770 = vld [vmem:[%s1757 + $0x60] sm:$0xff]
      %v1771 = vld [vmem:[%s1757 + $0x68] sm:$0xff]
      %v1772 = vld [vmem:[%s1757 + $0x70] sm:$0xff]
      %v1773 = vld [vmem:[%s1757 + $0x78] sm:$0xff]
      %v1774 = vld [vmem:[%s1757 + $0x80] sm:$0xff]
      %v1775 = vld [vmem:[%s1757 + $0x88] sm:$0xff]
      %v1776 = vld [vmem:[%s1757 + $0x90] sm:$0xff]
      %v1777 = vld [vmem:[%s1757 + $0x98] sm:$0xff]
      %v1778 = vld [vmem:[%s1757 + $0xa0] sm:$0xff]
      %v1779 = vld [vmem:[%s1757 + $0xa8] sm:$0xff]
      %v1780 = vld [vmem:[%s1757 + $0xb0] sm:$0xff]
      %v1781 = vld [vmem:[%s1757 + $0xb8] sm:$0xff]
      %v1782 = vld [vmem:[%s1757 + $0xc0] sm:$0xff]
      %v1783 = vld [vmem:[%s1757 + $0xc8] sm:$0xff]
      %v1784 = vld [vmem:[%s1757 + $0xd0] sm:$0xff]
      %v1785 = vld [vmem:[%s1757 + $0xd8] sm:$0xff]
      %v1786 = vld [vmem:[%s1757 + $0xe0] sm:$0xff]
      %v1787 = vld [vmem:[%s1757 + $0xe8] sm:$0xff]
      %v1788 = vld [vmem:[%s1757 + $0xf0] sm:$0xff]
      %v1789 = vld [vmem:[%s1757 + $0xf8] sm:$0xff]
      %v1790 = vld [vmem:[%s1757 + $0x100] sm:$0xff]
      %v1791 = vld [vmem:[%s1757 + $0x108] sm:$0xff]
      %v1792 = vld [vmem:[%s1757 + $0x110] sm:$0xff]
      %v1793 = vld [vmem:[%s1757 + $0x118] sm:$0xff]
      %v1794 = vld [vmem:[%s1757 + $0x120] sm:$0xff]
      %v1795 = vld [vmem:[%s1757 + $0x128] sm:$0xff]
      %v1796 = vld [vmem:[%s1757 + $0x130] sm:$0xff]
      %v1797 = vld [vmem:[%s1757 + $0x138] sm:$0xff]
      %v1798 = vld [vmem:[%s1757 + $0x140] sm:$0xff]
      %v1799 = vld [vmem:[%s1757 + $0x148] sm:$0xff]
      %v1800 = vld [vmem:[%s1757 + $0x150] sm:$0xff]
      %v1801 = vld [vmem:[%s1757 + $0x158] sm:$0xff]
      %v1802 = vld [vmem:[%s1757 + $0x160] sm:$0xff]
      %v1803 = vld [vmem:[%s1757 + $0x168] sm:$0xff]
      %v1804 = vld [vmem:[%s1757 + $0x170] sm:$0xff]
      %v1805 = vld [vmem:[%s1757 + $0x178] sm:$0xff]
      %1806 = vmatprep.subr.mxu0 0.0
      %1807 = vmatpush1.msra.mxu0 %v1773
      %1808 = vmatprep.subr.mxu0 0.0
      %1809 = vmatpush1.msra.mxu0 %v1772
      %1810 = vmatprep.subr.mxu0 0.0
      %1811 = vmatpush1.msra.mxu0 %v1771
      %1812 = vmatprep.subr.mxu0 0.0
      %1813 = vmatpush1.msra.mxu0 %v1770
      %1814 = vmatprep.subr.mxu0 0.0
      %1815 = vmatpush1.msra.mxu0 %v1769
      %1816 = vmatprep.subr.mxu0 0.0
      %1817 = vmatpush1.msra.mxu0 %v1768
      %1818 = vmatprep.subr.mxu0 0.0
      %1819 = vmatpush1.msra.mxu0 %v1767
      %1820 = vmatprep.subr.mxu0 0.0
      %1821 = vmatpush1.msra.mxu0 %v1766
      %1822 = vmatprep.subr.mxu0 0.0
      %1823 = vmatpush1.msra.mxu0 %v1765
      %1824 = vmatprep.subr.mxu0 0.0
      %1825 = vmatpush1.msra.mxu0 %v1764
      %1826 = vmatprep.subr.mxu0 0.0
      %1827 = vmatpush1.msra.mxu0 %v1763
      %1828 = vmatprep.subr.mxu0 0.0
      %1829 = vmatpush1.msra.mxu0 %v1762
      %1830 = vmatprep.subr.mxu0 0.0
      %1831 = vmatpush1.msra.mxu0 %v1761
      %1832 = vmatprep.subr.mxu0 0.0
      %1833 = vmatpush1.msra.mxu0 %v1760
      %1834 = vmatprep.subr.mxu0 0.0
      %1835 = vmatpush1.msra.mxu0 %v1759
      %1836 = vmatprep.subr.mxu0 0.0
      %1837 = vmatpush1.msra.mxu0 %v1758
      %1838 = vmatprep.subr.mxu0 0.0
      %1839 = vmatpush2.msra.mxu0 %v1789
      %1840 = vmatprep.subr.mxu0 0.0
      %1841 = vmatpush2.msra.mxu0 %v1788
      %1842 = vmatprep.subr.mxu0 0.0
      %1843 = vmatpush2.msra.mxu0 %v1787
      %1844 = vmatprep.subr.mxu0 0.0
      %1845 = vmatpush2.msra.mxu0 %v1786
      %1846 = vmatprep.subr.mxu0 0.0
      %1847 = vmatpush2.msra.mxu0 %v1785
      %1848 = vmatprep.subr.mxu0 0.0
      %1849 = vmatpush2.msra.mxu0 %v1784
      %1850 = vmatprep.subr.mxu0 0.0
      %1851 = vmatpush2.msra.mxu0 %v1783
      %1852 = vmatprep.subr.mxu0 0.0
      %1853 = vmatpush2.msra.mxu0 %v1782
      %1854 = vmatprep.subr.mxu0 0.0
      %1855 = vmatpush2.msra.mxu0 %v1781
      %1856 = vmatprep.subr.mxu0 0.0
      %1857 = vmatpush2.msra.mxu0 %v1780
      %1858 = vmatprep.subr.mxu0 0.0
      %1859 = vmatpush2.msra.mxu0 %v1779
      %1860 = vmatprep.subr.mxu0 0.0
      %1861 = vmatpush2.msra.mxu0 %v1778
      %1862 = vmatprep.subr.mxu0 0.0
      %1863 = vmatpush2.msra.mxu0 %v1777
      %1864 = vmatprep.subr.mxu0 0.0
      %1865 = vmatpush2.msra.mxu0 %v1776
      %1866 = vmatprep.subr.mxu0 0.0
      %1867 = vmatpush2.msra.mxu0 %v1775
      %1868 = vmatprep.subr.mxu0 0.0
      %1869 = vmatpush2.msra.mxu0 %v1774
      %1870 = vmatprep.mubr.f32.mxu0 %v1752
      %1871 = vmatmul.mubr.f32.gmra.mxu0 %v1751
      %v1872 = vpop.f32.mrf.mxu0
      %v1873 = vadd.f32 0.0, %v1872
      %v1874 = vpop.f32.mrf.mxu0
      %1875 = vmatprep.mubr.f32.mxu0 %v1755
      %1876 = vmatmul.mubr.f32.gmra.mxu0 %v1754
      %v1877 = vpop.f32.mrf.mxu0
      %v1878 = vadd.f32 0.0, %v1877
      %v1879 = vpop.f32.mrf.mxu0
      %1880 = vdwg.mxu0
      %1881 = vmatprep.subr.mxu0 0.0
      %1882 = vmatpush1.msra.mxu0 %v1805
      %1883 = vmatprep.subr.mxu0 0.0
      %1884 = vmatpush1.msra.mxu0 %v1804
      %1885 = vmatprep.subr.mxu0 0.0
      %1886 = vmatpush1.msra.mxu0 %v1803
      %1887 = vmatprep.subr.mxu0 0.0
      %1888 = vmatpush1.msra.mxu0 %v1802
      %1889 = vmatprep.subr.mxu0 0.0
      %1890 = vmatpush1.msra.mxu0 %v1801
      %1891 = vmatprep.subr.mxu0 0.0
      %1892 = vmatpush1.msra.mxu0 %v1800
      %1893 = vmatprep.subr.mxu0 0.0
      %1894 = vmatpush1.msra.mxu0 %v1799
      %1895 = vmatprep.subr.mxu0 0.0
      %1896 = vmatpush1.msra.mxu0 %v1798
      %1897 = vmatprep.subr.mxu0 0.0
      %1898 = vmatpush1.msra.mxu0 %v1797
      %1899 = vmatprep.subr.mxu0 0.0
      %1900 = vmatpush1.msra.mxu0 %v1796
      %1901 = vmatprep.subr.mxu0 0.0
      %1902 = vmatpush1.msra.mxu0 %v1795
      %1903 = vmatprep.subr.mxu0 0.0
      %1904 = vmatpush1.msra.mxu0 %v1794
      %1905 = vmatprep.subr.mxu0 0.0
      %1906 = vmatpush1.msra.mxu0 %v1793
      %1907 = vmatprep.subr.mxu0 0.0
      %1908 = vmatpush1.msra.mxu0 %v1792
      %1909 = vmatprep.subr.mxu0 0.0
      %1910 = vmatpush1.msra.mxu0 %v1791
      %1911 = vmatprep.subr.mxu0 0.0
      %1912 = vmatpush1.msra.mxu0 %v1790
      %1913 = vmatprep.subr.mxu0 0.0
      %1914 = vmatpush2.msra.mxu0 0.0
      %1915 = vmatprep.subr.mxu0 0.0
      %1916 = vmatpush2.msra.mxu0 0.0
      %1917 = vmatprep.subr.mxu0 0.0
      %1918 = vmatpush2.msra.mxu0 0.0
      %1919 = vmatprep.subr.mxu0 0.0
      %1920 = vmatpush2.msra.mxu0 0.0
      %1921 = vmatprep.subr.mxu0 0.0
      %1922 = vmatpush2.msra.mxu0 0.0
      %1923 = vmatprep.subr.mxu0 0.0
      %1924 = vmatpush2.msra.mxu0 0.0
      %1925 = vmatprep.subr.mxu0 0.0
      %1926 = vmatpush2.msra.mxu0 0.0
      %1927 = vmatprep.subr.mxu0 0.0
      %1928 = vmatpush2.msra.mxu0 0.0
      %1929 = vmatprep.subr.mxu0 0.0
      %1930 = vmatpush2.msra.mxu0 0.0
      %1931 = vmatprep.subr.mxu0 0.0
      %1932 = vmatpush2.msra.mxu0 0.0
      %1933 = vmatprep.subr.mxu0 0.0
      %1934 = vmatpush2.msra.mxu0 0.0
      %1935 = vmatprep.subr.mxu0 0.0
      %1936 = vmatpush2.msra.mxu0 0.0
      %1937 = vmatprep.subr.mxu0 0.0
      %1938 = vmatpush2.msra.mxu0 0.0
      %1939 = vmatprep.subr.mxu0 0.0
      %1940 = vmatpush2.msra.mxu0 0.0
      %1941 = vmatprep.subr.mxu0 0.0
      %1942 = vmatpush2.msra.mxu0 0.0
      %1943 = vmatprep.subr.mxu0 0.0
      %1944 = vmatpush2.msra.mxu0 0.0
      %1945 = vmatprep.mubr.f32.mxu0 0.0
      %1946 = vmatmul.mubr.f32.gmra.mxu0 %v1753
      %v1947 = vpop.f32.mrf.mxu0
      %v1948 = vadd.f32 %v1873, %v1947
      %v1949 = vpop.f32.mrf.mxu0
      %1950 = vmatprep.mubr.f32.mxu0 0.0
      %1951 = vmatmul.mubr.f32.gmra.mxu0 %v1756
      %v1952 = vpop.f32.mrf.mxu0
      %v1953 = vadd.f32 %v1878, %v1952
      %v1954 = vpop.f32.mrf.mxu0
      %1955 = vdwg.mxu0
      %v1956 = vadd.f32 %v1743, %v1948
      %v1957 = vadd.f32 %v1744, %v1953
      %s1958 = sadd.s32 %s259, 64
      %s1959 = sshra.s32 %s1958, 3
      %s1960 = sand.u32 %s1958, 7
      %s1961 = smul.u32 %s1959, 3
      %s1962 = smul.addr %s1961, 8
      %s1963 = scalar_lea.vmem %s236, %s1962
      %v1964 = vld [vmem:[%s1963] sm:$0xff]
      %v1965 = vld [vmem:[%s1963 + $0x8] sm:$0xff]
      %v1966 = vld [vmem:[%s1963 + $0x10] sm:$0xff]
      %v1967 = vld [vmem:[%s1963 + $0x18] sm:$0xff]
      %v1968 = vld [vmem:[%s1963 + $0x20] sm:$0xff]
      %v1969 = vld [vmem:[%s1963 + $0x28] sm:$0xff]
      %s1970 = scalar_lea.vmem %s241, 3072
      %v1971 = vld [vmem:[%s1970] sm:$0xff]
      %v1972 = vld [vmem:[%s1970 + $0x8] sm:$0xff]
      %v1973 = vld [vmem:[%s1970 + $0x10] sm:$0xff]
      %v1974 = vld [vmem:[%s1970 + $0x18] sm:$0xff]
      %v1975 = vld [vmem:[%s1970 + $0x20] sm:$0xff]
      %v1976 = vld [vmem:[%s1970 + $0x28] sm:$0xff]
      %v1977 = vld [vmem:[%s1970 + $0x30] sm:$0xff]
      %v1978 = vld [vmem:[%s1970 + $0x38] sm:$0xff]
      %v1979 = vld [vmem:[%s1970 + $0x40] sm:$0xff]
      %v1980 = vld [vmem:[%s1970 + $0x48] sm:$0xff]
      %v1981 = vld [vmem:[%s1970 + $0x50] sm:$0xff]
      %v1982 = vld [vmem:[%s1970 + $0x58] sm:$0xff]
      %v1983 = vld [vmem:[%s1970 + $0x60] sm:$0xff]
      %v1984 = vld [vmem:[%s1970 + $0x68] sm:$0xff]
      %v1985 = vld [vmem:[%s1970 + $0x70] sm:$0xff]
      %v1986 = vld [vmem:[%s1970 + $0x78] sm:$0xff]
      %v1987 = vld [vmem:[%s1970 + $0x80] sm:$0xff]
      %v1988 = vld [vmem:[%s1970 + $0x88] sm:$0xff]
      %v1989 = vld [vmem:[%s1970 + $0x90] sm:$0xff]
      %v1990 = vld [vmem:[%s1970 + $0x98] sm:$0xff]
      %v1991 = vld [vmem:[%s1970 + $0xa0] sm:$0xff]
      %v1992 = vld [vmem:[%s1970 + $0xa8] sm:$0xff]
      %v1993 = vld [vmem:[%s1970 + $0xb0] sm:$0xff]
      %v1994 = vld [vmem:[%s1970 + $0xb8] sm:$0xff]
      %v1995 = vld [vmem:[%s1970 + $0xc0] sm:$0xff]
      %v1996 = vld [vmem:[%s1970 + $0xc8] sm:$0xff]
      %v1997 = vld [vmem:[%s1970 + $0xd0] sm:$0xff]
      %v1998 = vld [vmem:[%s1970 + $0xd8] sm:$0xff]
      %v1999 = vld [vmem:[%s1970 + $0xe0] sm:$0xff]
      %v2000 = vld [vmem:[%s1970 + $0xe8] sm:$0xff]
      %v2001 = vld [vmem:[%s1970 + $0xf0] sm:$0xff]
      %v2002 = vld [vmem:[%s1970 + $0xf8] sm:$0xff]
      %v2003 = vld [vmem:[%s1970 + $0x100] sm:$0xff]
      %v2004 = vld [vmem:[%s1970 + $0x108] sm:$0xff]
      %v2005 = vld [vmem:[%s1970 + $0x110] sm:$0xff]
      %v2006 = vld [vmem:[%s1970 + $0x118] sm:$0xff]
      %v2007 = vld [vmem:[%s1970 + $0x120] sm:$0xff]
      %v2008 = vld [vmem:[%s1970 + $0x128] sm:$0xff]
      %v2009 = vld [vmem:[%s1970 + $0x130] sm:$0xff]
      %v2010 = vld [vmem:[%s1970 + $0x138] sm:$0xff]
      %v2011 = vld [vmem:[%s1970 + $0x140] sm:$0xff]
      %v2012 = vld [vmem:[%s1970 + $0x148] sm:$0xff]
      %v2013 = vld [vmem:[%s1970 + $0x150] sm:$0xff]
      %v2014 = vld [vmem:[%s1970 + $0x158] sm:$0xff]
      %v2015 = vld [vmem:[%s1970 + $0x160] sm:$0xff]
      %v2016 = vld [vmem:[%s1970 + $0x168] sm:$0xff]
      %v2017 = vld [vmem:[%s1970 + $0x170] sm:$0xff]
      %v2018 = vld [vmem:[%s1970 + $0x178] sm:$0xff]
      %2019 = vmatprep.subr.mxu0 0.0
      %2020 = vmatpush1.msra.mxu0 %v1986
      %2021 = vmatprep.subr.mxu0 0.0
      %2022 = vmatpush1.msra.mxu0 %v1985
      %2023 = vmatprep.subr.mxu0 0.0
      %2024 = vmatpush1.msra.mxu0 %v1984
      %2025 = vmatprep.subr.mxu0 0.0
      %2026 = vmatpush1.msra.mxu0 %v1983
      %2027 = vmatprep.subr.mxu0 0.0
      %2028 = vmatpush1.msra.mxu0 %v1982
      %2029 = vmatprep.subr.mxu0 0.0
      %2030 = vmatpush1.msra.mxu0 %v1981
      %2031 = vmatprep.subr.mxu0 0.0
      %2032 = vmatpush1.msra.mxu0 %v1980
      %2033 = vmatprep.subr.mxu0 0.0
      %2034 = vmatpush1.msra.mxu0 %v1979
      %2035 = vmatprep.subr.mxu0 0.0
      %2036 = vmatpush1.msra.mxu0 %v1978
      %2037 = vmatprep.subr.mxu0 0.0
      %2038 = vmatpush1.msra.mxu0 %v1977
      %2039 = vmatprep.subr.mxu0 0.0
      %2040 = vmatpush1.msra.mxu0 %v1976
      %2041 = vmatprep.subr.mxu0 0.0
      %2042 = vmatpush1.msra.mxu0 %v1975
      %2043 = vmatprep.subr.mxu0 0.0
      %2044 = vmatpush1.msra.mxu0 %v1974
      %2045 = vmatprep.subr.mxu0 0.0
      %2046 = vmatpush1.msra.mxu0 %v1973
      %2047 = vmatprep.subr.mxu0 0.0
      %2048 = vmatpush1.msra.mxu0 %v1972
      %2049 = vmatprep.subr.mxu0 0.0
      %2050 = vmatpush1.msra.mxu0 %v1971
      %2051 = vmatprep.subr.mxu0 0.0
      %2052 = vmatpush2.msra.mxu0 %v2002
      %2053 = vmatprep.subr.mxu0 0.0
      %2054 = vmatpush2.msra.mxu0 %v2001
      %2055 = vmatprep.subr.mxu0 0.0
      %2056 = vmatpush2.msra.mxu0 %v2000
      %2057 = vmatprep.subr.mxu0 0.0
      %2058 = vmatpush2.msra.mxu0 %v1999
      %2059 = vmatprep.subr.mxu0 0.0
      %2060 = vmatpush2.msra.mxu0 %v1998
      %2061 = vmatprep.subr.mxu0 0.0
      %2062 = vmatpush2.msra.mxu0 %v1997
      %2063 = vmatprep.subr.mxu0 0.0
      %2064 = vmatpush2.msra.mxu0 %v1996
      %2065 = vmatprep.subr.mxu0 0.0
      %2066 = vmatpush2.msra.mxu0 %v1995
      %2067 = vmatprep.subr.mxu0 0.0
      %2068 = vmatpush2.msra.mxu0 %v1994
      %2069 = vmatprep.subr.mxu0 0.0
      %2070 = vmatpush2.msra.mxu0 %v1993
      %2071 = vmatprep.subr.mxu0 0.0
      %2072 = vmatpush2.msra.mxu0 %v1992
      %2073 = vmatprep.subr.mxu0 0.0
      %2074 = vmatpush2.msra.mxu0 %v1991
      %2075 = vmatprep.subr.mxu0 0.0
      %2076 = vmatpush2.msra.mxu0 %v1990
      %2077 = vmatprep.subr.mxu0 0.0
      %2078 = vmatpush2.msra.mxu0 %v1989
      %2079 = vmatprep.subr.mxu0 0.0
      %2080 = vmatpush2.msra.mxu0 %v1988
      %2081 = vmatprep.subr.mxu0 0.0
      %2082 = vmatpush2.msra.mxu0 %v1987
      %2083 = vmatprep.mubr.f32.mxu0 %v1965
      %2084 = vmatmul.mubr.f32.gmra.mxu0 %v1964
      %v2085 = vpop.f32.mrf.mxu0
      %v2086 = vadd.f32 0.0, %v2085
      %v2087 = vpop.f32.mrf.mxu0
      %2088 = vmatprep.mubr.f32.mxu0 %v1968
      %2089 = vmatmul.mubr.f32.gmra.mxu0 %v1967
      %v2090 = vpop.f32.mrf.mxu0
      %v2091 = vadd.f32 0.0, %v2090
      %v2092 = vpop.f32.mrf.mxu0
      %2093 = vdwg.mxu0
      %2094 = vmatprep.subr.mxu0 0.0
      %2095 = vmatpush1.msra.mxu0 %v2018
      %2096 = vmatprep.subr.mxu0 0.0
      %2097 = vmatpush1.msra.mxu0 %v2017
      %2098 = vmatprep.subr.mxu0 0.0
      %2099 = vmatpush1.msra.mxu0 %v2016
      %2100 = vmatprep.subr.mxu0 0.0
      %2101 = vmatpush1.msra.mxu0 %v2015
      %2102 = vmatprep.subr.mxu0 0.0
      %2103 = vmatpush1.msra.mxu0 %v2014
      %2104 = vmatprep.subr.mxu0 0.0
      %2105 = vmatpush1.msra.mxu0 %v2013
      %2106 = vmatprep.subr.mxu0 0.0
      %2107 = vmatpush1.msra.mxu0 %v2012
      %2108 = vmatprep.subr.mxu0 0.0
      %2109 = vmatpush1.msra.mxu0 %v2011
      %2110 = vmatprep.subr.mxu0 0.0
      %2111 = vmatpush1.msra.mxu0 %v2010
      %2112 = vmatprep.subr.mxu0 0.0
      %2113 = vmatpush1.msra.mxu0 %v2009
      %2114 = vmatprep.subr.mxu0 0.0
      %2115 = vmatpush1.msra.mxu0 %v2008
      %2116 = vmatprep.subr.mxu0 0.0
      %2117 = vmatpush1.msra.mxu0 %v2007
      %2118 = vmatprep.subr.mxu0 0.0
      %2119 = vmatpush1.msra.mxu0 %v2006
      %2120 = vmatprep.subr.mxu0 0.0
      %2121 = vmatpush1.msra.mxu0 %v2005
      %2122 = vmatprep.subr.mxu0 0.0
      %2123 = vmatpush1.msra.mxu0 %v2004
      %2124 = vmatprep.subr.mxu0 0.0
      %2125 = vmatpush1.msra.mxu0 %v2003
      %2126 = vmatprep.subr.mxu0 0.0
      %2127 = vmatpush2.msra.mxu0 0.0
      %2128 = vmatprep.subr.mxu0 0.0
      %2129 = vmatpush2.msra.mxu0 0.0
      %2130 = vmatprep.subr.mxu0 0.0
      %2131 = vmatpush2.msra.mxu0 0.0
      %2132 = vmatprep.subr.mxu0 0.0
      %2133 = vmatpush2.msra.mxu0 0.0
      %2134 = vmatprep.subr.mxu0 0.0
      %2135 = vmatpush2.msra.mxu0 0.0
      %2136 = vmatprep.subr.mxu0 0.0
      %2137 = vmatpush2.msra.mxu0 0.0
      %2138 = vmatprep.subr.mxu0 0.0
      %2139 = vmatpush2.msra.mxu0 0.0
      %2140 = vmatprep.subr.mxu0 0.0
      %2141 = vmatpush2.msra.mxu0 0.0
      %2142 = vmatprep.subr.mxu0 0.0
      %2143 = vmatpush2.msra.mxu0 0.0
      %2144 = vmatprep.subr.mxu0 0.0
      %2145 = vmatpush2.msra.mxu0 0.0
      %2146 = vmatprep.subr.mxu0 0.0
      %2147 = vmatpush2.msra.mxu0 0.0
      %2148 = vmatprep.subr.mxu0 0.0
      %2149 = vmatpush2.msra.mxu0 0.0
      %2150 = vmatprep.subr.mxu0 0.0
      %2151 = vmatpush2.msra.mxu0 0.0
      %2152 = vmatprep.subr.mxu0 0.0
      %2153 = vmatpush2.msra.mxu0 0.0
      %2154 = vmatprep.subr.mxu0 0.0
      %2155 = vmatpush2.msra.mxu0 0.0
      %2156 = vmatprep.subr.mxu0 0.0
      %2157 = vmatpush2.msra.mxu0 0.0
      %2158 = vmatprep.mubr.f32.mxu0 0.0
      %2159 = vmatmul.mubr.f32.gmra.mxu0 %v1966
      %v2160 = vpop.f32.mrf.mxu0
      %v2161 = vadd.f32 %v2086, %v2160
      %v2162 = vpop.f32.mrf.mxu0
      %2163 = vmatprep.mubr.f32.mxu0 0.0
      %2164 = vmatmul.mubr.f32.gmra.mxu0 %v1969
      %v2165 = vpop.f32.mrf.mxu0
      %v2166 = vadd.f32 %v2091, %v2165
      %v2167 = vpop.f32.mrf.mxu0
      %2168 = vdwg.mxu0
      %v2169 = vadd.f32 %v1956, %v2161
      %v2170 = vadd.f32 %v1957, %v2166
      %s2171 = sadd.s32 %s259, 72
      %s2172 = sshra.s32 %s2171, 3
      %s2173 = sand.u32 %s2171, 7
      %s2174 = smul.u32 %s2172, 3
      %s2175 = smul.addr %s2174, 8
      %s2176 = scalar_lea.vmem %s236, %s2175
      %v2177 = vld [vmem:[%s2176] sm:$0xff]
      %v2178 = vld [vmem:[%s2176 + $0x8] sm:$0xff]
      %v2179 = vld [vmem:[%s2176 + $0x10] sm:$0xff]
      %v2180 = vld [vmem:[%s2176 + $0x18] sm:$0xff]
      %v2181 = vld [vmem:[%s2176 + $0x20] sm:$0xff]
      %v2182 = vld [vmem:[%s2176 + $0x28] sm:$0xff]
      %s2183 = scalar_lea.vmem %s241, 3456
      %v2184 = vld [vmem:[%s2183] sm:$0xff]
      %v2185 = vld [vmem:[%s2183 + $0x8] sm:$0xff]
      %v2186 = vld [vmem:[%s2183 + $0x10] sm:$0xff]
      %v2187 = vld [vmem:[%s2183 + $0x18] sm:$0xff]
      %v2188 = vld [vmem:[%s2183 + $0x20] sm:$0xff]
      %v2189 = vld [vmem:[%s2183 + $0x28] sm:$0xff]
      %v2190 = vld [vmem:[%s2183 + $0x30] sm:$0xff]
      %v2191 = vld [vmem:[%s2183 + $0x38] sm:$0xff]
      %v2192 = vld [vmem:[%s2183 + $0x40] sm:$0xff]
      %v2193 = vld [vmem:[%s2183 + $0x48] sm:$0xff]
      %v2194 = vld [vmem:[%s2183 + $0x50] sm:$0xff]
      %v2195 = vld [vmem:[%s2183 + $0x58] sm:$0xff]
      %v2196 = vld [vmem:[%s2183 + $0x60] sm:$0xff]
      %v2197 = vld [vmem:[%s2183 + $0x68] sm:$0xff]
      %v2198 = vld [vmem:[%s2183 + $0x70] sm:$0xff]
      %v2199 = vld [vmem:[%s2183 + $0x78] sm:$0xff]
      %v2200 = vld [vmem:[%s2183 + $0x80] sm:$0xff]
      %v2201 = vld [vmem:[%s2183 + $0x88] sm:$0xff]
      %v2202 = vld [vmem:[%s2183 + $0x90] sm:$0xff]
      %v2203 = vld [vmem:[%s2183 + $0x98] sm:$0xff]
      %v2204 = vld [vmem:[%s2183 + $0xa0] sm:$0xff]
      %v2205 = vld [vmem:[%s2183 + $0xa8] sm:$0xff]
      %v2206 = vld [vmem:[%s2183 + $0xb0] sm:$0xff]
      %v2207 = vld [vmem:[%s2183 + $0xb8] sm:$0xff]
      %v2208 = vld [vmem:[%s2183 + $0xc0] sm:$0xff]
      %v2209 = vld [vmem:[%s2183 + $0xc8] sm:$0xff]
      %v2210 = vld [vmem:[%s2183 + $0xd0] sm:$0xff]
      %v2211 = vld [vmem:[%s2183 + $0xd8] sm:$0xff]
      %v2212 = vld [vmem:[%s2183 + $0xe0] sm:$0xff]
      %v2213 = vld [vmem:[%s2183 + $0xe8] sm:$0xff]
      %v2214 = vld [vmem:[%s2183 + $0xf0] sm:$0xff]
      %v2215 = vld [vmem:[%s2183 + $0xf8] sm:$0xff]
      %v2216 = vld [vmem:[%s2183 + $0x100] sm:$0xff]
      %v2217 = vld [vmem:[%s2183 + $0x108] sm:$0xff]
      %v2218 = vld [vmem:[%s2183 + $0x110] sm:$0xff]
      %v2219 = vld [vmem:[%s2183 + $0x118] sm:$0xff]
      %v2220 = vld [vmem:[%s2183 + $0x120] sm:$0xff]
      %v2221 = vld [vmem:[%s2183 + $0x128] sm:$0xff]
      %v2222 = vld [vmem:[%s2183 + $0x130] sm:$0xff]
      %v2223 = vld [vmem:[%s2183 + $0x138] sm:$0xff]
      %v2224 = vld [vmem:[%s2183 + $0x140] sm:$0xff]
      %v2225 = vld [vmem:[%s2183 + $0x148] sm:$0xff]
      %v2226 = vld [vmem:[%s2183 + $0x150] sm:$0xff]
      %v2227 = vld [vmem:[%s2183 + $0x158] sm:$0xff]
      %v2228 = vld [vmem:[%s2183 + $0x160] sm:$0xff]
      %v2229 = vld [vmem:[%s2183 + $0x168] sm:$0xff]
      %v2230 = vld [vmem:[%s2183 + $0x170] sm:$0xff]
      %v2231 = vld [vmem:[%s2183 + $0x178] sm:$0xff]
      %2232 = vmatprep.subr.mxu0 0.0
      %2233 = vmatpush1.msra.mxu0 %v2199
      %2234 = vmatprep.subr.mxu0 0.0
      %2235 = vmatpush1.msra.mxu0 %v2198
      %2236 = vmatprep.subr.mxu0 0.0
      %2237 = vmatpush1.msra.mxu0 %v2197
      %2238 = vmatprep.subr.mxu0 0.0
      %2239 = vmatpush1.msra.mxu0 %v2196
      %2240 = vmatprep.subr.mxu0 0.0
      %2241 = vmatpush1.msra.mxu0 %v2195
      %2242 = vmatprep.subr.mxu0 0.0
      %2243 = vmatpush1.msra.mxu0 %v2194
      %2244 = vmatprep.subr.mxu0 0.0
      %2245 = vmatpush1.msra.mxu0 %v2193
      %2246 = vmatprep.subr.mxu0 0.0
      %2247 = vmatpush1.msra.mxu0 %v2192
      %2248 = vmatprep.subr.mxu0 0.0
      %2249 = vmatpush1.msra.mxu0 %v2191
      %2250 = vmatprep.subr.mxu0 0.0
      %2251 = vmatpush1.msra.mxu0 %v2190
      %2252 = vmatprep.subr.mxu0 0.0
      %2253 = vmatpush1.msra.mxu0 %v2189
      %2254 = vmatprep.subr.mxu0 0.0
      %2255 = vmatpush1.msra.mxu0 %v2188
      %2256 = vmatprep.subr.mxu0 0.0
      %2257 = vmatpush1.msra.mxu0 %v2187
      %2258 = vmatprep.subr.mxu0 0.0
      %2259 = vmatpush1.msra.mxu0 %v2186
      %2260 = vmatprep.subr.mxu0 0.0
      %2261 = vmatpush1.msra.mxu0 %v2185
      %2262 = vmatprep.subr.mxu0 0.0
      %2263 = vmatpush1.msra.mxu0 %v2184
      %2264 = vmatprep.subr.mxu0 0.0
      %2265 = vmatpush2.msra.mxu0 %v2215
      %2266 = vmatprep.subr.mxu0 0.0
      %2267 = vmatpush2.msra.mxu0 %v2214
      %2268 = vmatprep.subr.mxu0 0.0
      %2269 = vmatpush2.msra.mxu0 %v2213
      %2270 = vmatprep.subr.mxu0 0.0
      %2271 = vmatpush2.msra.mxu0 %v2212
      %2272 = vmatprep.subr.mxu0 0.0
      %2273 = vmatpush2.msra.mxu0 %v2211
      %2274 = vmatprep.subr.mxu0 0.0
      %2275 = vmatpush2.msra.mxu0 %v2210
      %2276 = vmatprep.subr.mxu0 0.0
      %2277 = vmatpush2.msra.mxu0 %v2209
      %2278 = vmatprep.subr.mxu0 0.0
      %2279 = vmatpush2.msra.mxu0 %v2208
      %2280 = vmatprep.subr.mxu0 0.0
      %2281 = vmatpush2.msra.mxu0 %v2207
      %2282 = vmatprep.subr.mxu0 0.0
      %2283 = vmatpush2.msra.mxu0 %v2206
      %2284 = vmatprep.subr.mxu0 0.0
      %2285 = vmatpush2.msra.mxu0 %v2205
      %2286 = vmatprep.subr.mxu0 0.0
      %2287 = vmatpush2.msra.mxu0 %v2204
      %2288 = vmatprep.subr.mxu0 0.0
      %2289 = vmatpush2.msra.mxu0 %v2203
      %2290 = vmatprep.subr.mxu0 0.0
      %2291 = vmatpush2.msra.mxu0 %v2202
      %2292 = vmatprep.subr.mxu0 0.0
      %2293 = vmatpush2.msra.mxu0 %v2201
      %2294 = vmatprep.subr.mxu0 0.0
      %2295 = vmatpush2.msra.mxu0 %v2200
      %2296 = vmatprep.mubr.f32.mxu0 %v2178
      %2297 = vmatmul.mubr.f32.gmra.mxu0 %v2177
      %v2298 = vpop.f32.mrf.mxu0
      %v2299 = vadd.f32 0.0, %v2298
      %v2300 = vpop.f32.mrf.mxu0
      %2301 = vmatprep.mubr.f32.mxu0 %v2181
      %2302 = vmatmul.mubr.f32.gmra.mxu0 %v2180
      %v2303 = vpop.f32.mrf.mxu0
      %v2304 = vadd.f32 0.0, %v2303
      %v2305 = vpop.f32.mrf.mxu0
      %2306 = vdwg.mxu0
      %2307 = vmatprep.subr.mxu0 0.0
      %2308 = vmatpush1.msra.mxu0 %v2231
      %2309 = vmatprep.subr.mxu0 0.0
      %2310 = vmatpush1.msra.mxu0 %v2230
      %2311 = vmatprep.subr.mxu0 0.0
      %2312 = vmatpush1.msra.mxu0 %v2229
      %2313 = vmatprep.subr.mxu0 0.0
      %2314 = vmatpush1.msra.mxu0 %v2228
      %2315 = vmatprep.subr.mxu0 0.0
      %2316 = vmatpush1.msra.mxu0 %v2227
      %2317 = vmatprep.subr.mxu0 0.0
      %2318 = vmatpush1.msra.mxu0 %v2226
      %2319 = vmatprep.subr.mxu0 0.0
      %2320 = vmatpush1.msra.mxu0 %v2225
      %2321 = vmatprep.subr.mxu0 0.0
      %2322 = vmatpush1.msra.mxu0 %v2224
      %2323 = vmatprep.subr.mxu0 0.0
      %2324 = vmatpush1.msra.mxu0 %v2223
      %2325 = vmatprep.subr.mxu0 0.0
      %2326 = vmatpush1.msra.mxu0 %v2222
      %2327 = vmatprep.subr.mxu0 0.0
      %2328 = vmatpush1.msra.mxu0 %v2221
      %2329 = vmatprep.subr.mxu0 0.0
      %2330 = vmatpush1.msra.mxu0 %v2220
      %2331 = vmatprep.subr.mxu0 0.0
      %2332 = vmatpush1.msra.mxu0 %v2219
      %2333 = vmatprep.subr.mxu0 0.0
      %2334 = vmatpush1.msra.mxu0 %v2218
      %2335 = vmatprep.subr.mxu0 0.0
      %2336 = vmatpush1.msra.mxu0 %v2217
      %2337 = vmatprep.subr.mxu0 0.0
      %2338 = vmatpush1.msra.mxu0 %v2216
      %2339 = vmatprep.subr.mxu0 0.0
      %2340 = vmatpush2.msra.mxu0 0.0
      %2341 = vmatprep.subr.mxu0 0.0
      %2342 = vmatpush2.msra.mxu0 0.0
      %2343 = vmatprep.subr.mxu0 0.0
      %2344 = vmatpush2.msra.mxu0 0.0
      %2345 = vmatprep.subr.mxu0 0.0
      %2346 = vmatpush2.msra.mxu0 0.0
      %2347 = vmatprep.subr.mxu0 0.0
      %2348 = vmatpush2.msra.mxu0 0.0
      %2349 = vmatprep.subr.mxu0 0.0
      %2350 = vmatpush2.msra.mxu0 0.0
      %2351 = vmatprep.subr.mxu0 0.0
      %2352 = vmatpush2.msra.mxu0 0.0
      %2353 = vmatprep.subr.mxu0 0.0
      %2354 = vmatpush2.msra.mxu0 0.0
      %2355 = vmatprep.subr.mxu0 0.0
      %2356 = vmatpush2.msra.mxu0 0.0
      %2357 = vmatprep.subr.mxu0 0.0
      %2358 = vmatpush2.msra.mxu0 0.0
      %2359 = vmatprep.subr.mxu0 0.0
      %2360 = vmatpush2.msra.mxu0 0.0
      %2361 = vmatprep.subr.mxu0 0.0
      %2362 = vmatpush2.msra.mxu0 0.0
      %2363 = vmatprep.subr.mxu0 0.0
      %2364 = vmatpush2.msra.mxu0 0.0
      %2365 = vmatprep.subr.mxu0 0.0
      %2366 = vmatpush2.msra.mxu0 0.0
      %2367 = vmatprep.subr.mxu0 0.0
      %2368 = vmatpush2.msra.mxu0 0.0
      %2369 = vmatprep.subr.mxu0 0.0
      %2370 = vmatpush2.msra.mxu0 0.0
      %2371 = vmatprep.mubr.f32.mxu0 0.0
      %2372 = vmatmul.mubr.f32.gmra.mxu0 %v2179
      %v2373 = vpop.f32.mrf.mxu0
      %v2374 = vadd.f32 %v2299, %v2373
      %v2375 = vpop.f32.mrf.mxu0
      %2376 = vmatprep.mubr.f32.mxu0 0.0
      %2377 = vmatmul.mubr.f32.gmra.mxu0 %v2182
      %v2378 = vpop.f32.mrf.mxu0
      %v2379 = vadd.f32 %v2304, %v2378
      %v2380 = vpop.f32.mrf.mxu0
      %2381 = vdwg.mxu0
      %v2382 = vadd.f32 %v2169, %v2374
      %v2383 = vadd.f32 %v2170, %v2379
      %s2384 = sadd.s32 %s259, 80
      %s2385 = sshra.s32 %s2384, 3
      %s2386 = sand.u32 %s2384, 7
      %s2387 = smul.u32 %s2385, 3
      %s2388 = smul.addr %s2387, 8
      %s2389 = scalar_lea.vmem %s236, %s2388
      %v2390 = vld [vmem:[%s2389] sm:$0xff]
      %v2391 = vld [vmem:[%s2389 + $0x8] sm:$0xff]
      %v2392 = vld [vmem:[%s2389 + $0x10] sm:$0xff]
      %v2393 = vld [vmem:[%s2389 + $0x18] sm:$0xff]
      %v2394 = vld [vmem:[%s2389 + $0x20] sm:$0xff]
      %v2395 = vld [vmem:[%s2389 + $0x28] sm:$0xff]
      %s2396 = scalar_lea.vmem %s241, 3840
      %v2397 = vld [vmem:[%s2396] sm:$0xff]
      %v2398 = vld [vmem:[%s2396 + $0x8] sm:$0xff]
      %v2399 = vld [vmem:[%s2396 + $0x10] sm:$0xff]
      %v2400 = vld [vmem:[%s2396 + $0x18] sm:$0xff]
      %v2401 = vld [vmem:[%s2396 + $0x20] sm:$0xff]
      %v2402 = vld [vmem:[%s2396 + $0x28] sm:$0xff]
      %v2403 = vld [vmem:[%s2396 + $0x30] sm:$0xff]
      %v2404 = vld [vmem:[%s2396 + $0x38] sm:$0xff]
      %v2405 = vld [vmem:[%s2396 + $0x40] sm:$0xff]
      %v2406 = vld [vmem:[%s2396 + $0x48] sm:$0xff]
      %v2407 = vld [vmem:[%s2396 + $0x50] sm:$0xff]
      %v2408 = vld [vmem:[%s2396 + $0x58] sm:$0xff]
      %v2409 = vld [vmem:[%s2396 + $0x60] sm:$0xff]
      %v2410 = vld [vmem:[%s2396 + $0x68] sm:$0xff]
      %v2411 = vld [vmem:[%s2396 + $0x70] sm:$0xff]
      %v2412 = vld [vmem:[%s2396 + $0x78] sm:$0xff]
      %v2413 = vld [vmem:[%s2396 + $0x80] sm:$0xff]
      %v2414 = vld [vmem:[%s2396 + $0x88] sm:$0xff]
      %v2415 = vld [vmem:[%s2396 + $0x90] sm:$0xff]
      %v2416 = vld [vmem:[%s2396 + $0x98] sm:$0xff]
      %v2417 = vld [vmem:[%s2396 + $0xa0] sm:$0xff]
      %v2418 = vld [vmem:[%s2396 + $0xa8] sm:$0xff]
      %v2419 = vld [vmem:[%s2396 + $0xb0] sm:$0xff]
      %v2420 = vld [vmem:[%s2396 + $0xb8] sm:$0xff]
      %v2421 = vld [vmem:[%s2396 + $0xc0] sm:$0xff]
      %v2422 = vld [vmem:[%s2396 + $0xc8] sm:$0xff]
      %v2423 = vld [vmem:[%s2396 + $0xd0] sm:$0xff]
      %v2424 = vld [vmem:[%s2396 + $0xd8] sm:$0xff]
      %v2425 = vld [vmem:[%s2396 + $0xe0] sm:$0xff]
      %v2426 = vld [vmem:[%s2396 + $0xe8] sm:$0xff]
      %v2427 = vld [vmem:[%s2396 + $0xf0] sm:$0xff]
      %v2428 = vld [vmem:[%s2396 + $0xf8] sm:$0xff]
      %v2429 = vld [vmem:[%s2396 + $0x100] sm:$0xff]
      %v2430 = vld [vmem:[%s2396 + $0x108] sm:$0xff]
      %v2431 = vld [vmem:[%s2396 + $0x110] sm:$0xff]
      %v2432 = vld [vmem:[%s2396 + $0x118] sm:$0xff]
      %v2433 = vld [vmem:[%s2396 + $0x120] sm:$0xff]
      %v2434 = vld [vmem:[%s2396 + $0x128] sm:$0xff]
      %v2435 = vld [vmem:[%s2396 + $0x130] sm:$0xff]
      %v2436 = vld [vmem:[%s2396 + $0x138] sm:$0xff]
      %v2437 = vld [vmem:[%s2396 + $0x140] sm:$0xff]
      %v2438 = vld [vmem:[%s2396 + $0x148] sm:$0xff]
      %v2439 = vld [vmem:[%s2396 + $0x150] sm:$0xff]
      %v2440 = vld [vmem:[%s2396 + $0x158] sm:$0xff]
      %v2441 = vld [vmem:[%s2396 + $0x160] sm:$0xff]
      %v2442 = vld [vmem:[%s2396 + $0x168] sm:$0xff]
      %v2443 = vld [vmem:[%s2396 + $0x170] sm:$0xff]
      %v2444 = vld [vmem:[%s2396 + $0x178] sm:$0xff]
      %2445 = vmatprep.subr.mxu0 0.0
      %2446 = vmatpush1.msra.mxu0 %v2412
      %2447 = vmatprep.subr.mxu0 0.0
      %2448 = vmatpush1.msra.mxu0 %v2411
      %2449 = vmatprep.subr.mxu0 0.0
      %2450 = vmatpush1.msra.mxu0 %v2410
      %2451 = vmatprep.subr.mxu0 0.0
      %2452 = vmatpush1.msra.mxu0 %v2409
      %2453 = vmatprep.subr.mxu0 0.0
      %2454 = vmatpush1.msra.mxu0 %v2408
      %2455 = vmatprep.subr.mxu0 0.0
      %2456 = vmatpush1.msra.mxu0 %v2407
      %2457 = vmatprep.subr.mxu0 0.0
      %2458 = vmatpush1.msra.mxu0 %v2406
      %2459 = vmatprep.subr.mxu0 0.0
      %2460 = vmatpush1.msra.mxu0 %v2405
      %2461 = vmatprep.subr.mxu0 0.0
      %2462 = vmatpush1.msra.mxu0 %v2404
      %2463 = vmatprep.subr.mxu0 0.0
      %2464 = vmatpush1.msra.mxu0 %v2403
      %2465 = vmatprep.subr.mxu0 0.0
      %2466 = vmatpush1.msra.mxu0 %v2402
      %2467 = vmatprep.subr.mxu0 0.0
      %2468 = vmatpush1.msra.mxu0 %v2401
      %2469 = vmatprep.subr.mxu0 0.0
      %2470 = vmatpush1.msra.mxu0 %v2400
      %2471 = vmatprep.subr.mxu0 0.0
      %2472 = vmatpush1.msra.mxu0 %v2399
      %2473 = vmatprep.subr.mxu0 0.0
      %2474 = vmatpush1.msra.mxu0 %v2398
      %2475 = vmatprep.subr.mxu0 0.0
      %2476 = vmatpush1.msra.mxu0 %v2397
      %2477 = vmatprep.subr.mxu0 0.0
      %2478 = vmatpush2.msra.mxu0 %v2428
      %2479 = vmatprep.subr.mxu0 0.0
      %2480 = vmatpush2.msra.mxu0 %v2427
      %2481 = vmatprep.subr.mxu0 0.0
      %2482 = vmatpush2.msra.mxu0 %v2426
      %2483 = vmatprep.subr.mxu0 0.0
      %2484 = vmatpush2.msra.mxu0 %v2425
      %2485 = vmatprep.subr.mxu0 0.0
      %2486 = vmatpush2.msra.mxu0 %v2424
      %2487 = vmatprep.subr.mxu0 0.0
      %2488 = vmatpush2.msra.mxu0 %v2423
      %2489 = vmatprep.subr.mxu0 0.0
      %2490 = vmatpush2.msra.mxu0 %v2422
      %2491 = vmatprep.subr.mxu0 0.0
      %2492 = vmatpush2.msra.mxu0 %v2421
      %2493 = vmatprep.subr.mxu0 0.0
      %2494 = vmatpush2.msra.mxu0 %v2420
      %2495 = vmatprep.subr.mxu0 0.0
      %2496 = vmatpush2.msra.mxu0 %v2419
      %2497 = vmatprep.subr.mxu0 0.0
      %2498 = vmatpush2.msra.mxu0 %v2418
      %2499 = vmatprep.subr.mxu0 0.0
      %2500 = vmatpush2.msra.mxu0 %v2417
      %2501 = vmatprep.subr.mxu0 0.0
      %2502 = vmatpush2.msra.mxu0 %v2416
      %2503 = vmatprep.subr.mxu0 0.0
      %2504 = vmatpush2.msra.mxu0 %v2415
      %2505 = vmatprep.subr.mxu0 0.0
      %2506 = vmatpush2.msra.mxu0 %v2414
      %2507 = vmatprep.subr.mxu0 0.0
      %2508 = vmatpush2.msra.mxu0 %v2413
      %2509 = vmatprep.mubr.f32.mxu0 %v2391
      %2510 = vmatmul.mubr.f32.gmra.mxu0 %v2390
      %v2511 = vpop.f32.mrf.mxu0
      %v2512 = vadd.f32 0.0, %v2511
      %v2513 = vpop.f32.mrf.mxu0
      %2514 = vmatprep.mubr.f32.mxu0 %v2394
      %2515 = vmatmul.mubr.f32.gmra.mxu0 %v2393
      %v2516 = vpop.f32.mrf.mxu0
      %v2517 = vadd.f32 0.0, %v2516
      %v2518 = vpop.f32.mrf.mxu0
      %2519 = vdwg.mxu0
      %2520 = vmatprep.subr.mxu0 0.0
      %2521 = vmatpush1.msra.mxu0 %v2444
      %2522 = vmatprep.subr.mxu0 0.0
      %2523 = vmatpush1.msra.mxu0 %v2443
      %2524 = vmatprep.subr.mxu0 0.0
      %2525 = vmatpush1.msra.mxu0 %v2442
      %2526 = vmatprep.subr.mxu0 0.0
      %2527 = vmatpush1.msra.mxu0 %v2441
      %2528 = vmatprep.subr.mxu0 0.0
      %2529 = vmatpush1.msra.mxu0 %v2440
      %2530 = vmatprep.subr.mxu0 0.0
      %2531 = vmatpush1.msra.mxu0 %v2439
      %2532 = vmatprep.subr.mxu0 0.0
      %2533 = vmatpush1.msra.mxu0 %v2438
      %2534 = vmatprep.subr.mxu0 0.0
      %2535 = vmatpush1.msra.mxu0 %v2437
      %2536 = vmatprep.subr.mxu0 0.0
      %2537 = vmatpush1.msra.mxu0 %v2436
      %2538 = vmatprep.subr.mxu0 0.0
      %2539 = vmatpush1.msra.mxu0 %v2435
      %2540 = vmatprep.subr.mxu0 0.0
      %2541 = vmatpush1.msra.mxu0 %v2434
      %2542 = vmatprep.subr.mxu0 0.0
      %2543 = vmatpush1.msra.mxu0 %v2433
      %2544 = vmatprep.subr.mxu0 0.0
      %2545 = vmatpush1.msra.mxu0 %v2432
      %2546 = vmatprep.subr.mxu0 0.0
      %2547 = vmatpush1.msra.mxu0 %v2431
      %2548 = vmatprep.subr.mxu0 0.0
      %2549 = vmatpush1.msra.mxu0 %v2430
      %2550 = vmatprep.subr.mxu0 0.0
      %2551 = vmatpush1.msra.mxu0 %v2429
      %2552 = vmatprep.subr.mxu0 0.0
      %2553 = vmatpush2.msra.mxu0 0.0
      %2554 = vmatprep.subr.mxu0 0.0
      %2555 = vmatpush2.msra.mxu0 0.0
      %2556 = vmatprep.subr.mxu0 0.0
      %2557 = vmatpush2.msra.mxu0 0.0
      %2558 = vmatprep.subr.mxu0 0.0
      %2559 = vmatpush2.msra.mxu0 0.0
      %2560 = vmatprep.subr.mxu0 0.0
      %2561 = vmatpush2.msra.mxu0 0.0
      %2562 = vmatprep.subr.mxu0 0.0
      %2563 = vmatpush2.msra.mxu0 0.0
      %2564 = vmatprep.subr.mxu0 0.0
      %2565 = vmatpush2.msra.mxu0 0.0
      %2566 = vmatprep.subr.mxu0 0.0
      %2567 = vmatpush2.msra.mxu0 0.0
      %2568 = vmatprep.subr.mxu0 0.0
      %2569 = vmatpush2.msra.mxu0 0.0
      %2570 = vmatprep.subr.mxu0 0.0
      %2571 = vmatpush2.msra.mxu0 0.0
      %2572 = vmatprep.subr.mxu0 0.0
      %2573 = vmatpush2.msra.mxu0 0.0
      %2574 = vmatprep.subr.mxu0 0.0
      %2575 = vmatpush2.msra.mxu0 0.0
      %2576 = vmatprep.subr.mxu0 0.0
      %2577 = vmatpush2.msra.mxu0 0.0
      %2578 = vmatprep.subr.mxu0 0.0
      %2579 = vmatpush2.msra.mxu0 0.0
      %2580 = vmatprep.subr.mxu0 0.0
      %2581 = vmatpush2.msra.mxu0 0.0
      %2582 = vmatprep.subr.mxu0 0.0
      %2583 = vmatpush2.msra.mxu0 0.0
      %2584 = vmatprep.mubr.f32.mxu0 0.0
      %2585 = vmatmul.mubr.f32.gmra.mxu0 %v2392
      %v2586 = vpop.f32.mrf.mxu0
      %v2587 = vadd.f32 %v2512, %v2586
      %v2588 = vpop.f32.mrf.mxu0
      %2589 = vmatprep.mubr.f32.mxu0 0.0
      %2590 = vmatmul.mubr.f32.gmra.mxu0 %v2395
      %v2591 = vpop.f32.mrf.mxu0
      %v2592 = vadd.f32 %v2517, %v2591
      %v2593 = vpop.f32.mrf.mxu0
      %2594 = vdwg.mxu0
      %v2595 = vadd.f32 %v2382, %v2587
      %v2596 = vadd.f32 %v2383, %v2592
      %s2597 = sadd.s32 %s259, 88
      %s2598 = sshra.s32 %s2597, 3
      %s2599 = sand.u32 %s2597, 7
      %s2600 = smul.u32 %s2598, 3
      %s2601 = smul.addr %s2600, 8
      %s2602 = scalar_lea.vmem %s236, %s2601
      %v2603 = vld [vmem:[%s2602] sm:$0xff]
      %v2604 = vld [vmem:[%s2602 + $0x8] sm:$0xff]
      %v2605 = vld [vmem:[%s2602 + $0x10] sm:$0xff]
      %v2606 = vld [vmem:[%s2602 + $0x18] sm:$0xff]
      %v2607 = vld [vmem:[%s2602 + $0x20] sm:$0xff]
      %v2608 = vld [vmem:[%s2602 + $0x28] sm:$0xff]
      %s2609 = scalar_lea.vmem %s241, 4224
      %v2610 = vld [vmem:[%s2609] sm:$0xff]
      %v2611 = vld [vmem:[%s2609 + $0x8] sm:$0xff]
      %v2612 = vld [vmem:[%s2609 + $0x10] sm:$0xff]
      %v2613 = vld [vmem:[%s2609 + $0x18] sm:$0xff]
      %v2614 = vld [vmem:[%s2609 + $0x20] sm:$0xff]
      %v2615 = vld [vmem:[%s2609 + $0x28] sm:$0xff]
      %v2616 = vld [vmem:[%s2609 + $0x30] sm:$0xff]
      %v2617 = vld [vmem:[%s2609 + $0x38] sm:$0xff]
      %v2618 = vld [vmem:[%s2609 + $0x40] sm:$0xff]
      %v2619 = vld [vmem:[%s2609 + $0x48] sm:$0xff]
      %v2620 = vld [vmem:[%s2609 + $0x50] sm:$0xff]
      %v2621 = vld [vmem:[%s2609 + $0x58] sm:$0xff]
      %v2622 = vld [vmem:[%s2609 + $0x60] sm:$0xff]
      %v2623 = vld [vmem:[%s2609 + $0x68] sm:$0xff]
      %v2624 = vld [vmem:[%s2609 + $0x70] sm:$0xff]
      %v2625 = vld [vmem:[%s2609 + $0x78] sm:$0xff]
      %v2626 = vld [vmem:[%s2609 + $0x80] sm:$0xff]
      %v2627 = vld [vmem:[%s2609 + $0x88] sm:$0xff]
      %v2628 = vld [vmem:[%s2609 + $0x90] sm:$0xff]
      %v2629 = vld [vmem:[%s2609 + $0x98] sm:$0xff]
      %v2630 = vld [vmem:[%s2609 + $0xa0] sm:$0xff]
      %v2631 = vld [vmem:[%s2609 + $0xa8] sm:$0xff]
      %v2632 = vld [vmem:[%s2609 + $0xb0] sm:$0xff]
      %v2633 = vld [vmem:[%s2609 + $0xb8] sm:$0xff]
      %v2634 = vld [vmem:[%s2609 + $0xc0] sm:$0xff]
      %v2635 = vld [vmem:[%s2609 + $0xc8] sm:$0xff]
      %v2636 = vld [vmem:[%s2609 + $0xd0] sm:$0xff]
      %v2637 = vld [vmem:[%s2609 + $0xd8] sm:$0xff]
      %v2638 = vld [vmem:[%s2609 + $0xe0] sm:$0xff]
      %v2639 = vld [vmem:[%s2609 + $0xe8] sm:$0xff]
      %v2640 = vld [vmem:[%s2609 + $0xf0] sm:$0xff]
      %v2641 = vld [vmem:[%s2609 + $0xf8] sm:$0xff]
      %v2642 = vld [vmem:[%s2609 + $0x100] sm:$0xff]
      %v2643 = vld [vmem:[%s2609 + $0x108] sm:$0xff]
      %v2644 = vld [vmem:[%s2609 + $0x110] sm:$0xff]
      %v2645 = vld [vmem:[%s2609 + $0x118] sm:$0xff]
      %v2646 = vld [vmem:[%s2609 + $0x120] sm:$0xff]
      %v2647 = vld [vmem:[%s2609 + $0x128] sm:$0xff]
      %v2648 = vld [vmem:[%s2609 + $0x130] sm:$0xff]
      %v2649 = vld [vmem:[%s2609 + $0x138] sm:$0xff]
      %v2650 = vld [vmem:[%s2609 + $0x140] sm:$0xff]
      %v2651 = vld [vmem:[%s2609 + $0x148] sm:$0xff]
      %v2652 = vld [vmem:[%s2609 + $0x150] sm:$0xff]
      %v2653 = vld [vmem:[%s2609 + $0x158] sm:$0xff]
      %v2654 = vld [vmem:[%s2609 + $0x160] sm:$0xff]
      %v2655 = vld [vmem:[%s2609 + $0x168] sm:$0xff]
      %v2656 = vld [vmem:[%s2609 + $0x170] sm:$0xff]
      %v2657 = vld [vmem:[%s2609 + $0x178] sm:$0xff]
      %2658 = vmatprep.subr.mxu0 0.0
      %2659 = vmatpush1.msra.mxu0 %v2625
      %2660 = vmatprep.subr.mxu0 0.0
      %2661 = vmatpush1.msra.mxu0 %v2624
      %2662 = vmatprep.subr.mxu0 0.0
      %2663 = vmatpush1.msra.mxu0 %v2623
      %2664 = vmatprep.subr.mxu0 0.0
      %2665 = vmatpush1.msra.mxu0 %v2622
      %2666 = vmatprep.subr.mxu0 0.0
      %2667 = vmatpush1.msra.mxu0 %v2621
      %2668 = vmatprep.subr.mxu0 0.0
      %2669 = vmatpush1.msra.mxu0 %v2620
      %2670 = vmatprep.subr.mxu0 0.0
      %2671 = vmatpush1.msra.mxu0 %v2619
      %2672 = vmatprep.subr.mxu0 0.0
      %2673 = vmatpush1.msra.mxu0 %v2618
      %2674 = vmatprep.subr.mxu0 0.0
      %2675 = vmatpush1.msra.mxu0 %v2617
      %2676 = vmatprep.subr.mxu0 0.0
      %2677 = vmatpush1.msra.mxu0 %v2616
      %2678 = vmatprep.subr.mxu0 0.0
      %2679 = vmatpush1.msra.mxu0 %v2615
      %2680 = vmatprep.subr.mxu0 0.0
      %2681 = vmatpush1.msra.mxu0 %v2614
      %2682 = vmatprep.subr.mxu0 0.0
      %2683 = vmatpush1.msra.mxu0 %v2613
      %2684 = vmatprep.subr.mxu0 0.0
      %2685 = vmatpush1.msra.mxu0 %v2612
      %2686 = vmatprep.subr.mxu0 0.0
      %2687 = vmatpush1.msra.mxu0 %v2611
      %2688 = vmatprep.subr.mxu0 0.0
      %2689 = vmatpush1.msra.mxu0 %v2610
      %2690 = vmatprep.subr.mxu0 0.0
      %2691 = vmatpush2.msra.mxu0 %v2641
      %2692 = vmatprep.subr.mxu0 0.0
      %2693 = vmatpush2.msra.mxu0 %v2640
      %2694 = vmatprep.subr.mxu0 0.0
      %2695 = vmatpush2.msra.mxu0 %v2639
      %2696 = vmatprep.subr.mxu0 0.0
      %2697 = vmatpush2.msra.mxu0 %v2638
      %2698 = vmatprep.subr.mxu0 0.0
      %2699 = vmatpush2.msra.mxu0 %v2637
      %2700 = vmatprep.subr.mxu0 0.0
      %2701 = vmatpush2.msra.mxu0 %v2636
      %2702 = vmatprep.subr.mxu0 0.0
      %2703 = vmatpush2.msra.mxu0 %v2635
      %2704 = vmatprep.subr.mxu0 0.0
      %2705 = vmatpush2.msra.mxu0 %v2634
      %2706 = vmatprep.subr.mxu0 0.0
      %2707 = vmatpush2.msra.mxu0 %v2633
      %2708 = vmatprep.subr.mxu0 0.0
      %2709 = vmatpush2.msra.mxu0 %v2632
      %2710 = vmatprep.subr.mxu0 0.0
      %2711 = vmatpush2.msra.mxu0 %v2631
      %2712 = vmatprep.subr.mxu0 0.0
      %2713 = vmatpush2.msra.mxu0 %v2630
      %2714 = vmatprep.subr.mxu0 0.0
      %2715 = vmatpush2.msra.mxu0 %v2629
      %2716 = vmatprep.subr.mxu0 0.0
      %2717 = vmatpush2.msra.mxu0 %v2628
      %2718 = vmatprep.subr.mxu0 0.0
      %2719 = vmatpush2.msra.mxu0 %v2627
      %2720 = vmatprep.subr.mxu0 0.0
      %2721 = vmatpush2.msra.mxu0 %v2626
      %2722 = vmatprep.mubr.f32.mxu0 %v2604
      %2723 = vmatmul.mubr.f32.gmra.mxu0 %v2603
      %v2724 = vpop.f32.mrf.mxu0
      %v2725 = vadd.f32 0.0, %v2724
      %v2726 = vpop.f32.mrf.mxu0
      %2727 = vmatprep.mubr.f32.mxu0 %v2607
      %2728 = vmatmul.mubr.f32.gmra.mxu0 %v2606
      %v2729 = vpop.f32.mrf.mxu0
      %v2730 = vadd.f32 0.0, %v2729
      %v2731 = vpop.f32.mrf.mxu0
      %2732 = vdwg.mxu0
      %2733 = vmatprep.subr.mxu0 0.0
      %2734 = vmatpush1.msra.mxu0 %v2657
      %2735 = vmatprep.subr.mxu0 0.0
      %2736 = vmatpush1.msra.mxu0 %v2656
      %2737 = vmatprep.subr.mxu0 0.0
      %2738 = vmatpush1.msra.mxu0 %v2655
      %2739 = vmatprep.subr.mxu0 0.0
      %2740 = vmatpush1.msra.mxu0 %v2654
      %2741 = vmatprep.subr.mxu0 0.0
      %2742 = vmatpush1.msra.mxu0 %v2653
      %2743 = vmatprep.subr.mxu0 0.0
      %2744 = vmatpush1.msra.mxu0 %v2652
      %2745 = vmatprep.subr.mxu0 0.0
      %2746 = vmatpush1.msra.mxu0 %v2651
      %2747 = vmatprep.subr.mxu0 0.0
      %2748 = vmatpush1.msra.mxu0 %v2650
      %2749 = vmatprep.subr.mxu0 0.0
      %2750 = vmatpush1.msra.mxu0 %v2649
      %2751 = vmatprep.subr.mxu0 0.0
      %2752 = vmatpush1.msra.mxu0 %v2648
      %2753 = vmatprep.subr.mxu0 0.0
      %2754 = vmatpush1.msra.mxu0 %v2647
      %2755 = vmatprep.subr.mxu0 0.0
      %2756 = vmatpush1.msra.mxu0 %v2646
      %2757 = vmatprep.subr.mxu0 0.0
      %2758 = vmatpush1.msra.mxu0 %v2645
      %2759 = vmatprep.subr.mxu0 0.0
      %2760 = vmatpush1.msra.mxu0 %v2644
      %2761 = vmatprep.subr.mxu0 0.0
      %2762 = vmatpush1.msra.mxu0 %v2643
      %2763 = vmatprep.subr.mxu0 0.0
      %2764 = vmatpush1.msra.mxu0 %v2642
      %2765 = vmatprep.subr.mxu0 0.0
      %2766 = vmatpush2.msra.mxu0 0.0
      %2767 = vmatprep.subr.mxu0 0.0
      %2768 = vmatpush2.msra.mxu0 0.0
      %2769 = vmatprep.subr.mxu0 0.0
      %2770 = vmatpush2.msra.mxu0 0.0
      %2771 = vmatprep.subr.mxu0 0.0
      %2772 = vmatpush2.msra.mxu0 0.0
      %2773 = vmatprep.subr.mxu0 0.0
      %2774 = vmatpush2.msra.mxu0 0.0
      %2775 = vmatprep.subr.mxu0 0.0
      %2776 = vmatpush2.msra.mxu0 0.0
      %2777 = vmatprep.subr.mxu0 0.0
      %2778 = vmatpush2.msra.mxu0 0.0
      %2779 = vmatprep.subr.mxu0 0.0
      %2780 = vmatpush2.msra.mxu0 0.0
      %2781 = vmatprep.subr.mxu0 0.0
      %2782 = vmatpush2.msra.mxu0 0.0
      %2783 = vmatprep.subr.mxu0 0.0
      %2784 = vmatpush2.msra.mxu0 0.0
      %2785 = vmatprep.subr.mxu0 0.0
      %2786 = vmatpush2.msra.mxu0 0.0
      %2787 = vmatprep.subr.mxu0 0.0
      %2788 = vmatpush2.msra.mxu0 0.0
      %2789 = vmatprep.subr.mxu0 0.0
      %2790 = vmatpush2.msra.mxu0 0.0
      %2791 = vmatprep.subr.mxu0 0.0
      %2792 = vmatpush2.msra.mxu0 0.0
      %2793 = vmatprep.subr.mxu0 0.0
      %2794 = vmatpush2.msra.mxu0 0.0
      %2795 = vmatprep.subr.mxu0 0.0
      %2796 = vmatpush2.msra.mxu0 0.0
      %2797 = vmatprep.mubr.f32.mxu0 0.0
      %2798 = vmatmul.mubr.f32.gmra.mxu0 %v2605
      %v2799 = vpop.f32.mrf.mxu0
      %v2800 = vadd.f32 %v2725, %v2799
      %v2801 = vpop.f32.mrf.mxu0
      %2802 = vmatprep.mubr.f32.mxu0 0.0
      %2803 = vmatmul.mubr.f32.gmra.mxu0 %v2608
      %v2804 = vpop.f32.mrf.mxu0
      %v2805 = vadd.f32 %v2730, %v2804
      %v2806 = vpop.f32.mrf.mxu0
      %2807 = vdwg.mxu0
      %v2808 = vadd.f32 %v2595, %v2800
      %v2809 = vadd.f32 %v2596, %v2805
      %s2810 = sadd.s32 %s259, 96
      %s2811 = sshra.s32 %s2810, 3
      %s2812 = sand.u32 %s2810, 7
      %s2813 = smul.u32 %s2811, 3
      %s2814 = smul.addr %s2813, 8
      %s2815 = scalar_lea.vmem %s236, %s2814
      %v2816 = vld [vmem:[%s2815] sm:$0xff]
      %v2817 = vld [vmem:[%s2815 + $0x8] sm:$0xff]
      %v2818 = vld [vmem:[%s2815 + $0x10] sm:$0xff]
      %v2819 = vld [vmem:[%s2815 + $0x18] sm:$0xff]
      %v2820 = vld [vmem:[%s2815 + $0x20] sm:$0xff]
      %v2821 = vld [vmem:[%s2815 + $0x28] sm:$0xff]
      %s2822 = scalar_lea.vmem %s241, 4608
      %v2823 = vld [vmem:[%s2822] sm:$0xff]
      %v2824 = vld [vmem:[%s2822 + $0x8] sm:$0xff]
      %v2825 = vld [vmem:[%s2822 + $0x10] sm:$0xff]
      %v2826 = vld [vmem:[%s2822 + $0x18] sm:$0xff]
      %v2827 = vld [vmem:[%s2822 + $0x20] sm:$0xff]
      %v2828 = vld [vmem:[%s2822 + $0x28] sm:$0xff]
      %v2829 = vld [vmem:[%s2822 + $0x30] sm:$0xff]
      %v2830 = vld [vmem:[%s2822 + $0x38] sm:$0xff]
      %v2831 = vld [vmem:[%s2822 + $0x40] sm:$0xff]
      %v2832 = vld [vmem:[%s2822 + $0x48] sm:$0xff]
      %v2833 = vld [vmem:[%s2822 + $0x50] sm:$0xff]
      %v2834 = vld [vmem:[%s2822 + $0x58] sm:$0xff]
      %v2835 = vld [vmem:[%s2822 + $0x60] sm:$0xff]
      %v2836 = vld [vmem:[%s2822 + $0x68] sm:$0xff]
      %v2837 = vld [vmem:[%s2822 + $0x70] sm:$0xff]
      %v2838 = vld [vmem:[%s2822 + $0x78] sm:$0xff]
      %v2839 = vld [vmem:[%s2822 + $0x80] sm:$0xff]
      %v2840 = vld [vmem:[%s2822 + $0x88] sm:$0xff]
      %v2841 = vld [vmem:[%s2822 + $0x90] sm:$0xff]
      %v2842 = vld [vmem:[%s2822 + $0x98] sm:$0xff]
      %v2843 = vld [vmem:[%s2822 + $0xa0] sm:$0xff]
      %v2844 = vld [vmem:[%s2822 + $0xa8] sm:$0xff]
      %v2845 = vld [vmem:[%s2822 + $0xb0] sm:$0xff]
      %v2846 = vld [vmem:[%s2822 + $0xb8] sm:$0xff]
      %v2847 = vld [vmem:[%s2822 + $0xc0] sm:$0xff]
      %v2848 = vld [vmem:[%s2822 + $0xc8] sm:$0xff]
      %v2849 = vld [vmem:[%s2822 + $0xd0] sm:$0xff]
      %v2850 = vld [vmem:[%s2822 + $0xd8] sm:$0xff]
      %v2851 = vld [vmem:[%s2822 + $0xe0] sm:$0xff]
      %v2852 = vld [vmem:[%s2822 + $0xe8] sm:$0xff]
      %v2853 = vld [vmem:[%s2822 + $0xf0] sm:$0xff]
      %v2854 = vld [vmem:[%s2822 + $0xf8] sm:$0xff]
      %v2855 = vld [vmem:[%s2822 + $0x100] sm:$0xff]
      %v2856 = vld [vmem:[%s2822 + $0x108] sm:$0xff]
      %v2857 = vld [vmem:[%s2822 + $0x110] sm:$0xff]
      %v2858 = vld [vmem:[%s2822 + $0x118] sm:$0xff]
      %v2859 = vld [vmem:[%s2822 + $0x120] sm:$0xff]
      %v2860 = vld [vmem:[%s2822 + $0x128] sm:$0xff]
      %v2861 = vld [vmem:[%s2822 + $0x130] sm:$0xff]
      %v2862 = vld [vmem:[%s2822 + $0x138] sm:$0xff]
      %v2863 = vld [vmem:[%s2822 + $0x140] sm:$0xff]
      %v2864 = vld [vmem:[%s2822 + $0x148] sm:$0xff]
      %v2865 = vld [vmem:[%s2822 + $0x150] sm:$0xff]
      %v2866 = vld [vmem:[%s2822 + $0x158] sm:$0xff]
      %v2867 = vld [vmem:[%s2822 + $0x160] sm:$0xff]
      %v2868 = vld [vmem:[%s2822 + $0x168] sm:$0xff]
      %v2869 = vld [vmem:[%s2822 + $0x170] sm:$0xff]
      %v2870 = vld [vmem:[%s2822 + $0x178] sm:$0xff]
      %2871 = vmatprep.subr.mxu0 0.0
      %2872 = vmatpush1.msra.mxu0 %v2838
      %2873 = vmatprep.subr.mxu0 0.0
      %2874 = vmatpush1.msra.mxu0 %v2837
      %2875 = vmatprep.subr.mxu0 0.0
      %2876 = vmatpush1.msra.mxu0 %v2836
      %2877 = vmatprep.subr.mxu0 0.0
      %2878 = vmatpush1.msra.mxu0 %v2835
      %2879 = vmatprep.subr.mxu0 0.0
      %2880 = vmatpush1.msra.mxu0 %v2834
      %2881 = vmatprep.subr.mxu0 0.0
      %2882 = vmatpush1.msra.mxu0 %v2833
      %2883 = vmatprep.subr.mxu0 0.0
      %2884 = vmatpush1.msra.mxu0 %v2832
      %2885 = vmatprep.subr.mxu0 0.0
      %2886 = vmatpush1.msra.mxu0 %v2831
      %2887 = vmatprep.subr.mxu0 0.0
      %2888 = vmatpush1.msra.mxu0 %v2830
      %2889 = vmatprep.subr.mxu0 0.0
      %2890 = vmatpush1.msra.mxu0 %v2829
      %2891 = vmatprep.subr.mxu0 0.0
      %2892 = vmatpush1.msra.mxu0 %v2828
      %2893 = vmatprep.subr.mxu0 0.0
      %2894 = vmatpush1.msra.mxu0 %v2827
      %2895 = vmatprep.subr.mxu0 0.0
      %2896 = vmatpush1.msra.mxu0 %v2826
      %2897 = vmatprep.subr.mxu0 0.0
      %2898 = vmatpush1.msra.mxu0 %v2825
      %2899 = vmatprep.subr.mxu0 0.0
      %2900 = vmatpush1.msra.mxu0 %v2824
      %2901 = vmatprep.subr.mxu0 0.0
      %2902 = vmatpush1.msra.mxu0 %v2823
      %2903 = vmatprep.subr.mxu0 0.0
      %2904 = vmatpush2.msra.mxu0 %v2854
      %2905 = vmatprep.subr.mxu0 0.0
      %2906 = vmatpush2.msra.mxu0 %v2853
      %2907 = vmatprep.subr.mxu0 0.0
      %2908 = vmatpush2.msra.mxu0 %v2852
      %2909 = vmatprep.subr.mxu0 0.0
      %2910 = vmatpush2.msra.mxu0 %v2851
      %2911 = vmatprep.subr.mxu0 0.0
      %2912 = vmatpush2.msra.mxu0 %v2850
      %2913 = vmatprep.subr.mxu0 0.0
      %2914 = vmatpush2.msra.mxu0 %v2849
      %2915 = vmatprep.subr.mxu0 0.0
      %2916 = vmatpush2.msra.mxu0 %v2848
      %2917 = vmatprep.subr.mxu0 0.0
      %2918 = vmatpush2.msra.mxu0 %v2847
      %2919 = vmatprep.subr.mxu0 0.0
      %2920 = vmatpush2.msra.mxu0 %v2846
      %2921 = vmatprep.subr.mxu0 0.0
      %2922 = vmatpush2.msra.mxu0 %v2845
      %2923 = vmatprep.subr.mxu0 0.0
      %2924 = vmatpush2.msra.mxu0 %v2844
      %2925 = vmatprep.subr.mxu0 0.0
      %2926 = vmatpush2.msra.mxu0 %v2843
      %2927 = vmatprep.subr.mxu0 0.0
      %2928 = vmatpush2.msra.mxu0 %v2842
      %2929 = vmatprep.subr.mxu0 0.0
      %2930 = vmatpush2.msra.mxu0 %v2841
      %2931 = vmatprep.subr.mxu0 0.0
      %2932 = vmatpush2.msra.mxu0 %v2840
      %2933 = vmatprep.subr.mxu0 0.0
      %2934 = vmatpush2.msra.mxu0 %v2839
      %2935 = vmatprep.mubr.f32.mxu0 %v2817
      %2936 = vmatmul.mubr.f32.gmra.mxu0 %v2816
      %v2937 = vpop.f32.mrf.mxu0
      %v2938 = vadd.f32 0.0, %v2937
      %v2939 = vpop.f32.mrf.mxu0
      %2940 = vmatprep.mubr.f32.mxu0 %v2820
      %2941 = vmatmul.mubr.f32.gmra.mxu0 %v2819
      %v2942 = vpop.f32.mrf.mxu0
      %v2943 = vadd.f32 0.0, %v2942
      %v2944 = vpop.f32.mrf.mxu0
      %2945 = vdwg.mxu0
      %2946 = vmatprep.subr.mxu0 0.0
      %2947 = vmatpush1.msra.mxu0 %v2870
      %2948 = vmatprep.subr.mxu0 0.0
      %2949 = vmatpush1.msra.mxu0 %v2869
      %2950 = vmatprep.subr.mxu0 0.0
      %2951 = vmatpush1.msra.mxu0 %v2868
      %2952 = vmatprep.subr.mxu0 0.0
      %2953 = vmatpush1.msra.mxu0 %v2867
      %2954 = vmatprep.subr.mxu0 0.0
      %2955 = vmatpush1.msra.mxu0 %v2866
      %2956 = vmatprep.subr.mxu0 0.0
      %2957 = vmatpush1.msra.mxu0 %v2865
      %2958 = vmatprep.subr.mxu0 0.0
      %2959 = vmatpush1.msra.mxu0 %v2864
      %2960 = vmatprep.subr.mxu0 0.0
      %2961 = vmatpush1.msra.mxu0 %v2863
      %2962 = vmatprep.subr.mxu0 0.0
      %2963 = vmatpush1.msra.mxu0 %v2862
      %2964 = vmatprep.subr.mxu0 0.0
      %2965 = vmatpush1.msra.mxu0 %v2861
      %2966 = vmatprep.subr.mxu0 0.0
      %2967 = vmatpush1.msra.mxu0 %v2860
      %2968 = vmatprep.subr.mxu0 0.0
      %2969 = vmatpush1.msra.mxu0 %v2859
      %2970 = vmatprep.subr.mxu0 0.0
      %2971 = vmatpush1.msra.mxu0 %v2858
      %2972 = vmatprep.subr.mxu0 0.0
      %2973 = vmatpush1.msra.mxu0 %v2857
      %2974 = vmatprep.subr.mxu0 0.0
      %2975 = vmatpush1.msra.mxu0 %v2856
      %2976 = vmatprep.subr.mxu0 0.0
      %2977 = vmatpush1.msra.mxu0 %v2855
      %2978 = vmatprep.subr.mxu0 0.0
      %2979 = vmatpush2.msra.mxu0 0.0
      %2980 = vmatprep.subr.mxu0 0.0
      %2981 = vmatpush2.msra.mxu0 0.0
      %2982 = vmatprep.subr.mxu0 0.0
      %2983 = vmatpush2.msra.mxu0 0.0
      %2984 = vmatprep.subr.mxu0 0.0
      %2985 = vmatpush2.msra.mxu0 0.0
      %2986 = vmatprep.subr.mxu0 0.0
      %2987 = vmatpush2.msra.mxu0 0.0
      %2988 = vmatprep.subr.mxu0 0.0
      %2989 = vmatpush2.msra.mxu0 0.0
      %2990 = vmatprep.subr.mxu0 0.0
      %2991 = vmatpush2.msra.mxu0 0.0
      %2992 = vmatprep.subr.mxu0 0.0
      %2993 = vmatpush2.msra.mxu0 0.0
      %2994 = vmatprep.subr.mxu0 0.0
      %2995 = vmatpush2.msra.mxu0 0.0
      %2996 = vmatprep.subr.mxu0 0.0
      %2997 = vmatpush2.msra.mxu0 0.0
      %2998 = vmatprep.subr.mxu0 0.0
      %2999 = vmatpush2.msra.mxu0 0.0
      %3000 = vmatprep.subr.mxu0 0.0
      %3001 = vmatpush2.msra.mxu0 0.0
      %3002 = vmatprep.subr.mxu0 0.0
      %3003 = vmatpush2.msra.mxu0 0.0
      %3004 = vmatprep.subr.mxu0 0.0
      %3005 = vmatpush2.msra.mxu0 0.0
      %3006 = vmatprep.subr.mxu0 0.0
      %3007 = vmatpush2.msra.mxu0 0.0
      %3008 = vmatprep.subr.mxu0 0.0
      %3009 = vmatpush2.msra.mxu0 0.0
      %3010 = vmatprep.mubr.f32.mxu0 0.0
      %3011 = vmatmul.mubr.f32.gmra.mxu0 %v2818
      %v3012 = vpop.f32.mrf.mxu0
      %v3013 = vadd.f32 %v2938, %v3012
      %v3014 = vpop.f32.mrf.mxu0
      %3015 = vmatprep.mubr.f32.mxu0 0.0
      %3016 = vmatmul.mubr.f32.gmra.mxu0 %v2821
      %v3017 = vpop.f32.mrf.mxu0
      %v3018 = vadd.f32 %v2943, %v3017
      %v3019 = vpop.f32.mrf.mxu0
      %3020 = vdwg.mxu0
      %v3021 = vadd.f32 %v2808, %v3013
      %v3022 = vadd.f32 %v2809, %v3018
      %s3023 = sadd.s32 %s259, 104
      %s3024 = sshra.s32 %s3023, 3
      %s3025 = sand.u32 %s3023, 7
      %s3026 = smul.u32 %s3024, 3
      %s3027 = smul.addr %s3026, 8
      %s3028 = scalar_lea.vmem %s236, %s3027
      %v3029 = vld [vmem:[%s3028] sm:$0xff]
      %v3030 = vld [vmem:[%s3028 + $0x8] sm:$0xff]
      %v3031 = vld [vmem:[%s3028 + $0x10] sm:$0xff]
      %v3032 = vld [vmem:[%s3028 + $0x18] sm:$0xff]
      %v3033 = vld [vmem:[%s3028 + $0x20] sm:$0xff]
      %v3034 = vld [vmem:[%s3028 + $0x28] sm:$0xff]
      %s3035 = scalar_lea.vmem %s241, 4992
      %v3036 = vld [vmem:[%s3035] sm:$0xff]
      %v3037 = vld [vmem:[%s3035 + $0x8] sm:$0xff]
      %v3038 = vld [vmem:[%s3035 + $0x10] sm:$0xff]
      %v3039 = vld [vmem:[%s3035 + $0x18] sm:$0xff]
      %v3040 = vld [vmem:[%s3035 + $0x20] sm:$0xff]
      %v3041 = vld [vmem:[%s3035 + $0x28] sm:$0xff]
      %v3042 = vld [vmem:[%s3035 + $0x30] sm:$0xff]
      %v3043 = vld [vmem:[%s3035 + $0x38] sm:$0xff]
      %v3044 = vld [vmem:[%s3035 + $0x40] sm:$0xff]
      %v3045 = vld [vmem:[%s3035 + $0x48] sm:$0xff]
      %v3046 = vld [vmem:[%s3035 + $0x50] sm:$0xff]
      %v3047 = vld [vmem:[%s3035 + $0x58] sm:$0xff]
      %v3048 = vld [vmem:[%s3035 + $0x60] sm:$0xff]
      %v3049 = vld [vmem:[%s3035 + $0x68] sm:$0xff]
      %v3050 = vld [vmem:[%s3035 + $0x70] sm:$0xff]
      %v3051 = vld [vmem:[%s3035 + $0x78] sm:$0xff]
      %v3052 = vld [vmem:[%s3035 + $0x80] sm:$0xff]
      %v3053 = vld [vmem:[%s3035 + $0x88] sm:$0xff]
      %v3054 = vld [vmem:[%s3035 + $0x90] sm:$0xff]
      %v3055 = vld [vmem:[%s3035 + $0x98] sm:$0xff]
      %v3056 = vld [vmem:[%s3035 + $0xa0] sm:$0xff]
      %v3057 = vld [vmem:[%s3035 + $0xa8] sm:$0xff]
      %v3058 = vld [vmem:[%s3035 + $0xb0] sm:$0xff]
      %v3059 = vld [vmem:[%s3035 + $0xb8] sm:$0xff]
      %v3060 = vld [vmem:[%s3035 + $0xc0] sm:$0xff]
      %v3061 = vld [vmem:[%s3035 + $0xc8] sm:$0xff]
      %v3062 = vld [vmem:[%s3035 + $0xd0] sm:$0xff]
      %v3063 = vld [vmem:[%s3035 + $0xd8] sm:$0xff]
      %v3064 = vld [vmem:[%s3035 + $0xe0] sm:$0xff]
      %v3065 = vld [vmem:[%s3035 + $0xe8] sm:$0xff]
      %v3066 = vld [vmem:[%s3035 + $0xf0] sm:$0xff]
      %v3067 = vld [vmem:[%s3035 + $0xf8] sm:$0xff]
      %v3068 = vld [vmem:[%s3035 + $0x100] sm:$0xff]
      %v3069 = vld [vmem:[%s3035 + $0x108] sm:$0xff]
      %v3070 = vld [vmem:[%s3035 + $0x110] sm:$0xff]
      %v3071 = vld [vmem:[%s3035 + $0x118] sm:$0xff]
      %v3072 = vld [vmem:[%s3035 + $0x120] sm:$0xff]
      %v3073 = vld [vmem:[%s3035 + $0x128] sm:$0xff]
      %v3074 = vld [vmem:[%s3035 + $0x130] sm:$0xff]
      %v3075 = vld [vmem:[%s3035 + $0x138] sm:$0xff]
      %v3076 = vld [vmem:[%s3035 + $0x140] sm:$0xff]
      %v3077 = vld [vmem:[%s3035 + $0x148] sm:$0xff]
      %v3078 = vld [vmem:[%s3035 + $0x150] sm:$0xff]
      %v3079 = vld [vmem:[%s3035 + $0x158] sm:$0xff]
      %v3080 = vld [vmem:[%s3035 + $0x160] sm:$0xff]
      %v3081 = vld [vmem:[%s3035 + $0x168] sm:$0xff]
      %v3082 = vld [vmem:[%s3035 + $0x170] sm:$0xff]
      %v3083 = vld [vmem:[%s3035 + $0x178] sm:$0xff]
      %3084 = vmatprep.subr.mxu0 0.0
      %3085 = vmatpush1.msra.mxu0 %v3051
      %3086 = vmatprep.subr.mxu0 0.0
      %3087 = vmatpush1.msra.mxu0 %v3050
      %3088 = vmatprep.subr.mxu0 0.0
      %3089 = vmatpush1.msra.mxu0 %v3049
      %3090 = vmatprep.subr.mxu0 0.0
      %3091 = vmatpush1.msra.mxu0 %v3048
      %3092 = vmatprep.subr.mxu0 0.0
      %3093 = vmatpush1.msra.mxu0 %v3047
      %3094 = vmatprep.subr.mxu0 0.0
      %3095 = vmatpush1.msra.mxu0 %v3046
      %3096 = vmatprep.subr.mxu0 0.0
      %3097 = vmatpush1.msra.mxu0 %v3045
      %3098 = vmatprep.subr.mxu0 0.0
      %3099 = vmatpush1.msra.mxu0 %v3044
      %3100 = vmatprep.subr.mxu0 0.0
      %3101 = vmatpush1.msra.mxu0 %v3043
      %3102 = vmatprep.subr.mxu0 0.0
      %3103 = vmatpush1.msra.mxu0 %v3042
      %3104 = vmatprep.subr.mxu0 0.0
      %3105 = vmatpush1.msra.mxu0 %v3041
      %3106 = vmatprep.subr.mxu0 0.0
      %3107 = vmatpush1.msra.mxu0 %v3040
      %3108 = vmatprep.subr.mxu0 0.0
      %3109 = vmatpush1.msra.mxu0 %v3039
      %3110 = vmatprep.subr.mxu0 0.0
      %3111 = vmatpush1.msra.mxu0 %v3038
      %3112 = vmatprep.subr.mxu0 0.0
      %3113 = vmatpush1.msra.mxu0 %v3037
      %3114 = vmatprep.subr.mxu0 0.0
      %3115 = vmatpush1.msra.mxu0 %v3036
      %3116 = vmatprep.subr.mxu0 0.0
      %3117 = vmatpush2.msra.mxu0 %v3067
      %3118 = vmatprep.subr.mxu0 0.0
      %3119 = vmatpush2.msra.mxu0 %v3066
      %3120 = vmatprep.subr.mxu0 0.0
      %3121 = vmatpush2.msra.mxu0 %v3065
      %3122 = vmatprep.subr.mxu0 0.0
      %3123 = vmatpush2.msra.mxu0 %v3064
      %3124 = vmatprep.subr.mxu0 0.0
      %3125 = vmatpush2.msra.mxu0 %v3063
      %3126 = vmatprep.subr.mxu0 0.0
      %3127 = vmatpush2.msra.mxu0 %v3062
      %3128 = vmatprep.subr.mxu0 0.0
      %3129 = vmatpush2.msra.mxu0 %v3061
      %3130 = vmatprep.subr.mxu0 0.0
      %3131 = vmatpush2.msra.mxu0 %v3060
      %3132 = vmatprep.subr.mxu0 0.0
      %3133 = vmatpush2.msra.mxu0 %v3059
      %3134 = vmatprep.subr.mxu0 0.0
      %3135 = vmatpush2.msra.mxu0 %v3058
      %3136 = vmatprep.subr.mxu0 0.0
      %3137 = vmatpush2.msra.mxu0 %v3057
      %3138 = vmatprep.subr.mxu0 0.0
      %3139 = vmatpush2.msra.mxu0 %v3056
      %3140 = vmatprep.subr.mxu0 0.0
      %3141 = vmatpush2.msra.mxu0 %v3055
      %3142 = vmatprep.subr.mxu0 0.0
      %3143 = vmatpush2.msra.mxu0 %v3054
      %3144 = vmatprep.subr.mxu0 0.0
      %3145 = vmatpush2.msra.mxu0 %v3053
      %3146 = vmatprep.subr.mxu0 0.0
      %3147 = vmatpush2.msra.mxu0 %v3052
      %3148 = vmatprep.mubr.f32.mxu0 %v3030
      %3149 = vmatmul.mubr.f32.gmra.mxu0 %v3029
      %v3150 = vpop.f32.mrf.mxu0
      %v3151 = vadd.f32 0.0, %v3150
      %v3152 = vpop.f32.mrf.mxu0
      %3153 = vmatprep.mubr.f32.mxu0 %v3033
      %3154 = vmatmul.mubr.f32.gmra.mxu0 %v3032
      %v3155 = vpop.f32.mrf.mxu0
      %v3156 = vadd.f32 0.0, %v3155
      %v3157 = vpop.f32.mrf.mxu0
      %3158 = vdwg.mxu0
      %3159 = vmatprep.subr.mxu0 0.0
      %3160 = vmatpush1.msra.mxu0 %v3083
      %3161 = vmatprep.subr.mxu0 0.0
      %3162 = vmatpush1.msra.mxu0 %v3082
      %3163 = vmatprep.subr.mxu0 0.0
      %3164 = vmatpush1.msra.mxu0 %v3081
      %3165 = vmatprep.subr.mxu0 0.0
      %3166 = vmatpush1.msra.mxu0 %v3080
      %3167 = vmatprep.subr.mxu0 0.0
      %3168 = vmatpush1.msra.mxu0 %v3079
      %3169 = vmatprep.subr.mxu0 0.0
      %3170 = vmatpush1.msra.mxu0 %v3078
      %3171 = vmatprep.subr.mxu0 0.0
      %3172 = vmatpush1.msra.mxu0 %v3077
      %3173 = vmatprep.subr.mxu0 0.0
      %3174 = vmatpush1.msra.mxu0 %v3076
      %3175 = vmatprep.subr.mxu0 0.0
      %3176 = vmatpush1.msra.mxu0 %v3075
      %3177 = vmatprep.subr.mxu0 0.0
      %3178 = vmatpush1.msra.mxu0 %v3074
      %3179 = vmatprep.subr.mxu0 0.0
      %3180 = vmatpush1.msra.mxu0 %v3073
      %3181 = vmatprep.subr.mxu0 0.0
      %3182 = vmatpush1.msra.mxu0 %v3072
      %3183 = vmatprep.subr.mxu0 0.0
      %3184 = vmatpush1.msra.mxu0 %v3071
      %3185 = vmatprep.subr.mxu0 0.0
      %3186 = vmatpush1.msra.mxu0 %v3070
      %3187 = vmatprep.subr.mxu0 0.0
      %3188 = vmatpush1.msra.mxu0 %v3069
      %3189 = vmatprep.subr.mxu0 0.0
      %3190 = vmatpush1.msra.mxu0 %v3068
      %3191 = vmatprep.subr.mxu0 0.0
      %3192 = vmatpush2.msra.mxu0 0.0
      %3193 = vmatprep.subr.mxu0 0.0
      %3194 = vmatpush2.msra.mxu0 0.0
      %3195 = vmatprep.subr.mxu0 0.0
      %3196 = vmatpush2.msra.mxu0 0.0
      %3197 = vmatprep.subr.mxu0 0.0
      %3198 = vmatpush2.msra.mxu0 0.0
      %3199 = vmatprep.subr.mxu0 0.0
      %3200 = vmatpush2.msra.mxu0 0.0
      %3201 = vmatprep.subr.mxu0 0.0
      %3202 = vmatpush2.msra.mxu0 0.0
      %3203 = vmatprep.subr.mxu0 0.0
      %3204 = vmatpush2.msra.mxu0 0.0
      %3205 = vmatprep.subr.mxu0 0.0
      %3206 = vmatpush2.msra.mxu0 0.0
      %3207 = vmatprep.subr.mxu0 0.0
      %3208 = vmatpush2.msra.mxu0 0.0
      %3209 = vmatprep.subr.mxu0 0.0
      %3210 = vmatpush2.msra.mxu0 0.0
      %3211 = vmatprep.subr.mxu0 0.0
      %3212 = vmatpush2.msra.mxu0 0.0
      %3213 = vmatprep.subr.mxu0 0.0
      %3214 = vmatpush2.msra.mxu0 0.0
      %3215 = vmatprep.subr.mxu0 0.0
      %3216 = vmatpush2.msra.mxu0 0.0
      %3217 = vmatprep.subr.mxu0 0.0
      %3218 = vmatpush2.msra.mxu0 0.0
      %3219 = vmatprep.subr.mxu0 0.0
      %3220 = vmatpush2.msra.mxu0 0.0
      %3221 = vmatprep.subr.mxu0 0.0
      %3222 = vmatpush2.msra.mxu0 0.0
      %3223 = vmatprep.mubr.f32.mxu0 0.0
      %3224 = vmatmul.mubr.f32.gmra.mxu0 %v3031
      %v3225 = vpop.f32.mrf.mxu0
      %v3226 = vadd.f32 %v3151, %v3225
      %v3227 = vpop.f32.mrf.mxu0
      %3228 = vmatprep.mubr.f32.mxu0 0.0
      %3229 = vmatmul.mubr.f32.gmra.mxu0 %v3034
      %v3230 = vpop.f32.mrf.mxu0
      %v3231 = vadd.f32 %v3156, %v3230
      %v3232 = vpop.f32.mrf.mxu0
      %3233 = vdwg.mxu0
      %v3234 = vadd.f32 %v3021, %v3226
      %v3235 = vadd.f32 %v3022, %v3231
      %s3236 = sadd.s32 %s259, 112
      %s3237 = sshra.s32 %s3236, 3
      %s3238 = sand.u32 %s3236, 7
      %s3239 = smul.u32 %s3237, 3
      %s3240 = smul.addr %s3239, 8
      %s3241 = scalar_lea.vmem %s236, %s3240
      %v3242 = vld [vmem:[%s3241] sm:$0xff]
      %v3243 = vld [vmem:[%s3241 + $0x8] sm:$0xff]
      %v3244 = vld [vmem:[%s3241 + $0x10] sm:$0xff]
      %v3245 = vld [vmem:[%s3241 + $0x18] sm:$0xff]
      %v3246 = vld [vmem:[%s3241 + $0x20] sm:$0xff]
      %v3247 = vld [vmem:[%s3241 + $0x28] sm:$0xff]
      %s3248 = scalar_lea.vmem %s241, 5376
      %v3249 = vld [vmem:[%s3248] sm:$0xff]
      %v3250 = vld [vmem:[%s3248 + $0x8] sm:$0xff]
      %v3251 = vld [vmem:[%s3248 + $0x10] sm:$0xff]
      %v3252 = vld [vmem:[%s3248 + $0x18] sm:$0xff]
      %v3253 = vld [vmem:[%s3248 + $0x20] sm:$0xff]
      %v3254 = vld [vmem:[%s3248 + $0x28] sm:$0xff]
      %v3255 = vld [vmem:[%s3248 + $0x30] sm:$0xff]
      %v3256 = vld [vmem:[%s3248 + $0x38] sm:$0xff]
      %v3257 = vld [vmem:[%s3248 + $0x40] sm:$0xff]
      %v3258 = vld [vmem:[%s3248 + $0x48] sm:$0xff]
      %v3259 = vld [vmem:[%s3248 + $0x50] sm:$0xff]
      %v3260 = vld [vmem:[%s3248 + $0x58] sm:$0xff]
      %v3261 = vld [vmem:[%s3248 + $0x60] sm:$0xff]
      %v3262 = vld [vmem:[%s3248 + $0x68] sm:$0xff]
      %v3263 = vld [vmem:[%s3248 + $0x70] sm:$0xff]
      %v3264 = vld [vmem:[%s3248 + $0x78] sm:$0xff]
      %v3265 = vld [vmem:[%s3248 + $0x80] sm:$0xff]
      %v3266 = vld [vmem:[%s3248 + $0x88] sm:$0xff]
      %v3267 = vld [vmem:[%s3248 + $0x90] sm:$0xff]
      %v3268 = vld [vmem:[%s3248 + $0x98] sm:$0xff]
      %v3269 = vld [vmem:[%s3248 + $0xa0] sm:$0xff]
      %v3270 = vld [vmem:[%s3248 + $0xa8] sm:$0xff]
      %v3271 = vld [vmem:[%s3248 + $0xb0] sm:$0xff]
      %v3272 = vld [vmem:[%s3248 + $0xb8] sm:$0xff]
      %v3273 = vld [vmem:[%s3248 + $0xc0] sm:$0xff]
      %v3274 = vld [vmem:[%s3248 + $0xc8] sm:$0xff]
      %v3275 = vld [vmem:[%s3248 + $0xd0] sm:$0xff]
      %v3276 = vld [vmem:[%s3248 + $0xd8] sm:$0xff]
      %v3277 = vld [vmem:[%s3248 + $0xe0] sm:$0xff]
      %v3278 = vld [vmem:[%s3248 + $0xe8] sm:$0xff]
      %v3279 = vld [vmem:[%s3248 + $0xf0] sm:$0xff]
      %v3280 = vld [vmem:[%s3248 + $0xf8] sm:$0xff]
      %v3281 = vld [vmem:[%s3248 + $0x100] sm:$0xff]
      %v3282 = vld [vmem:[%s3248 + $0x108] sm:$0xff]
      %v3283 = vld [vmem:[%s3248 + $0x110] sm:$0xff]
      %v3284 = vld [vmem:[%s3248 + $0x118] sm:$0xff]
      %v3285 = vld [vmem:[%s3248 + $0x120] sm:$0xff]
      %v3286 = vld [vmem:[%s3248 + $0x128] sm:$0xff]
      %v3287 = vld [vmem:[%s3248 + $0x130] sm:$0xff]
      %v3288 = vld [vmem:[%s3248 + $0x138] sm:$0xff]
      %v3289 = vld [vmem:[%s3248 + $0x140] sm:$0xff]
      %v3290 = vld [vmem:[%s3248 + $0x148] sm:$0xff]
      %v3291 = vld [vmem:[%s3248 + $0x150] sm:$0xff]
      %v3292 = vld [vmem:[%s3248 + $0x158] sm:$0xff]
      %v3293 = vld [vmem:[%s3248 + $0x160] sm:$0xff]
      %v3294 = vld [vmem:[%s3248 + $0x168] sm:$0xff]
      %v3295 = vld [vmem:[%s3248 + $0x170] sm:$0xff]
      %v3296 = vld [vmem:[%s3248 + $0x178] sm:$0xff]
      %3297 = vmatprep.subr.mxu0 0.0
      %3298 = vmatpush1.msra.mxu0 %v3264
      %3299 = vmatprep.subr.mxu0 0.0
      %3300 = vmatpush1.msra.mxu0 %v3263
      %3301 = vmatprep.subr.mxu0 0.0
      %3302 = vmatpush1.msra.mxu0 %v3262
      %3303 = vmatprep.subr.mxu0 0.0
      %3304 = vmatpush1.msra.mxu0 %v3261
      %3305 = vmatprep.subr.mxu0 0.0
      %3306 = vmatpush1.msra.mxu0 %v3260
      %3307 = vmatprep.subr.mxu0 0.0
      %3308 = vmatpush1.msra.mxu0 %v3259
      %3309 = vmatprep.subr.mxu0 0.0
      %3310 = vmatpush1.msra.mxu0 %v3258
      %3311 = vmatprep.subr.mxu0 0.0
      %3312 = vmatpush1.msra.mxu0 %v3257
      %3313 = vmatprep.subr.mxu0 0.0
      %3314 = vmatpush1.msra.mxu0 %v3256
      %3315 = vmatprep.subr.mxu0 0.0
      %3316 = vmatpush1.msra.mxu0 %v3255
      %3317 = vmatprep.subr.mxu0 0.0
      %3318 = vmatpush1.msra.mxu0 %v3254
      %3319 = vmatprep.subr.mxu0 0.0
      %3320 = vmatpush1.msra.mxu0 %v3253
      %3321 = vmatprep.subr.mxu0 0.0
      %3322 = vmatpush1.msra.mxu0 %v3252
      %3323 = vmatprep.subr.mxu0 0.0
      %3324 = vmatpush1.msra.mxu0 %v3251
      %3325 = vmatprep.subr.mxu0 0.0
      %3326 = vmatpush1.msra.mxu0 %v3250
      %3327 = vmatprep.subr.mxu0 0.0
      %3328 = vmatpush1.msra.mxu0 %v3249
      %3329 = vmatprep.subr.mxu0 0.0
      %3330 = vmatpush2.msra.mxu0 %v3280
      %3331 = vmatprep.subr.mxu0 0.0
      %3332 = vmatpush2.msra.mxu0 %v3279
      %3333 = vmatprep.subr.mxu0 0.0
      %3334 = vmatpush2.msra.mxu0 %v3278
      %3335 = vmatprep.subr.mxu0 0.0
      %3336 = vmatpush2.msra.mxu0 %v3277
      %3337 = vmatprep.subr.mxu0 0.0
      %3338 = vmatpush2.msra.mxu0 %v3276
      %3339 = vmatprep.subr.mxu0 0.0
      %3340 = vmatpush2.msra.mxu0 %v3275
      %3341 = vmatprep.subr.mxu0 0.0
      %3342 = vmatpush2.msra.mxu0 %v3274
      %3343 = vmatprep.subr.mxu0 0.0
      %3344 = vmatpush2.msra.mxu0 %v3273
      %3345 = vmatprep.subr.mxu0 0.0
      %3346 = vmatpush2.msra.mxu0 %v3272
      %3347 = vmatprep.subr.mxu0 0.0
      %3348 = vmatpush2.msra.mxu0 %v3271
      %3349 = vmatprep.subr.mxu0 0.0
      %3350 = vmatpush2.msra.mxu0 %v3270
      %3351 = vmatprep.subr.mxu0 0.0
      %3352 = vmatpush2.msra.mxu0 %v3269
      %3353 = vmatprep.subr.mxu0 0.0
      %3354 = vmatpush2.msra.mxu0 %v3268
      %3355 = vmatprep.subr.mxu0 0.0
      %3356 = vmatpush2.msra.mxu0 %v3267
      %3357 = vmatprep.subr.mxu0 0.0
      %3358 = vmatpush2.msra.mxu0 %v3266
      %3359 = vmatprep.subr.mxu0 0.0
      %3360 = vmatpush2.msra.mxu0 %v3265
      %3361 = vmatprep.mubr.f32.mxu0 %v3243
      %3362 = vmatmul.mubr.f32.gmra.mxu0 %v3242
      %v3363 = vpop.f32.mrf.mxu0
      %v3364 = vadd.f32 0.0, %v3363
      %v3365 = vpop.f32.mrf.mxu0
      %3366 = vmatprep.mubr.f32.mxu0 %v3246
      %3367 = vmatmul.mubr.f32.gmra.mxu0 %v3245
      %v3368 = vpop.f32.mrf.mxu0
      %v3369 = vadd.f32 0.0, %v3368
      %v3370 = vpop.f32.mrf.mxu0
      %3371 = vdwg.mxu0
      %3372 = vmatprep.subr.mxu0 0.0
      %3373 = vmatpush1.msra.mxu0 %v3296
      %3374 = vmatprep.subr.mxu0 0.0
      %3375 = vmatpush1.msra.mxu0 %v3295
      %3376 = vmatprep.subr.mxu0 0.0
      %3377 = vmatpush1.msra.mxu0 %v3294
      %3378 = vmatprep.subr.mxu0 0.0
      %3379 = vmatpush1.msra.mxu0 %v3293
      %3380 = vmatprep.subr.mxu0 0.0
      %3381 = vmatpush1.msra.mxu0 %v3292
      %3382 = vmatprep.subr.mxu0 0.0
      %3383 = vmatpush1.msra.mxu0 %v3291
      %3384 = vmatprep.subr.mxu0 0.0
      %3385 = vmatpush1.msra.mxu0 %v3290
      %3386 = vmatprep.subr.mxu0 0.0
      %3387 = vmatpush1.msra.mxu0 %v3289
      %3388 = vmatprep.subr.mxu0 0.0
      %3389 = vmatpush1.msra.mxu0 %v3288
      %3390 = vmatprep.subr.mxu0 0.0
      %3391 = vmatpush1.msra.mxu0 %v3287
      %3392 = vmatprep.subr.mxu0 0.0
      %3393 = vmatpush1.msra.mxu0 %v3286
      %3394 = vmatprep.subr.mxu0 0.0
      %3395 = vmatpush1.msra.mxu0 %v3285
      %3396 = vmatprep.subr.mxu0 0.0
      %3397 = vmatpush1.msra.mxu0 %v3284
      %3398 = vmatprep.subr.mxu0 0.0
      %3399 = vmatpush1.msra.mxu0 %v3283
      %3400 = vmatprep.subr.mxu0 0.0
      %3401 = vmatpush1.msra.mxu0 %v3282
      %3402 = vmatprep.subr.mxu0 0.0
      %3403 = vmatpush1.msra.mxu0 %v3281
      %3404 = vmatprep.subr.mxu0 0.0
      %3405 = vmatpush2.msra.mxu0 0.0
      %3406 = vmatprep.subr.mxu0 0.0
      %3407 = vmatpush2.msra.mxu0 0.0
      %3408 = vmatprep.subr.mxu0 0.0
      %3409 = vmatpush2.msra.mxu0 0.0
      %3410 = vmatprep.subr.mxu0 0.0
      %3411 = vmatpush2.msra.mxu0 0.0
      %3412 = vmatprep.subr.mxu0 0.0
      %3413 = vmatpush2.msra.mxu0 0.0
      %3414 = vmatprep.subr.mxu0 0.0
      %3415 = vmatpush2.msra.mxu0 0.0
      %3416 = vmatprep.subr.mxu0 0.0
      %3417 = vmatpush2.msra.mxu0 0.0
      %3418 = vmatprep.subr.mxu0 0.0
      %3419 = vmatpush2.msra.mxu0 0.0
      %3420 = vmatprep.subr.mxu0 0.0
      %3421 = vmatpush2.msra.mxu0 0.0
      %3422 = vmatprep.subr.mxu0 0.0
      %3423 = vmatpush2.msra.mxu0 0.0
      %3424 = vmatprep.subr.mxu0 0.0
      %3425 = vmatpush2.msra.mxu0 0.0
      %3426 = vmatprep.subr.mxu0 0.0
      %3427 = vmatpush2.msra.mxu0 0.0
      %3428 = vmatprep.subr.mxu0 0.0
      %3429 = vmatpush2.msra.mxu0 0.0
      %3430 = vmatprep.subr.mxu0 0.0
      %3431 = vmatpush2.msra.mxu0 0.0
      %3432 = vmatprep.subr.mxu0 0.0
      %3433 = vmatpush2.msra.mxu0 0.0
      %3434 = vmatprep.subr.mxu0 0.0
      %3435 = vmatpush2.msra.mxu0 0.0
      %3436 = vmatprep.mubr.f32.mxu0 0.0
      %3437 = vmatmul.mubr.f32.gmra.mxu0 %v3244
      %v3438 = vpop.f32.mrf.mxu0
      %v3439 = vadd.f32 %v3364, %v3438
      %v3440 = vpop.f32.mrf.mxu0
      %3441 = vmatprep.mubr.f32.mxu0 0.0
      %3442 = vmatmul.mubr.f32.gmra.mxu0 %v3247
      %v3443 = vpop.f32.mrf.mxu0
      %v3444 = vadd.f32 %v3369, %v3443
      %v3445 = vpop.f32.mrf.mxu0
      %3446 = vdwg.mxu0
      %v3447 = vadd.f32 %v3234, %v3439
      %v3448 = vadd.f32 %v3235, %v3444
      %s3449 = sadd.s32 %s259, 120
      %s3450 = sshra.s32 %s3449, 3
      %s3451 = sand.u32 %s3449, 7
      %s3452 = smul.u32 %s3450, 3
      %s3453 = smul.addr %s3452, 8
      %s3454 = scalar_lea.vmem %s236, %s3453
      %v3455 = vld [vmem:[%s3454] sm:$0xff]
      %v3456 = vld [vmem:[%s3454 + $0x8] sm:$0xff]
      %v3457 = vld [vmem:[%s3454 + $0x10] sm:$0xff]
      %v3458 = vld [vmem:[%s3454 + $0x18] sm:$0xff]
      %v3459 = vld [vmem:[%s3454 + $0x20] sm:$0xff]
      %v3460 = vld [vmem:[%s3454 + $0x28] sm:$0xff]
      %s3461 = scalar_lea.vmem %s241, 5760
      %v3462 = vld [vmem:[%s3461] sm:$0xff]
      %v3463 = vld [vmem:[%s3461 + $0x8] sm:$0xff]
      %v3464 = vld [vmem:[%s3461 + $0x10] sm:$0xff]
      %v3465 = vld [vmem:[%s3461 + $0x18] sm:$0xff]
      %v3466 = vld [vmem:[%s3461 + $0x20] sm:$0xff]
      %v3467 = vld [vmem:[%s3461 + $0x28] sm:$0xff]
      %v3468 = vld [vmem:[%s3461 + $0x30] sm:$0xff]
      %v3469 = vld [vmem:[%s3461 + $0x38] sm:$0xff]
      %v3470 = vld [vmem:[%s3461 + $0x40] sm:$0xff]
      %v3471 = vld [vmem:[%s3461 + $0x48] sm:$0xff]
      %v3472 = vld [vmem:[%s3461 + $0x50] sm:$0xff]
      %v3473 = vld [vmem:[%s3461 + $0x58] sm:$0xff]
      %v3474 = vld [vmem:[%s3461 + $0x60] sm:$0xff]
      %v3475 = vld [vmem:[%s3461 + $0x68] sm:$0xff]
      %v3476 = vld [vmem:[%s3461 + $0x70] sm:$0xff]
      %v3477 = vld [vmem:[%s3461 + $0x78] sm:$0xff]
      %v3478 = vld [vmem:[%s3461 + $0x80] sm:$0xff]
      %v3479 = vld [vmem:[%s3461 + $0x88] sm:$0xff]
      %v3480 = vld [vmem:[%s3461 + $0x90] sm:$0xff]
      %v3481 = vld [vmem:[%s3461 + $0x98] sm:$0xff]
      %v3482 = vld [vmem:[%s3461 + $0xa0] sm:$0xff]
      %v3483 = vld [vmem:[%s3461 + $0xa8] sm:$0xff]
      %v3484 = vld [vmem:[%s3461 + $0xb0] sm:$0xff]
      %v3485 = vld [vmem:[%s3461 + $0xb8] sm:$0xff]
      %v3486 = vld [vmem:[%s3461 + $0xc0] sm:$0xff]
      %v3487 = vld [vmem:[%s3461 + $0xc8] sm:$0xff]
      %v3488 = vld [vmem:[%s3461 + $0xd0] sm:$0xff]
      %v3489 = vld [vmem:[%s3461 + $0xd8] sm:$0xff]
      %v3490 = vld [vmem:[%s3461 + $0xe0] sm:$0xff]
      %v3491 = vld [vmem:[%s3461 + $0xe8] sm:$0xff]
      %v3492 = vld [vmem:[%s3461 + $0xf0] sm:$0xff]
      %v3493 = vld [vmem:[%s3461 + $0xf8] sm:$0xff]
      %v3494 = vld [vmem:[%s3461 + $0x100] sm:$0xff]
      %v3495 = vld [vmem:[%s3461 + $0x108] sm:$0xff]
      %v3496 = vld [vmem:[%s3461 + $0x110] sm:$0xff]
      %v3497 = vld [vmem:[%s3461 + $0x118] sm:$0xff]
      %v3498 = vld [vmem:[%s3461 + $0x120] sm:$0xff]
      %v3499 = vld [vmem:[%s3461 + $0x128] sm:$0xff]
      %v3500 = vld [vmem:[%s3461 + $0x130] sm:$0xff]
      %v3501 = vld [vmem:[%s3461 + $0x138] sm:$0xff]
      %v3502 = vld [vmem:[%s3461 + $0x140] sm:$0xff]
      %v3503 = vld [vmem:[%s3461 + $0x148] sm:$0xff]
      %v3504 = vld [vmem:[%s3461 + $0x150] sm:$0xff]
      %v3505 = vld [vmem:[%s3461 + $0x158] sm:$0xff]
      %v3506 = vld [vmem:[%s3461 + $0x160] sm:$0xff]
      %v3507 = vld [vmem:[%s3461 + $0x168] sm:$0xff]
      %v3508 = vld [vmem:[%s3461 + $0x170] sm:$0xff]
      %v3509 = vld [vmem:[%s3461 + $0x178] sm:$0xff]
      %3510 = vmatprep.subr.mxu0 0.0
      %3511 = vmatpush1.msra.mxu0 %v3477
      %3512 = vmatprep.subr.mxu0 0.0
      %3513 = vmatpush1.msra.mxu0 %v3476
      %3514 = vmatprep.subr.mxu0 0.0
      %3515 = vmatpush1.msra.mxu0 %v3475
      %3516 = vmatprep.subr.mxu0 0.0
      %3517 = vmatpush1.msra.mxu0 %v3474
      %3518 = vmatprep.subr.mxu0 0.0
      %3519 = vmatpush1.msra.mxu0 %v3473
      %3520 = vmatprep.subr.mxu0 0.0
      %3521 = vmatpush1.msra.mxu0 %v3472
      %3522 = vmatprep.subr.mxu0 0.0
      %3523 = vmatpush1.msra.mxu0 %v3471
      %3524 = vmatprep.subr.mxu0 0.0
      %3525 = vmatpush1.msra.mxu0 %v3470
      %3526 = vmatprep.subr.mxu0 0.0
      %3527 = vmatpush1.msra.mxu0 %v3469
      %3528 = vmatprep.subr.mxu0 0.0
      %3529 = vmatpush1.msra.mxu0 %v3468
      %3530 = vmatprep.subr.mxu0 0.0
      %3531 = vmatpush1.msra.mxu0 %v3467
      %3532 = vmatprep.subr.mxu0 0.0
      %3533 = vmatpush1.msra.mxu0 %v3466
      %3534 = vmatprep.subr.mxu0 0.0
      %3535 = vmatpush1.msra.mxu0 %v3465
      %3536 = vmatprep.subr.mxu0 0.0
      %3537 = vmatpush1.msra.mxu0 %v3464
      %3538 = vmatprep.subr.mxu0 0.0
      %3539 = vmatpush1.msra.mxu0 %v3463
      %3540 = vmatprep.subr.mxu0 0.0
      %3541 = vmatpush1.msra.mxu0 %v3462
      %3542 = vmatprep.subr.mxu0 0.0
      %3543 = vmatpush2.msra.mxu0 %v3493
      %3544 = vmatprep.subr.mxu0 0.0
      %3545 = vmatpush2.msra.mxu0 %v3492
      %3546 = vmatprep.subr.mxu0 0.0
      %3547 = vmatpush2.msra.mxu0 %v3491
      %3548 = vmatprep.subr.mxu0 0.0
      %3549 = vmatpush2.msra.mxu0 %v3490
      %3550 = vmatprep.subr.mxu0 0.0
      %3551 = vmatpush2.msra.mxu0 %v3489
      %3552 = vmatprep.subr.mxu0 0.0
      %3553 = vmatpush2.msra.mxu0 %v3488
      %3554 = vmatprep.subr.mxu0 0.0
      %3555 = vmatpush2.msra.mxu0 %v3487
      %3556 = vmatprep.subr.mxu0 0.0
      %3557 = vmatpush2.msra.mxu0 %v3486
      %3558 = vmatprep.subr.mxu0 0.0
      %3559 = vmatpush2.msra.mxu0 %v3485
      %3560 = vmatprep.subr.mxu0 0.0
      %3561 = vmatpush2.msra.mxu0 %v3484
      %3562 = vmatprep.subr.mxu0 0.0
      %3563 = vmatpush2.msra.mxu0 %v3483
      %3564 = vmatprep.subr.mxu0 0.0
      %3565 = vmatpush2.msra.mxu0 %v3482
      %3566 = vmatprep.subr.mxu0 0.0
      %3567 = vmatpush2.msra.mxu0 %v3481
      %3568 = vmatprep.subr.mxu0 0.0
      %3569 = vmatpush2.msra.mxu0 %v3480
      %3570 = vmatprep.subr.mxu0 0.0
      %3571 = vmatpush2.msra.mxu0 %v3479
      %3572 = vmatprep.subr.mxu0 0.0
      %3573 = vmatpush2.msra.mxu0 %v3478
      %3574 = vmatprep.mubr.f32.mxu0 %v3456
      %3575 = vmatmul.mubr.f32.gmra.mxu0 %v3455
      %v3576 = vpop.f32.mrf.mxu0
      %v3577 = vadd.f32 0.0, %v3576
      %v3578 = vpop.f32.mrf.mxu0
      %3579 = vmatprep.mubr.f32.mxu0 %v3459
      %3580 = vmatmul.mubr.f32.gmra.mxu0 %v3458
      %v3581 = vpop.f32.mrf.mxu0
      %v3582 = vadd.f32 0.0, %v3581
      %v3583 = vpop.f32.mrf.mxu0
      %3584 = vdwg.mxu0
      %3585 = vmatprep.subr.mxu0 0.0
      %3586 = vmatpush1.msra.mxu0 %v3509
      %3587 = vmatprep.subr.mxu0 0.0
      %3588 = vmatpush1.msra.mxu0 %v3508
      %3589 = vmatprep.subr.mxu0 0.0
      %3590 = vmatpush1.msra.mxu0 %v3507
      %3591 = vmatprep.subr.mxu0 0.0
      %3592 = vmatpush1.msra.mxu0 %v3506
      %3593 = vmatprep.subr.mxu0 0.0
      %3594 = vmatpush1.msra.mxu0 %v3505
      %3595 = vmatprep.subr.mxu0 0.0
      %3596 = vmatpush1.msra.mxu0 %v3504
      %3597 = vmatprep.subr.mxu0 0.0
      %3598 = vmatpush1.msra.mxu0 %v3503
      %3599 = vmatprep.subr.mxu0 0.0
      %3600 = vmatpush1.msra.mxu0 %v3502
      %3601 = vmatprep.subr.mxu0 0.0
      %3602 = vmatpush1.msra.mxu0 %v3501
      %3603 = vmatprep.subr.mxu0 0.0
      %3604 = vmatpush1.msra.mxu0 %v3500
      %3605 = vmatprep.subr.mxu0 0.0
      %3606 = vmatpush1.msra.mxu0 %v3499
      %3607 = vmatprep.subr.mxu0 0.0
      %3608 = vmatpush1.msra.mxu0 %v3498
      %3609 = vmatprep.subr.mxu0 0.0
      %3610 = vmatpush1.msra.mxu0 %v3497
      %3611 = vmatprep.subr.mxu0 0.0
      %3612 = vmatpush1.msra.mxu0 %v3496
      %3613 = vmatprep.subr.mxu0 0.0
      %3614 = vmatpush1.msra.mxu0 %v3495
      %3615 = vmatprep.subr.mxu0 0.0
      %3616 = vmatpush1.msra.mxu0 %v3494
      %3617 = vmatprep.subr.mxu0 0.0
      %3618 = vmatpush2.msra.mxu0 0.0
      %3619 = vmatprep.subr.mxu0 0.0
      %3620 = vmatpush2.msra.mxu0 0.0
      %3621 = vmatprep.subr.mxu0 0.0
      %3622 = vmatpush2.msra.mxu0 0.0
      %3623 = vmatprep.subr.mxu0 0.0
      %3624 = vmatpush2.msra.mxu0 0.0
      %3625 = vmatprep.subr.mxu0 0.0
      %3626 = vmatpush2.msra.mxu0 0.0
      %3627 = vmatprep.subr.mxu0 0.0
      %3628 = vmatpush2.msra.mxu0 0.0
      %3629 = vmatprep.subr.mxu0 0.0
      %3630 = vmatpush2.msra.mxu0 0.0
      %3631 = vmatprep.subr.mxu0 0.0
      %3632 = vmatpush2.msra.mxu0 0.0
      %3633 = vmatprep.subr.mxu0 0.0
      %3634 = vmatpush2.msra.mxu0 0.0
      %3635 = vmatprep.subr.mxu0 0.0
      %3636 = vmatpush2.msra.mxu0 0.0
      %3637 = vmatprep.subr.mxu0 0.0
      %3638 = vmatpush2.msra.mxu0 0.0
      %3639 = vmatprep.subr.mxu0 0.0
      %3640 = vmatpush2.msra.mxu0 0.0
      %3641 = vmatprep.subr.mxu0 0.0
      %3642 = vmatpush2.msra.mxu0 0.0
      %3643 = vmatprep.subr.mxu0 0.0
      %3644 = vmatpush2.msra.mxu0 0.0
      %3645 = vmatprep.subr.mxu0 0.0
      %3646 = vmatpush2.msra.mxu0 0.0
      %3647 = vmatprep.subr.mxu0 0.0
      %3648 = vmatpush2.msra.mxu0 0.0
      %3649 = vmatprep.mubr.f32.mxu0 0.0
      %3650 = vmatmul.mubr.f32.gmra.mxu0 %v3457
      %v3651 = vpop.f32.mrf.mxu0
      %v3652 = vadd.f32 %v3577, %v3651
      %v3653 = vpop.f32.mrf.mxu0
      %3654 = vmatprep.mubr.f32.mxu0 0.0
      %3655 = vmatmul.mubr.f32.gmra.mxu0 %v3460
      %v3656 = vpop.f32.mrf.mxu0
      %v3657 = vadd.f32 %v3582, %v3656
      %v3658 = vpop.f32.mrf.mxu0
      %3659 = vdwg.mxu0
      %v3660 = vadd.f32 %v3447, %v3652
      %v3661 = vadd.f32 %v3448, %v3657
      %v3662 = vld [vmem:[%s244] sm:$0x1]
      %v3664 = vlaneseq
      %v3665 = vshrl.u32 %v3664, 7
      %v3666 = vsub.s32 0, %v3665
      %v3667 = vrot.slane %v3662, %v3666
      %v3669 = vadd.f32 %v3660, %v3667
      %v3670 = vadd.f32 %v3661, %v3667
      %v3671 = vmul.f32 %v3669, 0.5
      %v3672 = vmul.f32 %v3670, 0.5
      %v3673 = vmul.f32 %v3669, 0.70710677
      %v3674 = vmul.f32 %v3670, 0.70710677
      %v3675 = verf.f32.pop %v3673
      %v3676 = verf.f32.pop %v3674
      %v3677 = vadd.f32 %v3675, 1.0
      %v3678 = vadd.f32 %v3676, 1.0
      %v3679 = vmul.f32 %v3671, %v3677
      %v3680 = vmul.f32 %v3672, %v3678
      %vm3681 = vcmask 392192
      %3682 = vst.msk [vmem:[%s257] sm:$0xff] %vm3681, %v3679
      %3683 = vst.msk [vmem:[%s257 + $0x8] sm:$0xff] %vm3681, %v3680
      %s3684 = smul.u32 2, %s21
      %p3685 = scmp.lt.s32.totalorder %s20, 1
      %s3686 = scalar_select %p3685, %s20, 1
      %p3687 = scmp.lt.s32.totalorder %s19, 15
      %s3688 = scalar_select %p3687, %s19, 15
      %p3689 = scmp.lt.s32.totalorder %s3684, 1
      %s3690 = scalar_select %p3689, %s3684, 1
      %s3691 = smul.addr %s3688, 2
      %s3692 = sadd.s32 %s3690, %s3691
      %s3693 = smul.addr %s3686, 32
      %s3694 = sadd.s32 %s3692, %s3693
      %s3695 = smul.addr %s3694, 8
      %s3696 = scalar_lea.vmem %s3, %s3695
      // Predicated region
      $region33: #{positional_conv_embedding.1} parent=31 // pred_check
        %p3697 = pneg %p135
      $region34: #{positional_conv_embedding.1} parent=31 // pred_check_branch
        %3699 = sbr.rel (%p3697) target = $region36
      $region35: #{positional_conv_embedding.1} parent=31 // pred_region
        %s3700 = smul.u32 2, %s21
      $region36: #{positional_conv_embedding.1} parent=31 // pred_fallthru
        _
    $region32: #{positional_conv_embedding.1} parent=5 // pred_fallthru
      _
    %p3701 = scmp.le.s32.totalorder 2, %s9
    // Predicated region
    $region37: #{positional_conv_embedding.1} parent=5 // pred_check
      %p3702 = pneg %p3701
    $region38: #{positional_conv_embedding.1} parent=5 // pred_check_branch
      %3704 = sbr.rel (%p3702) target = $region40
    $region39: #{positional_conv_embedding.1} parent=5 // pred_region
      %s3705 = ssub.s32 %s9, 2
      // Predicated region
      $region41: #{positional_conv_embedding.1} parent=39 // pred_check
        %p3706 = pneg %p141
      $region42: #{positional_conv_embedding.1} parent=39 // pred_check_branch
        %3708 = sbr.rel (%p3706) target = $region44
      $region43: #{positional_conv_embedding.1} parent=39 // pred_region
        %s3709 = smul.u32 2, %s24
        %p3710 = scmp.lt.s32.totalorder %s23, 1
        %s3711 = scalar_select %p3710, %s23, 1
        %p3712 = scmp.lt.s32.totalorder %s22, 15
        %s3713 = scalar_select %p3712, %s22, 15
        %p3714 = scmp.lt.s32.totalorder %s3709, 1
        %s3715 = scalar_select %p3714, %s3709, 1
        %s3716 = smul.addr %s3713, 2
        %s3717 = sadd.s32 %s3715, %s3716
        %s3718 = smul.addr %s3711, 32
        %s3719 = sadd.s32 %s3717, %s3718
        %s3720 = smul.addr %s3719, 8
        %s3721 = scalar_lea.vmem %s3, %s3720
      $region44: #{positional_conv_embedding.1} parent=39 // pred_fallthru
        _
    $region40: #{positional_conv_embedding.1} parent=5 // pred_fallthru
      _
  $region6: #{positional_conv_embedding.1} parent=0 // loop_footer
    %s13 = sadd.s32 1, %s9
  $region7: #{positional_conv_embedding.1} parent=0 // loop_footer_branch
    %8 = sbr.rel target = $region3
  $region8: #{positional_conv_embedding.1} parent=0 // loop_exit
    _

</llo_original>
